<compile_context>
chip_gen: v7x
topology: tpu7x:2x2x1
jax: 0.10.0
libtpu: 0.0.40
codegen_flags: <defaults>
</compile_context>

<pallas_src>
import jax
import jax.numpy as jnp
import numpy as np
from jax import lax
from jax.experimental import pallas as pl
from jax.experimental.pallas import tpu as pltpu

EPS = 1e-5      # BatchNorm3d default eps
LANE = 128      # TPU lane width: channel padding target

try:
    _CompilerParams = pltpu.CompilerParams
except AttributeError:          # older JAX spelling
    _CompilerParams = pltpu.TPUCompilerParams

_VMEM_LIMIT = 48 * 1024 * 1024  # stay below v7x's 64 MiB physical VMEM


def _round_up(x, m):
    return (x + m - 1) // m * m


# --------------------------- pass A: conv + stats ----------------------------

def _conv_stats_kernel(x0_ref, x1_ref, x2_ref, w_ref, out_ref, stats_ref,
                       acc_ref):
    """3x3x3 conv (stride 1) for one (n, d) output depth slice + partial stats.

      x{kd}_ref : (1, 1, H+2, W+2, Cin_p)  bf16   padded input at depth d+kd
      w_ref     : (3, 3, 3*Cin_p, Cout_p)  bf16   K ordered as (kw, cin)
      out_ref   : (1, 1, H*W, Cout_p)      f32    conv output (pre-BN)
      stats_ref : (1, 1, 2, Cout_p)        f32    [sum, sum of squares] over (h,w)
      acc_ref   : (H*W, Cout_p)            f32    VMEM scratch accumulator
    """
    _, _, hp, wp, cin_p = x0_ref.shape
    H, W = hp - 2, wp - 2

    acc_ref[...] = jnp.zeros_like(acc_ref)

    for kd, x_ref in enumerate((x0_ref, x1_ref, x2_ref)):
        # Fold kw into the contraction: concat the 3 kw-shifted windows along
        # the channel (lane) axis -> (H+2, W, 3*Cin_p). One shifted copy per kw
        # instead of one per (kd, kh, kw) tap.
        xcat = jnp.concatenate(
            [x_ref[0, 0, :, kw:kw + W, :] for kw in range(3)], axis=-1)
        for kh in range(3):
            lhs = xcat[kh:kh + H].reshape(H * W, 3 * cin_p)
            acc_ref[...] += jnp.dot(lhs, w_ref[kd, kh],
                                    preferred_element_type=jnp.float32)

    acc = acc_ref[...]
    out_ref[0, 0] = acc
    stats_ref[0, 0] = jnp.concatenate(
        [jnp.sum(acc, axis=0, keepdims=True),
         jnp.sum(acc * acc, axis=0, keepdims=True)], axis=0)


def _conv3x3x3_stats(xpad, w_taps):
    """xpad: (N, D+2, H+2, W+2, Cin_p) bf16 -> (conv (N,D,H*W,Cout_p) f32,
    partial stats (N, D, 2, Cout_p) f32)."""
    N, Dp, Hp, Wp, cin_p = xpad.shape
    D, H, W = Dp - 2, Hp - 2, Wp - 2
    HW = H * W
    cout_p = w_taps.shape[-1]

    in_block = (1, 1, Hp, Wp, cin_p)
    flops = 2 * N * D * HW * 27 * cin_p * cout_p
    bytes_accessed = (3 * xpad.size * 2 + w_taps.size * 2
                      + N * D * HW * cout_p * 4 + N * D * 2 * cout_p * 4)

    return pl.pallas_call(
        _conv_stats_kernel,
        out_shape=(jax.ShapeDtypeStruct((N, D, HW, cout_p), jnp.float32),
                   jax.ShapeDtypeStruct((N, D, 2, cout_p), jnp.float32)),
        grid_spec=pltpu.PrefetchScalarGridSpec(
            num_scalar_prefetch=0,
            grid=(N, D),
            in_specs=[
                # D-halo via three depth-shifted views of the padded input.
                pl.BlockSpec(in_block, lambda n, d: (n, d, 0, 0, 0)),
                pl.BlockSpec(in_block, lambda n, d: (n, d + 1, 0, 0, 0)),
                pl.BlockSpec(in_block, lambda n, d: (n, d + 2, 0, 0, 0)),
                pl.BlockSpec(w_taps.shape, lambda n, d: (0, 0, 0, 0)),
            ],
            out_specs=[
                pl.BlockSpec((1, 1, HW, cout_p), lambda n, d: (n, d, 0, 0)),
                pl.BlockSpec((1, 1, 2, cout_p), lambda n, d: (n, d, 0, 0)),
            ],
            scratch_shapes=[pltpu.VMEM((HW, cout_p), jnp.float32)],
        ),
        compiler_params=_CompilerParams(
            dimension_semantics=("parallel", "parallel"),
            vmem_limit_bytes=_VMEM_LIMIT),
        cost_estimate=pl.CostEstimate(flops=flops, transcendentals=0,
                                      bytes_accessed=bytes_accessed),
    )(xpad, xpad, xpad, w_taps)


# ------------------- pass B: normalize (+residual) + ReLU --------------------

def _bn_act_kernel(conv_ref, scale_ref, shift_ref, out_ref):
    y = conv_ref[0, 0] * scale_ref[...] + shift_ref[...]
    out_ref[0, 0] = jnp.maximum(y, 0.0).astype(out_ref.dtype)


def _bn_res_act_kernel(conv_ref, scale_ref, shift_ref, res_ref, out_ref):
    y = conv_ref[0, 0] * scale_ref[...] + shift_ref[...] + res_ref[0, 0]
    out_ref[0, 0] = jnp.maximum(y, 0.0).astype(out_ref.dtype)


def _bn_act(conv_out, scale, shift, out_dtype, residual=None):
    N, D, HW, cp = conv_out.shape
    tile = pl.BlockSpec((1, 1, HW, cp), lambda n, d: (n, d, 0, 0))
    vec = pl.BlockSpec((1, cp), lambda n, d: (0, 0))

    in_specs = [tile, vec, vec]
    args = [conv_out, scale, shift]
    kernel = _bn_act_kernel
    if residual is not None:                 # stage 2 only: no zeros DMA in stage 1
        in_specs.append(tile)
        args.append(residual)
        kernel = _bn_res_act_kernel

    return pl.pallas_call(
        kernel,
        out_shape=jax.ShapeDtypeStruct((N, D, HW, cp), out_dtype),
        grid_spec=pltpu.PrefetchScalarGridSpec(
            num_scalar_prefetch=0,
            grid=(N, D),
            in_specs=in_specs,
            out_specs=tile,
        ),
        compiler_params=_CompilerParams(
            dimension_semantics=("parallel", "parallel"),
            vmem_limit_bytes=_VMEM_LIMIT),
    )(*args)


# -------------------------------- glue ---------------------------------------

def _bn_scale_shift(stats, gamma, beta, count):
    """Fold globally reduced batch stats + affine params into scale/shift (f32)."""
    cp = stats.shape[-1]
    total = jnp.sum(stats, axis=(0, 1))                      # (2, Cp)
    mean = total[0] / count
    var = jnp.maximum(total[1] / count - mean * mean, 0.0)   # biased batch var
    g = jnp.pad(gamma.astype(jnp.float32), (0, cp - gamma.shape[0]))
    b = jnp.pad(beta.astype(jnp.float32), (0, cp - beta.shape[0]))
    scale = g * lax.rsqrt(var + EPS)
    shift = b - mean * scale
    return scale.reshape(1, cp), shift.reshape(1, cp)


def _torch_weight_to_taps(w, cin_p, cout_p):
    """(Cout, Cin, kd, kh, kw) -> (kd, kh, kw*Cin_p + cin, Cout_p) bf16."""
    cout, cin = w.shape[0], w.shape[1]
    wt = jnp.transpose(w, (2, 3, 4, 1, 0))                   # (kd, kh, kw, ci, co)
    wt = jnp.pad(wt, ((0, 0), (0, 0), (0, 0),
                      (0, cin_p - cin), (0, cout_p - cout)))
    return wt.reshape(3, 3, 3 * cin_p, cout_p).astype(jnp.bfloat16)


def basic_block_forward(x_ncdhw, params):
    """x_ncdhw: (N, C, D, H, W) float32 (PyTorch layout). Returns (N, C, D, H, W)."""
    x = jnp.transpose(x_ncdhw, (0, 2, 3, 4, 1)).astype(jnp.float32)   # -> NDHWC
    N, D, H, W, C = x.shape
    planes = params["w1"].shape[0]
    assert planes == C, "stride=1 / downsample=None implies inplanes == planes"
    cp = _round_up(C, LANE)
    count = N * D * H * W

    # Channel pad to a lane-dense width; padded channels stay exactly 0 through
    # both stages because weights / gamma / beta are zero-padded.
    x_p = jnp.pad(x, ((0, 0),) * 4 + ((0, cp - C),))                  # f32 residual
    spad = ((0, 0), (1, 1), (1, 1), (1, 1), (0, 0))

    w1 = _torch_weight_to_taps(params["w1"], cp, cp)
    w2 = _torch_weight_to_taps(params["w2"], cp, cp)

    # --- conv1 -> bn1 -> relu -------------------------------------------------
    conv1, stats1 = _conv3x3x3_stats(jnp.pad(x_p.astype(jnp.bfloat16), spad), w1)
    scale1, shift1 = _bn_scale_shift(stats1, params["gamma1"], params["beta1"],
                                     count)
    y1 = _bn_act(conv1, scale1, shift1, jnp.bfloat16)                 # (N,D,HW,Cp)

    # --- conv2 -> bn2 -> (+x) -> relu ------------------------------------------
    conv2, stats2 = _conv3x3x3_stats(
        jnp.pad(y1.reshape(N, D, H, W, cp), spad), w2)
    scale2, shift2 = _bn_scale_shift(stats2, params["gamma2"], params["beta2"],
                                     count)
    out_p = _bn_act(conv2, scale2, shift2, jnp.float32,
                    residual=x_p.reshape(N, D, H * W, cp))

    out = out_p.reshape(N, D, H, W, cp)[..., :C]
    return jnp.transpose(out, (0, 4, 1, 2, 3))                        # -> NCDHW


# ------------------------- pure-JAX reference ---------------------------------

def reference_forward(x, params):
    def conv3d(x, w):
        return lax.conv_general_dilated(
            x, w, window_strides=(1, 1, 1),
            padding=((1, 1), (1, 1), (1, 1)),
            dimension_numbers=("NCDHW", "OIDHW", "NCDHW"),
            precision=lax.Precision.HIGHEST)

    def bn(x, gamma, beta):
        mean = jnp.mean(x, axis=(0, 2, 3, 4), keepdims=True)
        var = jnp.mean((x - mean) ** 2, axis=(0, 2, 3, 4), keepdims=True)
        xn = (x - mean) * lax.rsqrt(var + EPS)
        return xn * gamma.reshape(1, -1, 1, 1, 1) + beta.reshape(1, -1, 1, 1, 1)

    out = jax.nn.relu(bn(conv3d(x, params["w1"]), params["gamma1"], params["beta1"]))
    out = bn(conv3d(out, params["w2"]), params["gamma2"], params["beta2"])
    out = out + x
    return jax.nn.relu(out)


# ----------------------------------- main --------------------------------------

if __name__ == "__main__":
    key = jax.random.PRNGKey(0)
    N, C, D, H, W = 2, 8, 4, 8, 8      # inplanes == planes (stride=1, no downsample)
    planes = C
    ks = jax.random.split(key, 7)

    x = jax.random.normal(ks[0], (N, C, D, H, W), jnp.float32)
    params = {
        "w1": 0.1 * jax.random.normal(ks[1], (planes, C, 3, 3, 3), jnp.float32),
        "w2": 0.1 * jax.random.normal(ks[2], (planes, planes, 3, 3, 3), jnp.float32),
        "gamma1": 1.0 + 0.1 * jax.random.normal(ks[3], (planes,), jnp.float32),
        "beta1": 0.1 * jax.random.normal(ks[4], (planes,), jnp.float32),
        "gamma2": 1.0 + 0.1 * jax.random.normal(ks[5], (planes,), jnp.float32),
        "beta2": 0.1 * jax.random.normal(ks[6], (planes,), jnp.float32),
    }

    out = jax.jit(basic_block_forward)(x, params)
    out = jax.block_until_ready(out)

    ref = reference_forward(x, params)
    # Tolerance accounts for bf16 MXU operands (reference is f32 HIGHEST).
    np.testing.assert_allclose(np.asarray(out), np.asarray(ref),
                               atol=3e-2, rtol=3e-2)

    print("KERNEL_OK")
</pallas_src>

<mosaic_0001>
module attributes {stable_mosaic.version = 11 : i64} {
  func.func @_bn_act_kernel(%arg0: i32, %arg1: i32, %arg2: memref<1x1x64x128xf32, #tpu.memory_space<vmem>>, %arg3: memref<1x128xf32, #tpu.memory_space<vmem>>, %arg4: memref<1x128xf32, #tpu.memory_space<vmem>>, %arg5: memref<1x1x64x128xbf16, #tpu.memory_space<vmem>>) attributes {dimension_semantics = [#tpu.dimension_semantics<parallel>, #tpu.dimension_semantics<parallel>], iteration_bounds = array<i64: 2, 4>, scalar_prefetch = 0 : i64, scratch_operands = 0 : i64, tpu.core_type = #tpu.core_type<tc>, window_params = [{transform_indices = @transform_0, window_bounds = array<i64: 1, 1, 64, 128>}, {pipeline_mode = #tpu.pipeline_mode<synchronous>, transform_indices = @transform_1, window_bounds = array<i64: 1, 128>}, {pipeline_mode = #tpu.pipeline_mode<synchronous>, transform_indices = @transform_2, window_bounds = array<i64: 1, 128>}, {transform_indices = @transform_3, window_bounds = array<i64: 1, 1, 64, 128>}]} {
    %c0 = arith.constant 0 : index
    %c0_0 = arith.constant 0 : index
    %c0_1 = arith.constant 0 : index
    %c0_2 = arith.constant 0 : index
    %0 = vector.load %arg2[%c0, %c0_0, %c0_1, %c0_2] : memref<1x1x64x128xf32, #tpu.memory_space<vmem>>, vector<1x1x64x128xf32>
    %1 = vector.shape_cast %0 : vector<1x1x64x128xf32> to vector<64x128xf32>
    %c0_3 = arith.constant 0 : index
    %c0_4 = arith.constant 0 : index
    %2 = vector.load %arg3[%c0_3, %c0_4] : memref<1x128xf32, #tpu.memory_space<vmem>>, vector<1x128xf32>
    %3 = vector.broadcast %2 : vector<1x128xf32> to vector<64x128xf32>
    %4 = arith.mulf %1, %3 : vector<64x128xf32>
    %c0_5 = arith.constant 0 : index
    %c0_6 = arith.constant 0 : index
    %5 = vector.load %arg4[%c0_5, %c0_6] : memref<1x128xf32, #tpu.memory_space<vmem>>, vector<1x128xf32>
    %6 = vector.broadcast %5 : vector<1x128xf32> to vector<64x128xf32>
    %7 = arith.addf %4, %6 : vector<64x128xf32>
    %cst = arith.constant 0.000000e+00 : f32
    %8 = vector.broadcast %cst : f32 to vector<64x128xf32>
    %9 = arith.maximumf %7, %8 : vector<64x128xf32>
    %10 = arith.truncf %9 : vector<64x128xf32> to vector<64x128xbf16>
    %c0_7 = arith.constant 0 : index
    %c0_8 = arith.constant 0 : index
    %c0_9 = arith.constant 0 : index
    %c0_10 = arith.constant 0 : index
    %11 = vector.load %arg5[%c0_7, %c0_8, %c0_9, %c0_10] : memref<1x1x64x128xbf16, #tpu.memory_space<vmem>>, vector<1x1x64x128xbf16>
    %12 = vector.shape_cast %11 : vector<1x1x64x128xbf16> to vector<64x128xbf16>
    %13 = vector.shape_cast %10 : vector<64x128xbf16> to vector<1x1x64x128xbf16>
    tpu.vector_store %arg5[%c0_7, %c0_8, %c0_9, %c0_10], %13 {strides = array<i32>} : memref<1x1x64x128xbf16, #tpu.memory_space<vmem>>, vector<1x1x64x128xbf16>,
    return
  }
  func.func @transform_0(%arg0: i32, %arg1: i32) -> (i32, i32, i32, i32) {
    %c0_i32 = arith.constant 0 : i32
    %c0_i32_0 = arith.constant 0 : i32
    %c0_i32_1 = arith.constant 0 : i32
    return %arg0, %arg1, %c0_i32, %c0_i32_0 : i32, i32, i32, i32
  }
  func.func @transform_1(%arg0: i32, %arg1: i32) -> (i32, i32) {
    %c0_i32 = arith.constant 0 : i32
    %c0_i32_0 = arith.constant 0 : i32
    %c0_i32_1 = arith.constant 0 : i32
    return %c0_i32, %c0_i32_0 : i32, i32
  }
  func.func @transform_2(%arg0: i32, %arg1: i32) -> (i32, i32) {
    %c0_i32 = arith.constant 0 : i32
    %c0_i32_0 = arith.constant 0 : i32
    %c0_i32_1 = arith.constant 0 : i32
    return %c0_i32, %c0_i32_0 : i32, i32
  }
  func.func @transform_3(%arg0: i32, %arg1: i32) -> (i32, i32, i32, i32) {
    %c0_i32 = arith.constant 0 : i32
    %c0_i32_0 = arith.constant 0 : i32
    %c0_i32_1 = arith.constant 0 : i32
    return %arg0, %arg1, %c0_i32, %c0_i32_0 : i32, i32, i32, i32
  }
}

module attributes {stable_mosaic.version = 11 : i64} {
  func.func @_conv_stats_kernel(%arg0: i32, %arg1: i32, %arg2: memref<1x1x10x10x128xbf16, #tpu.memory_space<vmem>>, %arg3: memref<1x1x10x10x128xbf16, #tpu.memory_space<vmem>>, %arg4: memref<1x1x10x10x128xbf16, #tpu.memory_space<vmem>>, %arg5: memref<3x3x384x128xbf16, #tpu.memory_space<vmem>>, %arg6: memref<1x1x64x128xf32, #tpu.memory_space<vmem>>, %arg7: memref<1x1x2x128xf32, #tpu.memory_space<vmem>>, %arg8: memref<64x128xf32, #tpu.memory_space<vmem>>) attributes {dimension_semantics = [#tpu.dimension_semantics<parallel>, #tpu.dimension_semantics<parallel>], iteration_bounds = array<i64: 2, 4>, scalar_prefetch = 0 : i64, scratch_operands = 1 : i64, tpu.core_type = #tpu.core_type<tc>, window_params = [{transform_indices = @transform_0, window_bounds = array<i64: 1, 1, 10, 10, 128>}, {transform_indices = @transform_1, window_bounds = array<i64: 1, 1, 10, 10, 128>}, {transform_indices = @transform_2, window_bounds = array<i64: 1, 1, 10, 10, 128>}, {pipeline_mode = #tpu.pipeline_mode<synchronous>, transform_indices = @transform_3, window_bounds = array<i64: 3, 3, 384, 128>}, {transform_indices = @transform_4, window_bounds = array<i64: 1, 1, 64, 128>}, {transform_indices = @transform_5, window_bounds = array<i64: 1, 1, 2, 128>}]} {
    %cst = arith.constant 0.000000e+00 : f32
    %0 = vector.broadcast %cst : f32 to vector<64x128xf32>
    %c0 = arith.constant 0 : index
    %c0_0 = arith.constant 0 : index
    %1 = vector.load %arg8[%c0, %c0_0] : memref<64x128xf32, #tpu.memory_space<vmem>>, vector<64x128xf32>
    tpu.vector_store %arg8[%c0, %c0_0], %0 {strides = array<i32>} : memref<64x128xf32, #tpu.memory_space<vmem>>, vector<64x128xf32>,
    %c0_1 = arith.constant 0 : index
    %c0_2 = arith.constant 0 : index
    %c0_3 = arith.constant 0 : index
    %c0_4 = arith.constant 0 : index
    %c0_5 = arith.constant 0 : index
    %2 = vector.load %arg2[%c0_1, %c0_2, %c0_3, %c0_4, %c0_5] : memref<1x1x10x10x128xbf16, #tpu.memory_space<vmem>>, vector<1x1x10x8x128xbf16>
    %3 = vector.shape_cast %2 : vector<1x1x10x8x128xbf16> to vector<10x8x128xbf16>
    %c0_6 = arith.constant 0 : index
    %c0_7 = arith.constant 0 : index
    %c0_8 = arith.constant 0 : index
    %c1 = arith.constant 1 : index
    %c0_9 = arith.constant 0 : index
    %4 = vector.load %arg2[%c0_6, %c0_7, %c0_8, %c1, %c0_9] : memref<1x1x10x10x128xbf16, #tpu.memory_space<vmem>>, vector<1x1x10x8x128xbf16>
    %5 = vector.shape_cast %4 : vector<1x1x10x8x128xbf16> to vector<10x8x128xbf16>
    %c0_10 = arith.constant 0 : index
    %c0_11 = arith.constant 0 : index
    %c0_12 = arith.constant 0 : index
    %c2 = arith.constant 2 : index
    %c0_13 = arith.constant 0 : index
    %6 = vector.load %arg2[%c0_10, %c0_11, %c0_12, %c2, %c0_13] : memref<1x1x10x10x128xbf16, #tpu.memory_space<vmem>>, vector<1x1x10x8x128xbf16>
    %7 = vector.shape_cast %6 : vector<1x1x10x8x128xbf16> to vector<10x8x128xbf16>
    %8 = tpu.concatenate %3, %5, %7 in 2 : vector<10x8x128xbf16>, vector<10x8x128xbf16>, vector<10x8x128xbf16> -> vector<10x8x384xbf16>
    %9 = vector.extract_strided_slice %8 {offsets = [0, 0, 0], sizes = [8, 8, 384], strides = [1, 1, 1]} : vector<10x8x384xbf16> to vector<8x8x384xbf16>
    %10 = vector.shape_cast %9 : vector<8x8x384xbf16> to vector<64x384xbf16>
    %c0_14 = arith.constant 0 : index
    %c0_15 = arith.constant 0 : index
    %11 = vector.load %arg8[%c0_14, %c0_15] : memref<64x128xf32, #tpu.memory_space<vmem>>, vector<64x128xf32>
    %c0_16 = arith.constant 0 : index
    %c0_17 = arith.constant 0 : index
    %c0_18 = arith.constant 0 : index
    %c0_19 = arith.constant 0 : index
    %12 = vector.load %arg5[%c0_16, %c0_17, %c0_18, %c0_19] : memref<3x3x384x128xbf16, #tpu.memory_space<vmem>>, vector<1x1x384x128xbf16>
    %13 = vector.shape_cast %12 : vector<1x1x384x128xbf16> to vector<384x128xbf16>
    %cst_20 = arith.constant dense<0.000000e+00> : vector<64x128xf32>
    %14 = tpu.matmul %10, %13, %cst_20 {dimension_numbers = #tpu.dot_dimension_numbers<[1], [0], [0], [1], [0, 0, 1, 1], [], []>} : vector<64x384xbf16>, vector<384x128xbf16>, vector<64x128xf32> -> vector<64x128xf32>
    %15 = arith.addf %11, %14 : vector<64x128xf32>
    %c0_21 = arith.constant 0 : index
    %c0_22 = arith.constant 0 : index
    %16 = vector.load %arg8[%c0_21, %c0_22] : memref<64x128xf32, #tpu.memory_space<vmem>>, vector<64x128xf32>
    tpu.vector_store %arg8[%c0_21, %c0_22], %15 {strides = array<i32>} : memref<64x128xf32, #tpu.memory_space<vmem>>, vector<64x128xf32>,
    %17 = vector.extract_strided_slice %8 {offsets = [1, 0, 0], sizes = [8, 8, 384], strides = [1, 1, 1]} : vector<10x8x384xbf16> to vector<8x8x384xbf16>
    %18 = vector.shape_cast %17 : vector<8x8x384xbf16> to vector<64x384xbf16>
    %c0_23 = arith.constant 0 : index
    %c0_24 = arith.constant 0 : index
    %19 = vector.load %arg8[%c0_23, %c0_24] : memref<64x128xf32, #tpu.memory_space<vmem>>, vector<64x128xf32>
    %c0_25 = arith.constant 0 : index
    %c1_26 = arith.constant 1 : index
    %c0_27 = arith.constant 0 : index
    %c0_28 = arith.constant 0 : index
    %20 = vector.load %arg5[%c0_25, %c1_26, %c0_27, %c0_28] : memref<3x3x384x128xbf16, #tpu.memory_space<vmem>>, vector<1x1x384x128xbf16>
    %21 = vector.shape_cast %20 : vector<1x1x384x128xbf16> to vector<384x128xbf16>
    %cst_29 = arith.constant dense<0.000000e+00> : vector<64x128xf32>
    %22 = tpu.matmul %18, %21, %cst_29 {dimension_numbers = #tpu.dot_dimension_numbers<[1], [0], [0], [1], [0, 0, 1, 1], [], []>} : vector<64x384xbf16>, vector<384x128xbf16>, vector<64x128xf32> -> vector<64x128xf32>
    %23 = arith.addf %19, %22 : vector<64x128xf32>
    %c0_30 = arith.constant 0 : index
    %c0_31 = arith.constant 0 : index
    %24 = vector.load %arg8[%c0_30, %c0_31] : memref<64x128xf32, #tpu.memory_space<vmem>>, vector<64x128xf32>
    tpu.vector_store %arg8[%c0_30, %c0_31], %23 {strides = array<i32>} : memref<64x128xf32, #tpu.memory_space<vmem>>, vector<64x128xf32>,
    %25 = vector.extract_strided_slice %8 {offsets = [2, 0, 0], sizes = [8, 8, 384], strides = [1, 1, 1]} : vector<10x8x384xbf16> to vector<8x8x384xbf16>
    %26 = vector.shape_cast %25 : vector<8x8x384xbf16> to vector<64x384xbf16>
    %c0_32 = arith.constant 0 : index
    %c0_33 = arith.constant 0 : index
    %27 = vector.load %arg8[%c0_32, %c0_33] : memref<64x128xf32, #tpu.memory_space<vmem>>, vector<64x128xf32>
    %c0_34 = arith.constant 0 : index
    %c2_35 = arith.constant 2 : index
    %c0_36 = arith.constant 0 : index
    %c0_37 = arith.constant 0 : index
    %28 = vector.load %arg5[%c0_34, %c2_35, %c0_36, %c0_37] : memref<3x3x384x128xbf16, #tpu.memory_space<vmem>>, vector<1x1x384x128xbf16>
    %29 = vector.shape_cast %28 : vector<1x1x384x128xbf16> to vector<384x128xbf16>
    %cst_38 = arith.constant dense<0.000000e+00> : vector<64x128xf32>
    %30 = tpu.matmul %26, %29, %cst_38 {dimension_numbers = #tpu.dot_dimension_numbers<[1], [0], [0], [1], [0, 0, 1, 1], [], []>} : vector<64x384xbf16>, vector<384x128xbf16>, vector<64x128xf32> -> vector<64x128xf32>
    %31 = arith.addf %27, %30 : vector<64x128xf32>
    %c0_39 = arith.constant 0 : index
    %c0_40 = arith.constant 0 : index
    %32 = vector.load %arg8[%c0_39, %c0_40] : memref<64x128xf32, #tpu.memory_space<vmem>>, vector<64x128xf32>
    tpu.vector_store %arg8[%c0_39, %c0_40], %31 {strides = array<i32>} : memref<64x128xf32, #tpu.memory_space<vmem>>, vector<64x128xf32>,
    %c0_41 = arith.constant 0 : index
    %c0_42 = arith.constant 0 : index
    %c0_43 = arith.constant 0 : index
    %c0_44 = arith.constant 0 : index
    %c0_45 = arith.constant 0 : index
    %33 = vector.load %arg3[%c0_41, %c0_42, %c0_43, %c0_44, %c0_45] : memref<1x1x10x10x128xbf16, #tpu.memory_space<vmem>>, vector<1x1x10x8x128xbf16>
    %34 = vector.shape_cast %33 : vector<1x1x10x8x128xbf16> to vector<10x8x128xbf16>
    %c0_46 = arith.constant 0 : index
    %c0_47 = arith.constant 0 : index
    %c0_48 = arith.constant 0 : index
    %c1_49 = arith.constant 1 : index
    %c0_50 = arith.constant 0 : index
    %35 = vector.load %arg3[%c0_46, %c0_47, %c0_48, %c1_49, %c0_50] : memref<1x1x10x10x128xbf16, #tpu.memory_space<vmem>>, vector<1x1x10x8x128xbf16>
    %36 = vector.shape_cast %35 : vector<1x1x10x8x128xbf16> to vector<10x8x128xbf16>
    %c0_51 = arith.constant 0 : index
    %c0_52 = arith.constant 0 : index
    %c0_53 = arith.constant 0 : index
    %c2_54 = arith.constant 2 : index
    %c0_55 = arith.constant 0 : index
    %37 = vector.load %arg3[%c0_51, %c0_52, %c0_53, %c2_54, %c0_55] : memref<1x1x10x10x128xbf16, #tpu.memory_space<vmem>>, vector<1x1x10x8x128xbf16>
    %38 = vector.shape_cast %37 : vector<1x1x10x8x128xbf16> to vector<10x8x128xbf16>
    %39 = tpu.concatenate %34, %36, %38 in 2 : vector<10x8x128xbf16>, vector<10x8x128xbf16>, vector<10x8x128xbf16> -> vector<10x8x384xbf16>
    %40 = vector.extract_strided_slice %39 {offsets = [0, 0, 0], sizes = [8, 8, 384], strides = [1, 1, 1]} : vector<10x8x384xbf16> to vector<8x8x384xbf16>
    %41 = vector.shape_cast %40 : vector<8x8x384xbf16> to vector<64x384xbf16>
    %c0_56 = arith.constant 0 : index
    %c0_57 = arith.constant 0 : index
    %42 = vector.load %arg8[%c0_56, %c0_57] : memref<64x128xf32, #tpu.memory_space<vmem>>, vector<64x128xf32>
    %c1_58 = arith.constant 1 : index
    %c0_59 = arith.constant 0 : index
    %c0_60 = arith.constant 0 : index
    %c0_61 = arith.constant 0 : index
    %43 = vector.load %arg5[%c1_58, %c0_59, %c0_60, %c0_61] : memref<3x3x384x128xbf16, #tpu.memory_space<vmem>>, vector<1x1x384x128xbf16>
    %44 = vector.shape_cast %43 : vector<1x1x384x128xbf16> to vector<384x128xbf16>
    %cst_62 = arith.constant dense<0.000000e+00> : vector<64x128xf32>
    %45 = tpu.matmul %41, %44, %cst_62 {dimension_numbers = #tpu.dot_dimension_numbers<[1], [0], [0], [1], [0, 0, 1, 1], [], []>} : vector<64x384xbf16>, vector<384x128xbf16>, vector<64x128xf32> -> vector<64x128xf32>
    %46 = arith.addf %42, %45 : vector<64x128xf32>
    %c0_63 = arith.constant 0 : index
    %c0_64 = arith.constant 0 : index
    %47 = vector.load %arg8[%c0_63, %c0_64] : memref<64x128xf32, #tpu.memory_space<vmem>>, vector<64x128xf32>
    tpu.vector_store %arg8[%c0_63, %c0_64], %46 {strides = array<i32>} : memref<64x128xf32, #tpu.memory_space<vmem>>, vector<64x128xf32>,
    %48 = vector.extract_strided_slice %39 {offsets = [1, 0, 0], sizes = [8, 8, 384], strides = [1, 1, 1]} : vector<10x8x384xbf16> to vector<8x8x384xbf16>
    %49 = vector.shape_cast %48 : vector<8x8x384xbf16> to vector<64x384xbf16>
    %c0_65 = arith.constant 0 : index
    %c0_66 = arith.constant 0 : index
    %50 = vector.load %arg8[%c0_65, %c0_66] : memref<64x128xf32, #tpu.memory_space<vmem>>, vector<64x128xf32>
    %c1_67 = arith.constant 1 : index
    %c1_68 = arith.constant 1 : index
    %c0_69 = arith.constant 0 : index
    %c0_70 = arith.constant 0 : index
    %51 = vector.load %arg5[%c1_67, %c1_68, %c0_69, %c0_70] : memref<3x3x384x128xbf16, #tpu.memory_space<vmem>>, vector<1x1x384x128xbf16>
    %52 = vector.shape_cast %51 : vector<1x1x384x128xbf16> to vector<384x128xbf16>
    %cst_71 = arith.constant dense<0.000000e+00> : vector<64x128xf32>
    %53 = tpu.matmul %49, %52, %cst_71 {dimension_numbers = #tpu.dot_dimension_numbers<[1], [0], [0], [1], [0, 0, 1, 1], [], []>} : vector<64x384xbf16>, vector<384x128xbf16>, vector<64x128xf32> -> vector<64x128xf32>
    %54 = arith.addf %50, %53 : vector<64x128xf32>
    %c0_72 = arith.constant 0 : index
    %c0_73 = arith.constant 0 : index
    %55 = vector.load %arg8[%c0_72, %c0_73] : memref<64x128xf32, #tpu.memory_space<vmem>>, vector<64x128xf32>
    tpu.vector_store %arg8[%c0_72, %c0_73], %54 {strides = array<i32>} : memref<64x128xf32, #tpu.memory_space<vmem>>, vector<64x128xf32>,
    %56 = vector.extract_strided_slice %39 {offsets = [2, 0, 0], sizes = [8, 8, 384], strides = [1, 1, 1]} : vector<10x8x384xbf16> to vector<8x8x384xbf16>
    %57 = vector.shape_cast %56 : vector<8x8x384xbf16> to vector<64x384xbf16>
    %c0_74 = arith.constant 0 : index
    %c0_75 = arith.constant 0 : index
    %58 = vector.load %arg8[%c0_74, %c0_75] : memref<64x128xf32, #tpu.memory_space<vmem>>, vector<64x128xf32>
    %c1_76 = arith.constant 1 : index
    %c2_77 = arith.constant 2 : index
    %c0_78 = arith.constant 0 : index
    %c0_79 = arith.constant 0 : index
    %59 = vector.load %arg5[%c1_76, %c2_77, %c0_78, %c0_79] : memref<3x3x384x128xbf16, #tpu.memory_space<vmem>>, vector<1x1x384x128xbf16>
    %60 = vector.shape_cast %59 : vector<1x1x384x128xbf16> to vector<384x128xbf16>
    %cst_80 = arith.constant dense<0.000000e+00> : vector<64x128xf32>
    %61 = tpu.matmul %57, %60, %cst_80 {dimension_numbers = #tpu.dot_dimension_numbers<[1], [0], [0], [1], [0, 0, 1, 1], [], []>} : vector<64x384xbf16>, vector<384x128xbf16>, vector<64x128xf32> -> vector<64x128xf32>
    %62 = arith.addf %58, %61 : vector<64x128xf32>
    %c0_81 = arith.constant 0 : index
    %c0_82 = arith.constant 0 : index
    %63 = vector.load %arg8[%c0_81, %c0_82] : memref<64x128xf32, #tpu.memory_space<vmem>>, vector<64x128xf32>
    tpu.vector_store %arg8[%c0_81, %c0_82], %62 {strides = array<i32>} : memref<64x128xf32, #tpu.memory_space<vmem>>, vector<64x128xf32>,
    %c0_83 = arith.constant 0 : index
    %c0_84 = arith.constant 0 : index
    %c0_85 = arith.constant 0 : index
    %c0_86 = arith.constant 0 : index
    %c0_87 = arith.constant 0 : index
    %64 = vector.load %arg4[%c0_83, %c0_84, %c0_85, %c0_86, %c0_87] : memref<1x1x10x10x128xbf16, #tpu.memory_space<vmem>>, vector<1x1x10x8x128xbf16>
    %65 = vector.shape_cast %64 : vector<1x1x10x8x128xbf16> to vector<10x8x128xbf16>
    %c0_88 = arith.constant 0 : index
    %c0_89 = arith.constant 0 : index
    %c0_90 = arith.constant 0 : index
    %c1_91 = arith.constant 1 : index
    %c0_92 = arith.constant 0 : index
    %66 = vector.load %arg4[%c0_88, %c0_89, %c0_90, %c1_91, %c0_92] : memref<1x1x10x10x128xbf16, #tpu.memory_space<vmem>>, vector<1x1x10x8x128xbf16>
    %67 = vector.shape_cast %66 : vector<1x1x10x8x128xbf16> to vector<10x8x128xbf16>
    %c0_93 = arith.constant 0 : index
    %c0_94 = arith.constant 0 : index
    %c0_95 = arith.constant 0 : index
    %c2_96 = arith.constant 2 : index
    %c0_97 = arith.constant 0 : index
    %68 = vector.load %arg4[%c0_93, %c0_94, %c0_95, %c2_96, %c0_97] : memref<1x1x10x10x128xbf16, #tpu.memory_space<vmem>>, vector<1x1x10x8x128xbf16>
    %69 = vector.shape_cast %68 : vector<1x1x10x8x128xbf16> to vector<10x8x128xbf16>
    %70 = tpu.concatenate %65, %67, %69 in 2 : vector<10x8x128xbf16>, vector<10x8x128xbf16>, vector<10x8x128xbf16> -> vector<10x8x384xbf16>
    %71 = vector.extract_strided_slice %70 {offsets = [0, 0, 0], sizes = [8, 8, 384], strides = [1, 1, 1]} : vector<10x8x384xbf16> to vector<8x8x384xbf16>
    %72 = vector.shape_cast %71 : vector<8x8x384xbf16> to vector<64x384xbf16>
    %c0_98 = arith.constant 0 : index
    %c0_99 = arith.constant 0 : index
    %73 = vector.load %arg8[%c0_98, %c0_99] : memref<64x128xf32, #tpu.memory_space<vmem>>, vector<64x128xf32>
    %c2_100 = arith.constant 2 : index
    %c0_101 = arith.constant 0 : index
    %c0_102 = arith.constant 0 : index
    %c0_103 = arith.constant 0 : index
    %74 = vector.load %arg5[%c2_100, %c0_101, %c0_102, %c0_103] : memref<3x3x384x128xbf16, #tpu.memory_space<vmem>>, vector<1x1x384x128xbf16>
    %75 = vector.shape_cast %74 : vector<1x1x384x128xbf16> to vector<384x128xbf16>
    %cst_104 = arith.constant dense<0.000000e+00> : vector<64x128xf32>
    %76 = tpu.matmul %72, %75, %cst_104 {dimension_numbers = #tpu.dot_dimension_numbers<[1], [0], [0], [1], [0, 0, 1, 1], [], []>} : vector<64x384xbf16>, vector<384x128xbf16>, vector<64x128xf32> -> vector<64x128xf32>
    %77 = arith.addf %73, %76 : vector<64x128xf32>
    %c0_105 = arith.constant 0 : index
    %c0_106 = arith.constant 0 : index
    %78 = vector.load %arg8[%c0_105, %c0_106] : memref<64x128xf32, #tpu.memory_space<vmem>>, vector<64x128xf32>
    tpu.vector_store %arg8[%c0_105, %c0_106], %77 {strides = array<i32>} : memref<64x128xf32, #tpu.memory_space<vmem>>, vector<64x128xf32>,
    %79 = vector.extract_strided_slice %70 {offsets = [1, 0, 0], sizes = [8, 8, 384], strides = [1, 1, 1]} : vector<10x8x384xbf16> to vector<8x8x384xbf16>
    %80 = vector.shape_cast %79 : vector<8x8x384xbf16> to vector<64x384xbf16>
    %c0_107 = arith.constant 0 : index
    %c0_108 = arith.constant 0 : index
    %81 = vector.load %arg8[%c0_107, %c0_108] : memref<64x128xf32, #tpu.memory_space<vmem>>, vector<64x128xf32>
    %c2_109 = arith.constant 2 : index
    %c1_110 = arith.constant 1 : index
    %c0_111 = arith.constant 0 : index
    %c0_112 = arith.constant 0 : index
    %82 = vector.load %arg5[%c2_109, %c1_110, %c0_111, %c0_112] : memref<3x3x384x128xbf16, #tpu.memory_space<vmem>>, vector<1x1x384x128xbf16>
    %83 = vector.shape_cast %82 : vector<1x1x384x128xbf16> to vector<384x128xbf16>
    %cst_113 = arith.constant dense<0.000000e+00> : vector<64x128xf32>
    %84 = tpu.matmul %80, %83, %cst_113 {dimension_numbers = #tpu.dot_dimension_numbers<[1], [0], [0], [1], [0, 0, 1, 1], [], []>} : vector<64x384xbf16>, vector<384x128xbf16>, vector<64x128xf32> -> vector<64x128xf32>
    %85 = arith.addf %81, %84 : vector<64x128xf32>
    %c0_114 = arith.constant 0 : index
    %c0_115 = arith.constant 0 : index
    %86 = vector.load %arg8[%c0_114, %c0_115] : memref<64x128xf32, #tpu.memory_space<vmem>>, vector<64x128xf32>
    tpu.vector_store %arg8[%c0_114, %c0_115], %85 {strides = array<i32>} : memref<64x128xf32, #tpu.memory_space<vmem>>, vector<64x128xf32>,
    %87 = vector.extract_strided_slice %70 {offsets = [2, 0, 0], sizes = [8, 8, 384], strides = [1, 1, 1]} : vector<10x8x384xbf16> to vector<8x8x384xbf16>
    %88 = vector.shape_cast %87 : vector<8x8x384xbf16> to vector<64x384xbf16>
    %c0_116 = arith.constant 0 : index
    %c0_117 = arith.constant 0 : index
    %89 = vector.load %arg8[%c0_116, %c0_117] : memref<64x128xf32, #tpu.memory_space<vmem>>, vector<64x128xf32>
    %c2_118 = arith.constant 2 : index
    %c2_119 = arith.constant 2 : index
    %c0_120 = arith.constant 0 : index
    %c0_121 = arith.constant 0 : index
    %90 = vector.load %arg5[%c2_118, %c2_119, %c0_120, %c0_121] : memref<3x3x384x128xbf16, #tpu.memory_space<vmem>>, vector<1x1x384x128xbf16>
    %91 = vector.shape_cast %90 : vector<1x1x384x128xbf16> to vector<384x128xbf16>
    %cst_122 = arith.constant dense<0.000000e+00> : vector<64x128xf32>
    %92 = tpu.matmul %88, %91, %cst_122 {dimension_numbers = #tpu.dot_dimension_numbers<[1], [0], [0], [1], [0, 0, 1, 1], [], []>} : vector<64x384xbf16>, vector<384x128xbf16>, vector<64x128xf32> -> vector<64x128xf32>
    %93 = arith.addf %89, %92 : vector<64x128xf32>
    %c0_123 = arith.constant 0 : index
    %c0_124 = arith.constant 0 : index
    %94 = vector.load %arg8[%c0_123, %c0_124] : memref<64x128xf32, #tpu.memory_space<vmem>>, vector<64x128xf32>
    tpu.vector_store %arg8[%c0_123, %c0_124], %93 {strides = array<i32>} : memref<64x128xf32, #tpu.memory_space<vmem>>, vector<64x128xf32>,
    %c0_125 = arith.constant 0 : index
    %c0_126 = arith.constant 0 : index
    %95 = vector.load %arg8[%c0_125, %c0_126] : memref<64x128xf32, #tpu.memory_space<vmem>>, vector<64x128xf32>
    %c0_127 = arith.constant 0 : index
    %c0_128 = arith.constant 0 : index
    %c0_129 = arith.constant 0 : index
    %c0_130 = arith.constant 0 : index
    %96 = vector.load %arg6[%c0_127, %c0_128, %c0_129, %c0_130] : memref<1x1x64x128xf32, #tpu.memory_space<vmem>>, vector<1x1x64x128xf32>
    %97 = vector.shape_cast %96 : vector<1x1x64x128xf32> to vector<64x128xf32>
    %98 = vector.shape_cast %95 : vector<64x128xf32> to vector<1x1x64x128xf32>
    tpu.vector_store %arg6[%c0_127, %c0_128, %c0_129, %c0_130], %98 {strides = array<i32>} : memref<1x1x64x128xf32, #tpu.memory_space<vmem>>, vector<1x1x64x128xf32>,
    %cst_131 = arith.constant dense<0.000000e+00> : vector<128xf32>
    %99 = vector.multi_reduction <add>, %95, %cst_131 [0] : vector<64x128xf32> to vector<128xf32>
    %100 = vector.shape_cast %99 : vector<128xf32> to vector<1x128xf32>
    %101 = arith.mulf %95, %95 : vector<64x128xf32>
    %cst_132 = arith.constant dense<0.000000e+00> : vector<128xf32>
    %102 = vector.multi_reduction <add>, %101, %cst_132 [0] : vector<64x128xf32> to vector<128xf32>
    %103 = vector.shape_cast %102 : vector<128xf32> to vector<1x128xf32>
    %104 = tpu.concatenate %100, %103 in 0 : vector<1x128xf32>, vector<1x128xf32> -> vector<2x128xf32>
    %c0_133 = arith.constant 0 : index
    %c0_134 = arith.constant 0 : index
    %c0_135 = arith.constant 0 : index
    %c0_136 = arith.constant 0 : index
    %105 = vector.load %arg7[%c0_133, %c0_134, %c0_135, %c0_136] : memref<1x1x2x128xf32, #tpu.memory_space<vmem>>, vector<1x1x2x128xf32>
    %106 = vector.shape_cast %105 : vector<1x1x2x128xf32> to vector<2x128xf32>
    %107 = vector.shape_cast %104 : vector<2x128xf32> to vector<1x1x2x128xf32>
    tpu.vector_store %arg7[%c0_133, %c0_134, %c0_135, %c0_136], %107 {strides = array<i32>} : memref<1x1x2x128xf32, #tpu.memory_space<vmem>>, vector<1x1x2x128xf32>,
    return
  }
  func.func @transform_0(%arg0: i32, %arg1: i32) -> (i32, i32, i32, i32, i32) {
    %c0_i32 = arith.constant 0 : i32
    %c0_i32_0 = arith.constant 0 : i32
    %c0_i32_1 = arith.constant 0 : i32
    %c0_i32_2 = arith.constant 0 : i32
    return %arg0, %arg1, %c0_i32, %c0_i32_0, %c0_i32_1 : i32, i32, i32, i32, i32
  }
  func.func @transform_1(%arg0: i32, %arg1: i32) -> (i32, i32, i32, i32, i32) {
    %c1_i32 = arith.constant 1 : i32
    %0 = arith.addi %arg1, %c1_i32 : i32
    %c0_i32 = arith.constant 0 : i32
    %c0_i32_0 = arith.constant 0 : i32
    %c0_i32_1 = arith.constant 0 : i32
    %c0_i32_2 = arith.constant 0 : i32
    return %arg0, %0, %c0_i32, %c0_i32_0, %c0_i32_1 : i32, i32, i32, i32, i32
  }
  func.func @transform_2(%arg0: i32, %arg1: i32) -> (i32, i32, i32, i32, i32) {
    %c2_i32 = arith.constant 2 : i32
    %0 = arith.addi %arg1, %c2_i32 : i32
    %c0_i32 = arith.constant 0 : i32
    %c0_i32_0 = arith.constant 0 : i32
    %c0_i32_1 = arith.constant 0 : i32
    %c0_i32_2 = arith.constant 0 : i32
    return %arg0, %0, %c0_i32, %c0_i32_0, %c0_i32_1 : i32, i32, i32, i32, i32
  }
  func.func @transform_3(%arg0: i32, %arg1: i32) -> (i32, i32, i32, i32) {
    %c0_i32 = arith.constant 0 : i32
    %c0_i32_0 = arith.constant 0 : i32
    %c0_i32_1 = arith.constant 0 : i32
    %c0_i32_2 = arith.constant 0 : i32
    %c0_i32_3 = arith.constant 0 : i32
    return %c0_i32, %c0_i32_0, %c0_i32_1, %c0_i32_2 : i32, i32, i32, i32
  }
  func.func @transform_4(%arg0: i32, %arg1: i32) -> (i32, i32, i32, i32) {
    %c0_i32 = arith.constant 0 : i32
    %c0_i32_0 = arith.constant 0 : i32
    %c0_i32_1 = arith.constant 0 : i32
    return %arg0, %arg1, %c0_i32, %c0_i32_0 : i32, i32, i32, i32
  }
  func.func @transform_5(%arg0: i32, %arg1: i32) -> (i32, i32, i32, i32) {
    %c0_i32 = arith.constant 0 : i32
    %c0_i32_0 = arith.constant 0 : i32
    %c0_i32_1 = arith.constant 0 : i32
    return %arg0, %arg1, %c0_i32, %c0_i32_0 : i32, i32, i32, i32
  }
}

module attributes {stable_mosaic.version = 11 : i64} {
  func.func @_bn_res_act_kernel(%arg0: i32, %arg1: i32, %arg2: memref<1x1x64x128xf32, #tpu.memory_space<vmem>>, %arg3: memref<1x128xf32, #tpu.memory_space<vmem>>, %arg4: memref<1x128xf32, #tpu.memory_space<vmem>>, %arg5: memref<1x1x64x128xf32, #tpu.memory_space<vmem>>, %arg6: memref<1x1x64x128xf32, #tpu.memory_space<vmem>>) attributes {dimension_semantics = [#tpu.dimension_semantics<parallel>, #tpu.dimension_semantics<parallel>], iteration_bounds = array<i64: 2, 4>, scalar_prefetch = 0 : i64, scratch_operands = 0 : i64, tpu.core_type = #tpu.core_type<tc>, window_params = [{transform_indices = @transform_0, window_bounds = array<i64: 1, 1, 64, 128>}, {pipeline_mode = #tpu.pipeline_mode<synchronous>, transform_indices = @transform_1, window_bounds = array<i64: 1, 128>}, {pipeline_mode = #tpu.pipeline_mode<synchronous>, transform_indices = @transform_2, window_bounds = array<i64: 1, 128>}, {transform_indices = @transform_3, window_bounds = array<i64: 1, 1, 64, 128>}, {transform_indices = @transform_4, window_bounds = array<i64: 1, 1, 64, 128>}]} {
    %c0 = arith.constant 0 : index
    %c0_0 = arith.constant 0 : index
    %c0_1 = arith.constant 0 : index
    %c0_2 = arith.constant 0 : index
    %0 = vector.load %arg2[%c0, %c0_0, %c0_1, %c0_2] : memref<1x1x64x128xf32, #tpu.memory_space<vmem>>, vector<1x1x64x128xf32>
    %1 = vector.shape_cast %0 : vector<1x1x64x128xf32> to vector<64x128xf32>
    %c0_3 = arith.constant 0 : index
    %c0_4 = arith.constant 0 : index
    %2 = vector.load %arg3[%c0_3, %c0_4] : memref<1x128xf32, #tpu.memory_space<vmem>>, vector<1x128xf32>
    %3 = vector.broadcast %2 : vector<1x128xf32> to vector<64x128xf32>
    %4 = arith.mulf %1, %3 : vector<64x128xf32>
    %c0_5 = arith.constant 0 : index
    %c0_6 = arith.constant 0 : index
    %5 = vector.load %arg4[%c0_5, %c0_6] : memref<1x128xf32, #tpu.memory_space<vmem>>, vector<1x128xf32>
    %6 = vector.broadcast %5 : vector<1x128xf32> to vector<64x128xf32>
    %7 = arith.addf %4, %6 : vector<64x128xf32>
    %c0_7 = arith.constant 0 : index
    %c0_8 = arith.constant 0 : index
    %c0_9 = arith.constant 0 : index
    %c0_10 = arith.constant 0 : index
    %8 = vector.load %arg5[%c0_7, %c0_8, %c0_9, %c0_10] : memref<1x1x64x128xf32, #tpu.memory_space<vmem>>, vector<1x1x64x128xf32>
    %9 = vector.shape_cast %8 : vector<1x1x64x128xf32> to vector<64x128xf32>
    %10 = arith.addf %7, %9 : vector<64x128xf32>
    %cst = arith.constant 0.000000e+00 : f32
    %11 = vector.broadcast %cst : f32 to vector<64x128xf32>
    %12 = arith.maximumf %10, %11 : vector<64x128xf32>
    %c0_11 = arith.constant 0 : index
    %c0_12 = arith.constant 0 : index
    %c0_13 = arith.constant 0 : index
    %c0_14 = arith.constant 0 : index
    %13 = vector.load %arg6[%c0_11, %c0_12, %c0_13, %c0_14] : memref<1x1x64x128xf32, #tpu.memory_space<vmem>>, vector<1x1x64x128xf32>
    %14 = vector.shape_cast %13 : vector<1x1x64x128xf32> to vector<64x128xf32>
    %15 = vector.shape_cast %12 : vector<64x128xf32> to vector<1x1x64x128xf32>
    tpu.vector_store %arg6[%c0_11, %c0_12, %c0_13, %c0_14], %15 {strides = array<i32>} : memref<1x1x64x128xf32, #tpu.memory_space<vmem>>, vector<1x1x64x128xf32>,
    return
  }
  func.func @transform_0(%arg0: i32, %arg1: i32) -> (i32, i32, i32, i32) {
    %c0_i32 = arith.constant 0 : i32
    %c0_i32_0 = arith.constant 0 : i32
    %c0_i32_1 = arith.constant 0 : i32
    return %arg0, %arg1, %c0_i32, %c0_i32_0 : i32, i32, i32, i32
  }
  func.func @transform_1(%arg0: i32, %arg1: i32) -> (i32, i32) {
    %c0_i32 = arith.constant 0 : i32
    %c0_i32_0 = arith.constant 0 : i32
    %c0_i32_1 = arith.constant 0 : i32
    return %c0_i32, %c0_i32_0 : i32, i32
  }
  func.func @transform_2(%arg0: i32, %arg1: i32) -> (i32, i32) {
    %c0_i32 = arith.constant 0 : i32
    %c0_i32_0 = arith.constant 0 : i32
    %c0_i32_1 = arith.constant 0 : i32
    return %c0_i32, %c0_i32_0 : i32, i32
  }
  func.func @transform_3(%arg0: i32, %arg1: i32) -> (i32, i32, i32, i32) {
    %c0_i32 = arith.constant 0 : i32
    %c0_i32_0 = arith.constant 0 : i32
    %c0_i32_1 = arith.constant 0 : i32
    return %arg0, %arg1, %c0_i32, %c0_i32_0 : i32, i32, i32, i32
  }
  func.func @transform_4(%arg0: i32, %arg1: i32) -> (i32, i32, i32, i32) {
    %c0_i32 = arith.constant 0 : i32
    %c0_i32_0 = arith.constant 0 : i32
    %c0_i32_1 = arith.constant 0 : i32
    return %arg0, %arg1, %c0_i32, %c0_i32_0 : i32, i32, i32, i32
  }
}

</mosaic_0001>

<llo_original>
// kernel: basic_block_forward.5
$region0: #{basic_block_forward.5}
  #allocation0 [shape = 'u32[]', space=smem, size = 0x4, offset = 0x4, fixed_abs, tag = 'smem constant byte address 0x4 - core index']
  #allocation1 [shape = 'u32[144,128]{1,0:T(1,128)}', space=vmem, size = 0x12000, scoped, tag = 'internal scratch']
  %s0 = inlined_call_operand.vmem [shape: f32[2,4,64,128], index: 0, kind: input, shape index: {}]
  %s1 = inlined_call_operand.vmem [shape: f32[1,128], index: 1, kind: input, shape index: {}]
  %s2 = inlined_call_operand.vmem [shape: f32[1,128], index: 2, kind: input, shape index: {}]
  %s3 = inlined_call_operand.vmem [shape: bf16[2,4,64,128], index: 3, kind: output, shape index: {}]
  %s4 = sld [smem:[#allocation0]]
  $region45: #{basic_block_forward.5} parent=0
    _
  %s6 = ssub.s32 1, %s4
  %s7 = scalar_select 0, %s6, %s4
  loop: start=0, step=1, limit=10
  $region2: #{basic_block_forward.5} parent=0 // loop_pre_header
    _
  $region3: #{basic_block_forward.5} parent=0 // loop_header
    %s9 = sphi 0, %s13
    %p10 = scmp.ge.s32.totalorder %s9, 10
    %s16 = sphi 0, %s28
    %s17 = sphi 0, %s24
    %s18 = sphi 0, %s16
    %s19 = sphi 0, %s17
    %s20 = sphi 0, %s18
    %s21 = sphi 0, %s19
    %s33 = sphi 0, %s35
    %s36 = sphi 0, %s33
    %s37 = sphi 0, %s36
    %s53 = sphi 0, %s37
    %s57 = sphi 0, %s57
    %s59 = sphi 0, %s57
    %s60 = sphi 0, %s59
    %s74 = sphi 0, %s60
    %s78 = sphi 0, %s78
    %s80 = sphi 0, %s78
    %s81 = sphi 0, %s80
    %s95 = sphi 0, %s81
    %s103 = sphi 0, %s105
    %s106 = sphi 0, %s103
    %s107 = sphi 0, %s106
    %s123 = sphi 0, %s107
  $region4: #{basic_block_forward.5} parent=0 // loop_header_branch
    %12 = sbr.rel (%p10) target = $region8
  $region5: #{basic_block_forward.5} parent=0 // loop_body
    %s14 = ssub.s32 %s9, 1
    %s15 = ssub.s32 %s9, 2
    %s22 = sadd.s32 1, %s17
    %p23 = scmp.ge.s32.totalorder %s22, 4
    %s24 = scalar_select %p23, 0, %s22
    %s25 = sadd.s32 1, %s16
    %s26 = scalar_select %p23, %s25, %s16
    %p27 = scmp.ge.s32.totalorder %s26, 2
    %s28 = scalar_select %p27, 0, %s26
    %s29 = ssub.s32 %s16, %s28
    %s30 = ssub.s32 %s17, %s24
    %s31 = sor.u32 %s29, %s30
    %p32 = scmp.eq.s32.totalorder %s31, 0
    %s34 = sadd.s32 %s33, 1
    %s35 = scalar_select %p32, %s33, %s34
    %p38 = pneg %p32
    %p39 = scmp.eq.s32.totalorder %s9, 7
    %p40 = por %p38, %p39
    %p41 = scmp.ne.s32.totalorder %s33, %s36
    %p42 = scmp.eq.s32.totalorder %s9, 0
    %p43 = por %p41, %p42
    %p44 = scmp.ne.s32.totalorder %s33, %s36
    %p45 = scmp.eq.s32.totalorder %s14, 7
    %p46 = por %p44, %p45
    %p47 = scmp.ne.s32.totalorder %s36, %s37
    %p48 = scmp.eq.s32.totalorder %s14, 0
    %p49 = por %p47, %p48
    %p50 = scmp.ne.s32.totalorder %s36, %s37
    %p51 = scmp.eq.s32.totalorder %s15, 7
    %p52 = por %p50, %p51
    %p54 = scmp.ne.s32.totalorder %s37, %s53
    %p55 = scmp.eq.s32.totalorder %s15, 0
    %p56 = por %p54, %p55
    %s58 = sadd.s32 %s57, 1
    %p61 = scmp.eq.s32.totalorder %s9, 7
    %p62 = scmp.ne.s32.totalorder %s57, %s59
    %p63 = scmp.eq.s32.totalorder %s9, 0
    %p64 = por %p62, %p63
    %p65 = scmp.ne.s32.totalorder %s57, %s59
    %p66 = scmp.eq.s32.totalorder %s14, 7
    %p67 = por %p65, %p66
    %p68 = scmp.ne.s32.totalorder %s59, %s60
    %p69 = scmp.eq.s32.totalorder %s14, 0
    %p70 = por %p68, %p69
    %p71 = scmp.ne.s32.totalorder %s59, %s60
    %p72 = scmp.eq.s32.totalorder %s15, 7
    %p73 = por %p71, %p72
    %p75 = scmp.ne.s32.totalorder %s60, %s74
    %p76 = scmp.eq.s32.totalorder %s15, 0
    %p77 = por %p75, %p76
    %s79 = sadd.s32 %s78, 1
    %p82 = scmp.eq.s32.totalorder %s9, 7
    %p83 = scmp.ne.s32.totalorder %s78, %s80
    %p84 = scmp.eq.s32.totalorder %s9, 0
    %p85 = por %p83, %p84
    %p86 = scmp.ne.s32.totalorder %s78, %s80
    %p87 = scmp.eq.s32.totalorder %s14, 7
    %p88 = por %p86, %p87
    %p89 = scmp.ne.s32.totalorder %s80, %s81
    %p90 = scmp.eq.s32.totalorder %s14, 0
    %p91 = por %p89, %p90
    %p92 = scmp.ne.s32.totalorder %s80, %s81
    %p93 = scmp.eq.s32.totalorder %s15, 7
    %p94 = por %p92, %p93
    %p96 = scmp.ne.s32.totalorder %s81, %s95
    %p97 = scmp.eq.s32.totalorder %s15, 0
    %p98 = por %p96, %p97
    %s99 = ssub.s32 %s16, %s28
    %s100 = ssub.s32 %s17, %s24
    %s101 = sor.u32 %s99, %s100
    %p102 = scmp.eq.s32.totalorder %s101, 0
    %s104 = sadd.s32 %s103, 1
    %s105 = scalar_select %p102, %s103, %s104
    %p108 = pneg %p102
    %p109 = scmp.eq.s32.totalorder %s9, 7
    %p110 = por %p108, %p109
    %p111 = scmp.ne.s32.totalorder %s103, %s106
    %p112 = scmp.eq.s32.totalorder %s9, 0
    %p113 = por %p111, %p112
    %p114 = scmp.ne.s32.totalorder %s103, %s106
    %p115 = scmp.eq.s32.totalorder %s14, 7
    %p116 = por %p114, %p115
    %p117 = scmp.ne.s32.totalorder %s106, %s107
    %p118 = scmp.eq.s32.totalorder %s14, 0
    %p119 = por %p117, %p118
    %p120 = scmp.ne.s32.totalorder %s106, %s107
    %p121 = scmp.eq.s32.totalorder %s15, 7
    %p122 = por %p120, %p121
    %p124 = scmp.ne.s32.totalorder %s107, %s123
    %p125 = scmp.eq.s32.totalorder %s15, 0
    %p126 = por %p124, %p125
    %p127 = scmp.le.s32.totalorder 1, %s9
    %p128 = scmp.lt.s32.totalorder %s9, 9
    %p129 = pnand %p127, %p128
    %p130 = pneg %p129
    // Predicated region
    $region9: #{basic_block_forward.5} parent=5 // pred_check
      _
    $region10: #{basic_block_forward.5} parent=5 // pred_check_branch
      %132 = sbr.rel (%p129) target = $region12
    $region11: #{basic_block_forward.5} parent=5 // pred_region
      %s133 = ssub.s32 %s9, 1
      // Predicated region
      $region13: #{basic_block_forward.5} parent=11 // pred_check
        %p134 = pneg %p70
      $region14: #{basic_block_forward.5} parent=11 // pred_check_branch
        %136 = sbr.rel (%p134) target = $region16
      $region15: #{basic_block_forward.5} parent=11 // pred_region
        _
      $region16: #{basic_block_forward.5} parent=11 // pred_fallthru
        _
      // Predicated region
      $region17: #{basic_block_forward.5} parent=11 // pred_check
        %p137 = pneg %p91
      $region18: #{basic_block_forward.5} parent=11 // pred_check_branch
        %139 = sbr.rel (%p137) target = $region20
      $region19: #{basic_block_forward.5} parent=11 // pred_region
        _
      $region20: #{basic_block_forward.5} parent=11 // pred_fallthru
        _
    $region12: #{basic_block_forward.5} parent=5 // pred_fallthru
      _
    %p140 = scmp.lt.s32.totalorder %s9, 8
    // Predicated region
    $region21: #{basic_block_forward.5} parent=5 // pred_check
      %p141 = pneg %p140
    $region22: #{basic_block_forward.5} parent=5 // pred_check_branch
      %143 = sbr.rel (%p141) target = $region24
    $region23: #{basic_block_forward.5} parent=5 // pred_region
      // Predicated region
      $region25: #{basic_block_forward.5} parent=23 // pred_check
        %p144 = pneg %p43
      $region26: #{basic_block_forward.5} parent=23 // pred_check_branch
        %146 = sbr.rel (%p144) target = $region28
      $region27: #{basic_block_forward.5} parent=23 // pred_region
        %p147 = scmp.lt.s32.totalorder %s16, 1
        %s148 = scalar_select %p147, %s16, 1
        %p149 = scmp.lt.s32.totalorder %s17, 3
        %s150 = scalar_select %p149, %s17, 3
        %s151 = smul.addr %s150, 8
        %s152 = smul.addr %s148, 32
        %s153 = sadd.s32 %s151, %s152
        %s154 = smul.addr %s153, 8
        %s155 = scalar_lea.vmem %s0, %s154
      $region28: #{basic_block_forward.5} parent=23 // pred_fallthru
        _
    $region24: #{basic_block_forward.5} parent=5 // pred_fallthru
      _
    %p156 = scmp.le.s32.totalorder 1, %s9
    %p157 = scmp.lt.s32.totalorder %s9, 9
    %p158 = pnand %p156, %p157
    %p159 = pneg %p158
    // Predicated region
    $region29: #{basic_block_forward.5} parent=5 // pred_check
      _
    $region30: #{basic_block_forward.5} parent=5 // pred_check_branch
      %161 = sbr.rel (%p158) target = $region32
    $region31: #{basic_block_forward.5} parent=5 // pred_region
      %s162 = ssub.s32 %s9, 1
      %p163 = scmp.lt.s32.totalorder %s18, 1
      %s164 = scalar_select %p163, %s18, 1
      %p165 = scmp.lt.s32.totalorder %s19, 3
      %s166 = scalar_select %p165, %s19, 3
      %s167 = smul.addr %s166, 8
      %s168 = smul.addr %s164, 32
      %s169 = sadd.s32 %s167, %s168
      %s170 = smul.addr %s169, 8
      %s171 = scalar_lea.vmem %s0, %s170
      %p172 = pneg %p49
      %p173 = pneg %p46
      %p174 = pneg %p70
      %p175 = pneg %p67
      %p176 = pneg %p91
      %p177 = pneg %p88
      %p178 = pneg %p119
      %p179 = pneg %p116
      %p180 = scmp.lt.s32.totalorder %s18, 1
      %s181 = scalar_select %p180, %s18, 1
      %p182 = scmp.lt.s32.totalorder %s19, 3
      %s183 = scalar_select %p182, %s19, 3
      %s184 = smul.addr %s183, 8
      %s185 = smul.addr %s181, 32
      %s186 = sadd.s32 %s184, %s185
      %s187 = smul.addr %s186, 4
      %s188 = scalar_lea.vmem %s3, %s187
      %p189 = scmp.lt.s32.totalorder %s18, 1
      %s190 = scalar_select %p189, %s18, 1
      %p191 = scmp.lt.s32.totalorder %s19, 3
      %s192 = scalar_select %p191, %s19, 3
      %s193 = smul.addr %s192, 8
      %s194 = smul.addr %s190, 32
      %s195 = sadd.s32 %s193, %s194
      %s196 = smul.addr %s195, 8
      %s197 = scalar_lea.vmem %s0, %s196
      %p198 = scmp.lt.s32.totalorder %s18, 1
      %s199 = scalar_select %p198, %s18, 1
      %p200 = scmp.lt.s32.totalorder %s19, 3
      %s201 = scalar_select %p200, %s19, 3
      %s202 = smul.addr %s201, 8
      %s203 = smul.addr %s199, 32
      %s204 = sadd.s32 %s202, %s203
      %s205 = smul.addr %s204, 4
      %s206 = scalar_lea.vmem %s3, %s205
      %v207 = vld [vmem:[%s197] sm:$0xff]
      %v208 = vld [vmem:[%s197 + $0x8] sm:$0xff]
      %v209 = vld [vmem:[%s197 + $0x10] sm:$0xff]
      %v210 = vld [vmem:[%s197 + $0x18] sm:$0xff]
      %v211 = vld [vmem:[%s197 + $0x20] sm:$0xff]
      %v212 = vld [vmem:[%s197 + $0x28] sm:$0xff]
      %v213 = vld [vmem:[%s197 + $0x30] sm:$0xff]
      %v214 = vld [vmem:[%s197 + $0x38] sm:$0xff]
      %v215 = vld [vmem:[%s1] sm:$0x1]
      %v217 = vlaneseq
      %v218 = vshrl.u32 %v217, 7
      %v219 = vsub.s32 0, %v218
      %v220 = vrot.slane %v215, %v219
      %v222 = vmul.f32 %v207, %v220
      %v223 = vmul.f32 %v208, %v220
      %v224 = vmul.f32 %v209, %v220
      %v225 = vmul.f32 %v210, %v220
      %v226 = vmul.f32 %v211, %v220
      %v227 = vmul.f32 %v212, %v220
      %v228 = vmul.f32 %v213, %v220
      %v229 = vmul.f32 %v214, %v220
      %v230 = vld [vmem:[%s2] sm:$0x1]
      %v232 = vlaneseq
      %v233 = vshrl.u32 %v232, 7
      %v234 = vsub.s32 0, %v233
      %v235 = vrot.slane %v230, %v234
      %v237 = vadd.f32 %v222, %v235
      %v238 = vadd.f32 %v223, %v235
      %v239 = vadd.f32 %v224, %v235
      %v240 = vadd.f32 %v225, %v235
      %v241 = vadd.f32 %v226, %v235
      %v242 = vadd.f32 %v227, %v235
      %v243 = vadd.f32 %v228, %v235
      %v244 = vadd.f32 %v229, %v235
      %v245 = vmax.f32 %v237, 0.0
      %v246 = vmax.f32 %v238, 0.0
      %v247 = vmax.f32 %v239, 0.0
      %v248 = vmax.f32 %v240, 0.0
      %v249 = vmax.f32 %v241, 0.0
      %v250 = vmax.f32 %v242, 0.0
      %v251 = vmax.f32 %v243, 0.0
      %v252 = vmax.f32 %v244, 0.0
      %v253 = vpack.c.bf16 %v246, %v245
      %v254 = vpack.c.bf16 %v248, %v247
      %v255 = vpack.c.bf16 %v250, %v249
      %v256 = vpack.c.bf16 %v252, %v251
      %v261 = vunpack.c.l.b16 %v253
      %v262 = vunpack.c.h.b16 %v253
      %v263 = vunpack.c.l.b16 %v254
      %v264 = vunpack.c.h.b16 %v254
      %v265 = vunpack.c.l.b16 %v255
      %v266 = vunpack.c.h.b16 %v255
      %v267 = vunpack.c.l.b16 %v256
      %v268 = vunpack.c.h.b16 %v256
      %v269 = vpack.c.b16 %v261, %v261
      %v270 = vpack.c.b16 %v262, %v262
      %v271 = vpack.c.b16 %v263, %v263
      %v272 = vpack.c.b16 %v264, %v264
      %v273 = vpack.c.b16 %v265, %v265
      %v274 = vpack.c.b16 %v266, %v266
      %v275 = vpack.c.b16 %v267, %v267
      %v276 = vpack.c.b16 %v268, %v268
      %285 = vst [vmem:[%s206] sm:$0xf] %v269
      %286 = vst [vmem:[%s206 + $0x4] sm:$0xf] %v270
      %287 = vst [vmem:[%s206 + $0x8] sm:$0xf] %v271
      %288 = vst [vmem:[%s206 + $0xc] sm:$0xf] %v272
      %289 = vst [vmem:[%s206 + $0x10] sm:$0xf] %v273
      %290 = vst [vmem:[%s206 + $0x14] sm:$0xf] %v274
      %291 = vst [vmem:[%s206 + $0x18] sm:$0xf] %v275
      %292 = vst [vmem:[%s206 + $0x1c] sm:$0xf] %v276
      %p293 = scmp.lt.s32.totalorder %s18, 1
      %s294 = scalar_select %p293, %s18, 1
      %p295 = scmp.lt.s32.totalorder %s19, 3
      %s296 = scalar_select %p295, %s19, 3
      %s297 = smul.addr %s296, 8
      %s298 = smul.addr %s294, 32
      %s299 = sadd.s32 %s297, %s298
      %s300 = smul.addr %s299, 4
      %s301 = scalar_lea.vmem %s3, %s300
      // Predicated region
      $region33: #{basic_block_forward.5} parent=31 // pred_check
        %p302 = pneg %p116
      $region34: #{basic_block_forward.5} parent=31 // pred_check_branch
        %304 = sbr.rel (%p302) target = $region36
      $region35: #{basic_block_forward.5} parent=31 // pred_region
        _
      $region36: #{basic_block_forward.5} parent=31 // pred_fallthru
        _
    $region32: #{basic_block_forward.5} parent=5 // pred_fallthru
      _
    %p305 = scmp.le.s32.totalorder 2, %s9
    // Predicated region
    $region37: #{basic_block_forward.5} parent=5 // pred_check
      %p306 = pneg %p305
    $region38: #{basic_block_forward.5} parent=5 // pred_check_branch
      %308 = sbr.rel (%p306) target = $region40
    $region39: #{basic_block_forward.5} parent=5 // pred_region
      %s309 = ssub.s32 %s9, 2
      // Predicated region
      $region41: #{basic_block_forward.5} parent=39 // pred_check
        %p310 = pneg %p122
      $region42: #{basic_block_forward.5} parent=39 // pred_check_branch
        %312 = sbr.rel (%p310) target = $region44
      $region43: #{basic_block_forward.5} parent=39 // pred_region
        %p313 = scmp.lt.s32.totalorder %s20, 1
        %s314 = scalar_select %p313, %s20, 1
        %p315 = scmp.lt.s32.totalorder %s21, 3
        %s316 = scalar_select %p315, %s21, 3
        %s317 = smul.addr %s316, 8
        %s318 = smul.addr %s314, 32
        %s319 = sadd.s32 %s317, %s318
        %s320 = smul.addr %s319, 4
        %s321 = scalar_lea.vmem %s3, %s320
      $region44: #{basic_block_forward.5} parent=39 // pred_fallthru
        _
    $region40: #{basic_block_forward.5} parent=5 // pred_fallthru
      _
  $region6: #{basic_block_forward.5} parent=0 // loop_footer
    %s13 = sadd.s32 1, %s9
  $region7: #{basic_block_forward.5} parent=0 // loop_footer_branch
    %8 = sbr.rel target = $region3
  $region8: #{basic_block_forward.5} parent=0 // loop_exit
    _

// kernel: basic_block_forward.7
$region0: #{basic_block_forward.7}
  #allocation0 [shape = 'u32[]', space=smem, size = 0x4, offset = 0x4, fixed_abs, tag = 'smem constant byte address 0x4 - core index']
  #allocation1 [shape = 'u32[144,128]{1,0:T(1,128)}', space=vmem, size = 0x12000, scoped, tag = 'internal scratch']
  %s0 = inlined_call_operand.vmem [shape: f32[2,4,64,128], index: 0, kind: input, shape index: {}]
  %s1 = inlined_call_operand.vmem [shape: f32[1,128], index: 1, kind: input, shape index: {}]
  %s2 = inlined_call_operand.vmem [shape: f32[1,128], index: 2, kind: input, shape index: {}]
  %s3 = inlined_call_operand.vmem [shape: f32[2,4,64,128], index: 3, kind: input, shape index: {}]
  %s4 = inlined_call_operand.vmem [shape: f32[2,4,64,128], index: 4, kind: output, shape index: {}]
  %s5 = sld [smem:[#allocation0]]
  $region49: #{basic_block_forward.7} parent=0
    _
  %s7 = ssub.s32 1, %s5
  %s8 = scalar_select 0, %s7, %s5
  loop: start=0, step=1, limit=10
  $region2: #{basic_block_forward.7} parent=0 // loop_pre_header
    _
  $region3: #{basic_block_forward.7} parent=0 // loop_header
    %s10 = sphi 0, %s14
    %p11 = scmp.ge.s32.totalorder %s10, 10
    %s17 = sphi 0, %s29
    %s18 = sphi 0, %s25
    %s19 = sphi 0, %s17
    %s20 = sphi 0, %s18
    %s21 = sphi 0, %s19
    %s22 = sphi 0, %s20
    %s34 = sphi 0, %s36
    %s37 = sphi 0, %s34
    %s38 = sphi 0, %s37
    %s54 = sphi 0, %s38
    %s58 = sphi 0, %s58
    %s60 = sphi 0, %s58
    %s61 = sphi 0, %s60
    %s75 = sphi 0, %s61
    %s79 = sphi 0, %s79
    %s81 = sphi 0, %s79
    %s82 = sphi 0, %s81
    %s96 = sphi 0, %s82
    %s104 = sphi 0, %s106
    %s107 = sphi 0, %s104
    %s108 = sphi 0, %s107
    %s124 = sphi 0, %s108
    %s132 = sphi 0, %s134
    %s135 = sphi 0, %s132
    %s136 = sphi 0, %s135
    %s152 = sphi 0, %s136
  $region4: #{basic_block_forward.7} parent=0 // loop_header_branch
    %13 = sbr.rel (%p11) target = $region8
  $region5: #{basic_block_forward.7} parent=0 // loop_body
    %s15 = ssub.s32 %s10, 1
    %s16 = ssub.s32 %s10, 2
    %s23 = sadd.s32 1, %s18
    %p24 = scmp.ge.s32.totalorder %s23, 4
    %s25 = scalar_select %p24, 0, %s23
    %s26 = sadd.s32 1, %s17
    %s27 = scalar_select %p24, %s26, %s17
    %p28 = scmp.ge.s32.totalorder %s27, 2
    %s29 = scalar_select %p28, 0, %s27
    %s30 = ssub.s32 %s17, %s29
    %s31 = ssub.s32 %s18, %s25
    %s32 = sor.u32 %s30, %s31
    %p33 = scmp.eq.s32.totalorder %s32, 0
    %s35 = sadd.s32 %s34, 1
    %s36 = scalar_select %p33, %s34, %s35
    %p39 = pneg %p33
    %p40 = scmp.eq.s32.totalorder %s10, 7
    %p41 = por %p39, %p40
    %p42 = scmp.ne.s32.totalorder %s34, %s37
    %p43 = scmp.eq.s32.totalorder %s10, 0
    %p44 = por %p42, %p43
    %p45 = scmp.ne.s32.totalorder %s34, %s37
    %p46 = scmp.eq.s32.totalorder %s15, 7
    %p47 = por %p45, %p46
    %p48 = scmp.ne.s32.totalorder %s37, %s38
    %p49 = scmp.eq.s32.totalorder %s15, 0
    %p50 = por %p48, %p49
    %p51 = scmp.ne.s32.totalorder %s37, %s38
    %p52 = scmp.eq.s32.totalorder %s16, 7
    %p53 = por %p51, %p52
    %p55 = scmp.ne.s32.totalorder %s38, %s54
    %p56 = scmp.eq.s32.totalorder %s16, 0
    %p57 = por %p55, %p56
    %s59 = sadd.s32 %s58, 1
    %p62 = scmp.eq.s32.totalorder %s10, 7
    %p63 = scmp.ne.s32.totalorder %s58, %s60
    %p64 = scmp.eq.s32.totalorder %s10, 0
    %p65 = por %p63, %p64
    %p66 = scmp.ne.s32.totalorder %s58, %s60
    %p67 = scmp.eq.s32.totalorder %s15, 7
    %p68 = por %p66, %p67
    %p69 = scmp.ne.s32.totalorder %s60, %s61
    %p70 = scmp.eq.s32.totalorder %s15, 0
    %p71 = por %p69, %p70
    %p72 = scmp.ne.s32.totalorder %s60, %s61
    %p73 = scmp.eq.s32.totalorder %s16, 7
    %p74 = por %p72, %p73
    %p76 = scmp.ne.s32.totalorder %s61, %s75
    %p77 = scmp.eq.s32.totalorder %s16, 0
    %p78 = por %p76, %p77
    %s80 = sadd.s32 %s79, 1
    %p83 = scmp.eq.s32.totalorder %s10, 7
    %p84 = scmp.ne.s32.totalorder %s79, %s81
    %p85 = scmp.eq.s32.totalorder %s10, 0
    %p86 = por %p84, %p85
    %p87 = scmp.ne.s32.totalorder %s79, %s81
    %p88 = scmp.eq.s32.totalorder %s15, 7
    %p89 = por %p87, %p88
    %p90 = scmp.ne.s32.totalorder %s81, %s82
    %p91 = scmp.eq.s32.totalorder %s15, 0
    %p92 = por %p90, %p91
    %p93 = scmp.ne.s32.totalorder %s81, %s82
    %p94 = scmp.eq.s32.totalorder %s16, 7
    %p95 = por %p93, %p94
    %p97 = scmp.ne.s32.totalorder %s82, %s96
    %p98 = scmp.eq.s32.totalorder %s16, 0
    %p99 = por %p97, %p98
    %s100 = ssub.s32 %s17, %s29
    %s101 = ssub.s32 %s18, %s25
    %s102 = sor.u32 %s100, %s101
    %p103 = scmp.eq.s32.totalorder %s102, 0
    %s105 = sadd.s32 %s104, 1
    %s106 = scalar_select %p103, %s104, %s105
    %p109 = pneg %p103
    %p110 = scmp.eq.s32.totalorder %s10, 7
    %p111 = por %p109, %p110
    %p112 = scmp.ne.s32.totalorder %s104, %s107
    %p113 = scmp.eq.s32.totalorder %s10, 0
    %p114 = por %p112, %p113
    %p115 = scmp.ne.s32.totalorder %s104, %s107
    %p116 = scmp.eq.s32.totalorder %s15, 7
    %p117 = por %p115, %p116
    %p118 = scmp.ne.s32.totalorder %s107, %s108
    %p119 = scmp.eq.s32.totalorder %s15, 0
    %p120 = por %p118, %p119
    %p121 = scmp.ne.s32.totalorder %s107, %s108
    %p122 = scmp.eq.s32.totalorder %s16, 7
    %p123 = por %p121, %p122
    %p125 = scmp.ne.s32.totalorder %s108, %s124
    %p126 = scmp.eq.s32.totalorder %s16, 0
    %p127 = por %p125, %p126
    %s128 = ssub.s32 %s17, %s29
    %s129 = ssub.s32 %s18, %s25
    %s130 = sor.u32 %s128, %s129
    %p131 = scmp.eq.s32.totalorder %s130, 0
    %s133 = sadd.s32 %s132, 1
    %s134 = scalar_select %p131, %s132, %s133
    %p137 = pneg %p131
    %p138 = scmp.eq.s32.totalorder %s10, 7
    %p139 = por %p137, %p138
    %p140 = scmp.ne.s32.totalorder %s132, %s135
    %p141 = scmp.eq.s32.totalorder %s10, 0
    %p142 = por %p140, %p141
    %p143 = scmp.ne.s32.totalorder %s132, %s135
    %p144 = scmp.eq.s32.totalorder %s15, 7
    %p145 = por %p143, %p144
    %p146 = scmp.ne.s32.totalorder %s135, %s136
    %p147 = scmp.eq.s32.totalorder %s15, 0
    %p148 = por %p146, %p147
    %p149 = scmp.ne.s32.totalorder %s135, %s136
    %p150 = scmp.eq.s32.totalorder %s16, 7
    %p151 = por %p149, %p150
    %p153 = scmp.ne.s32.totalorder %s136, %s152
    %p154 = scmp.eq.s32.totalorder %s16, 0
    %p155 = por %p153, %p154
    %p156 = scmp.le.s32.totalorder 1, %s10
    %p157 = scmp.lt.s32.totalorder %s10, 9
    %p158 = pnand %p156, %p157
    %p159 = pneg %p158
    // Predicated region
    $region9: #{basic_block_forward.7} parent=5 // pred_check
      _
    $region10: #{basic_block_forward.7} parent=5 // pred_check_branch
      %161 = sbr.rel (%p158) target = $region12
    $region11: #{basic_block_forward.7} parent=5 // pred_region
      %s162 = ssub.s32 %s10, 1
      // Predicated region
      $region13: #{basic_block_forward.7} parent=11 // pred_check
        %p163 = pneg %p71
      $region14: #{basic_block_forward.7} parent=11 // pred_check_branch
        %165 = sbr.rel (%p163) target = $region16
      $region15: #{basic_block_forward.7} parent=11 // pred_region
        _
      $region16: #{basic_block_forward.7} parent=11 // pred_fallthru
        _
      // Predicated region
      $region17: #{basic_block_forward.7} parent=11 // pred_check
        %p166 = pneg %p92
      $region18: #{basic_block_forward.7} parent=11 // pred_check_branch
        %168 = sbr.rel (%p166) target = $region20
      $region19: #{basic_block_forward.7} parent=11 // pred_region
        _
      $region20: #{basic_block_forward.7} parent=11 // pred_fallthru
        _
    $region12: #{basic_block_forward.7} parent=5 // pred_fallthru
      _
    %p169 = scmp.lt.s32.totalorder %s10, 8
    // Predicated region
    $region21: #{basic_block_forward.7} parent=5 // pred_check
      %p170 = pneg %p169
    $region22: #{basic_block_forward.7} parent=5 // pred_check_branch
      %172 = sbr.rel (%p170) target = $region24
    $region23: #{basic_block_forward.7} parent=5 // pred_region
      // Predicated region
      $region25: #{basic_block_forward.7} parent=23 // pred_check
        %p173 = pneg %p44
      $region26: #{basic_block_forward.7} parent=23 // pred_check_branch
        %175 = sbr.rel (%p173) target = $region28
      $region27: #{basic_block_forward.7} parent=23 // pred_region
        %p176 = scmp.lt.s32.totalorder %s17, 1
        %s177 = scalar_select %p176, %s17, 1
        %p178 = scmp.lt.s32.totalorder %s18, 3
        %s179 = scalar_select %p178, %s18, 3
        %s180 = smul.addr %s179, 8
        %s181 = smul.addr %s177, 32
        %s182 = sadd.s32 %s180, %s181
        %s183 = smul.addr %s182, 8
        %s184 = scalar_lea.vmem %s0, %s183
      $region28: #{basic_block_forward.7} parent=23 // pred_fallthru
        _
      // Predicated region
      $region29: #{basic_block_forward.7} parent=23 // pred_check
        %p185 = pneg %p114
      $region30: #{basic_block_forward.7} parent=23 // pred_check_branch
        %187 = sbr.rel (%p185) target = $region32
      $region31: #{basic_block_forward.7} parent=23 // pred_region
        %p188 = scmp.lt.s32.totalorder %s17, 1
        %s189 = scalar_select %p188, %s17, 1
        %p190 = scmp.lt.s32.totalorder %s18, 3
        %s191 = scalar_select %p190, %s18, 3
        %s192 = smul.addr %s191, 8
        %s193 = smul.addr %s189, 32
        %s194 = sadd.s32 %s192, %s193
        %s195 = smul.addr %s194, 8
        %s196 = scalar_lea.vmem %s3, %s195
      $region32: #{basic_block_forward.7} parent=23 // pred_fallthru
        _
    $region24: #{basic_block_forward.7} parent=5 // pred_fallthru
      _
    %p197 = scmp.le.s32.totalorder 1, %s10
    %p198 = scmp.lt.s32.totalorder %s10, 9
    %p199 = pnand %p197, %p198
    %p200 = pneg %p199
    // Predicated region
    $region33: #{basic_block_forward.7} parent=5 // pred_check
      _
    $region34: #{basic_block_forward.7} parent=5 // pred_check_branch
      %202 = sbr.rel (%p199) target = $region36
    $region35: #{basic_block_forward.7} parent=5 // pred_region
      %s203 = ssub.s32 %s10, 1
      %p204 = scmp.lt.s32.totalorder %s19, 1
      %s205 = scalar_select %p204, %s19, 1
      %p206 = scmp.lt.s32.totalorder %s20, 3
      %s207 = scalar_select %p206, %s20, 3
      %s208 = smul.addr %s207, 8
      %s209 = smul.addr %s205, 32
      %s210 = sadd.s32 %s208, %s209
      %s211 = smul.addr %s210, 8
      %s212 = scalar_lea.vmem %s0, %s211
      %p213 = pneg %p50
      %p214 = pneg %p47
      %p215 = pneg %p71
      %p216 = pneg %p68
      %p217 = pneg %p92
      %p218 = pneg %p89
      %p219 = scmp.lt.s32.totalorder %s19, 1
      %s220 = scalar_select %p219, %s19, 1
      %p221 = scmp.lt.s32.totalorder %s20, 3
      %s222 = scalar_select %p221, %s20, 3
      %s223 = smul.addr %s222, 8
      %s224 = smul.addr %s220, 32
      %s225 = sadd.s32 %s223, %s224
      %s226 = smul.addr %s225, 8
      %s227 = scalar_lea.vmem %s3, %s226
      %p228 = pneg %p120
      %p229 = pneg %p117
      %p230 = pneg %p148
      %p231 = pneg %p145
      %p232 = scmp.lt.s32.totalorder %s19, 1
      %s233 = scalar_select %p232, %s19, 1
      %p234 = scmp.lt.s32.totalorder %s20, 3
      %s235 = scalar_select %p234, %s20, 3
      %s236 = smul.addr %s235, 8
      %s237 = smul.addr %s233, 32
      %s238 = sadd.s32 %s236, %s237
      %s239 = smul.addr %s238, 8
      %s240 = scalar_lea.vmem %s4, %s239
      %p241 = scmp.lt.s32.totalorder %s19, 1
      %s242 = scalar_select %p241, %s19, 1
      %p243 = scmp.lt.s32.totalorder %s20, 3
      %s244 = scalar_select %p243, %s20, 3
      %s245 = smul.addr %s244, 8
      %s246 = smul.addr %s242, 32
      %s247 = sadd.s32 %s245, %s246
      %s248 = smul.addr %s247, 8
      %s249 = scalar_lea.vmem %s0, %s248
      %p250 = scmp.lt.s32.totalorder %s19, 1
      %s251 = scalar_select %p250, %s19, 1
      %p252 = scmp.lt.s32.totalorder %s20, 3
      %s253 = scalar_select %p252, %s20, 3
      %s254 = smul.addr %s253, 8
      %s255 = smul.addr %s251, 32
      %s256 = sadd.s32 %s254, %s255
      %s257 = smul.addr %s256, 8
      %s258 = scalar_lea.vmem %s3, %s257
      %p259 = scmp.lt.s32.totalorder %s19, 1
      %s260 = scalar_select %p259, %s19, 1
      %p261 = scmp.lt.s32.totalorder %s20, 3
      %s262 = scalar_select %p261, %s20, 3
      %s263 = smul.addr %s262, 8
      %s264 = smul.addr %s260, 32
      %s265 = sadd.s32 %s263, %s264
      %s266 = smul.addr %s265, 8
      %s267 = scalar_lea.vmem %s4, %s266
      %v268 = vld [vmem:[%s249] sm:$0xff]
      %v269 = vld [vmem:[%s249 + $0x8] sm:$0xff]
      %v270 = vld [vmem:[%s249 + $0x10] sm:$0xff]
      %v271 = vld [vmem:[%s249 + $0x18] sm:$0xff]
      %v272 = vld [vmem:[%s249 + $0x20] sm:$0xff]
      %v273 = vld [vmem:[%s249 + $0x28] sm:$0xff]
      %v274 = vld [vmem:[%s249 + $0x30] sm:$0xff]
      %v275 = vld [vmem:[%s249 + $0x38] sm:$0xff]
      %v276 = vld [vmem:[%s1] sm:$0x1]
      %v278 = vlaneseq
      %v279 = vshrl.u32 %v278, 7
      %v280 = vsub.s32 0, %v279
      %v281 = vrot.slane %v276, %v280
      %v283 = vmul.f32 %v268, %v281
      %v284 = vmul.f32 %v269, %v281
      %v285 = vmul.f32 %v270, %v281
      %v286 = vmul.f32 %v271, %v281
      %v287 = vmul.f32 %v272, %v281
      %v288 = vmul.f32 %v273, %v281
      %v289 = vmul.f32 %v274, %v281
      %v290 = vmul.f32 %v275, %v281
      %v291 = vld [vmem:[%s2] sm:$0x1]
      %v293 = vlaneseq
      %v294 = vshrl.u32 %v293, 7
      %v295 = vsub.s32 0, %v294
      %v296 = vrot.slane %v291, %v295
      %v298 = vadd.f32 %v283, %v296
      %v299 = vadd.f32 %v284, %v296
      %v300 = vadd.f32 %v285, %v296
      %v301 = vadd.f32 %v286, %v296
      %v302 = vadd.f32 %v287, %v296
      %v303 = vadd.f32 %v288, %v296
      %v304 = vadd.f32 %v289, %v296
      %v305 = vadd.f32 %v290, %v296
      %v306 = vld [vmem:[%s258] sm:$0xff]
      %v307 = vld [vmem:[%s258 + $0x8] sm:$0xff]
      %v308 = vld [vmem:[%s258 + $0x10] sm:$0xff]
      %v309 = vld [vmem:[%s258 + $0x18] sm:$0xff]
      %v310 = vld [vmem:[%s258 + $0x20] sm:$0xff]
      %v311 = vld [vmem:[%s258 + $0x28] sm:$0xff]
      %v312 = vld [vmem:[%s258 + $0x30] sm:$0xff]
      %v313 = vld [vmem:[%s258 + $0x38] sm:$0xff]
      %v314 = vadd.f32 %v298, %v306
      %v315 = vadd.f32 %v299, %v307
      %v316 = vadd.f32 %v300, %v308
      %v317 = vadd.f32 %v301, %v309
      %v318 = vadd.f32 %v302, %v310
      %v319 = vadd.f32 %v303, %v311
      %v320 = vadd.f32 %v304, %v312
      %v321 = vadd.f32 %v305, %v313
      %v322 = vmax.f32 %v314, 0.0
      %v323 = vmax.f32 %v315, 0.0
      %v324 = vmax.f32 %v316, 0.0
      %v325 = vmax.f32 %v317, 0.0
      %v326 = vmax.f32 %v318, 0.0
      %v327 = vmax.f32 %v319, 0.0
      %v328 = vmax.f32 %v320, 0.0
      %v329 = vmax.f32 %v321, 0.0
      %330 = vst [vmem:[%s267] sm:$0xff] %v322
      %331 = vst [vmem:[%s267 + $0x8] sm:$0xff] %v323
      %332 = vst [vmem:[%s267 + $0x10] sm:$0xff] %v324
      %333 = vst [vmem:[%s267 + $0x18] sm:$0xff] %v325
      %334 = vst [vmem:[%s267 + $0x20] sm:$0xff] %v326
      %335 = vst [vmem:[%s267 + $0x28] sm:$0xff] %v327
      %336 = vst [vmem:[%s267 + $0x30] sm:$0xff] %v328
      %337 = vst [vmem:[%s267 + $0x38] sm:$0xff] %v329
      %p338 = scmp.lt.s32.totalorder %s19, 1
      %s339 = scalar_select %p338, %s19, 1
      %p340 = scmp.lt.s32.totalorder %s20, 3
      %s341 = scalar_select %p340, %s20, 3
      %s342 = smul.addr %s341, 8
      %s343 = smul.addr %s339, 32
      %s344 = sadd.s32 %s342, %s343
      %s345 = smul.addr %s344, 8
      %s346 = scalar_lea.vmem %s4, %s345
      // Predicated region
      $region37: #{basic_block_forward.7} parent=35 // pred_check
        %p347 = pneg %p145
      $region38: #{basic_block_forward.7} parent=35 // pred_check_branch
        %349 = sbr.rel (%p347) target = $region40
      $region39: #{basic_block_forward.7} parent=35 // pred_region
        _
      $region40: #{basic_block_forward.7} parent=35 // pred_fallthru
        _
    $region36: #{basic_block_forward.7} parent=5 // pred_fallthru
      _
    %p350 = scmp.le.s32.totalorder 2, %s10
    // Predicated region
    $region41: #{basic_block_forward.7} parent=5 // pred_check
      %p351 = pneg %p350
    $region42: #{basic_block_forward.7} parent=5 // pred_check_branch
      %353 = sbr.rel (%p351) target = $region44
    $region43: #{basic_block_forward.7} parent=5 // pred_region
      %s354 = ssub.s32 %s10, 2
      // Predicated region
      $region45: #{basic_block_forward.7} parent=43 // pred_check
        %p355 = pneg %p151
      $region46: #{basic_block_forward.7} parent=43 // pred_check_branch
        %357 = sbr.rel (%p355) target = $region48
      $region47: #{basic_block_forward.7} parent=43 // pred_region
        %p358 = scmp.lt.s32.totalorder %s21, 1
        %s359 = scalar_select %p358, %s21, 1
        %p360 = scmp.lt.s32.totalorder %s22, 3
        %s361 = scalar_select %p360, %s22, 3
        %s362 = smul.addr %s361, 8
        %s363 = smul.addr %s359, 32
        %s364 = sadd.s32 %s362, %s363
        %s365 = smul.addr %s364, 8
        %s366 = scalar_lea.vmem %s4, %s365
      $region48: #{basic_block_forward.7} parent=43 // pred_fallthru
        _
    $region44: #{basic_block_forward.7} parent=5 // pred_fallthru
      _
  $region6: #{basic_block_forward.7} parent=0 // loop_footer
    %s14 = sadd.s32 1, %s10
  $region7: #{basic_block_forward.7} parent=0 // loop_footer_branch
    %9 = sbr.rel target = $region3
  $region8: #{basic_block_forward.7} parent=0 // loop_exit
    _

// kernel: basic_block_forward.4
$region0: #{basic_block_forward.4}
  #allocation0 [shape = 'u32[]', space=smem, size = 0x4, offset = 0x4, fixed_abs, tag = 'smem constant byte address 0x4 - core index']
  #allocation1 [shape = 'u32[144,128]{1,0:T(1,128)}', space=vmem, size = 0x12000, scoped, tag = 'internal scratch']
  #allocation2 [shape = 'f32[64,128]{1,0:T(8,128)}', space=vmem, size = 0x8000, scoped, tag = 'scratch operand']
  %s0 = inlined_call_operand.vmem [shape: bf16[2,6,10,10,128], index: 0, kind: input, shape index: {}, may-alias: {0,1,2}]
  %s1 = inlined_call_operand.vmem [shape: bf16[2,6,10,10,128], index: 1, kind: input, shape index: {}, may-alias: {0,1,2}]
  %s2 = inlined_call_operand.vmem [shape: bf16[2,6,10,10,128], index: 2, kind: input, shape index: {}, may-alias: {0,1,2}]
  %s3 = inlined_call_operand.vmem [shape: bf16[3,3,384,128], index: 3, kind: input, shape index: {}]
  %s4 = inlined_call_operand.vmem [shape: f32[2,4,64,128], index: 4, kind: output, shape index: {0}]
  %s5 = inlined_call_operand.vmem [shape: f32[2,4,2,128], index: 5, kind: output, shape index: {1}]
  %6 = xla_tuple %s4, %s5
  %s7 = sld [smem:[#allocation0]]
  $region57: #{basic_block_forward.4} parent=0
    _
  %s9 = ssub.s32 1, %s7
  %s10 = scalar_select 0, %s9, %s7
  loop: start=0, step=1, limit=10
  $region2: #{basic_block_forward.4} parent=0 // loop_pre_header
    _
  $region3: #{basic_block_forward.4} parent=0 // loop_header
    %s12 = sphi 0, %s16
    %p13 = scmp.ge.s32.totalorder %s12, 10
    %s19 = sphi 0, %s31
    %s20 = sphi 0, %s27
    %s21 = sphi 0, %s19
    %s22 = sphi 0, %s20
    %s23 = sphi 0, %s21
    %s24 = sphi 0, %s22
    %s36 = sphi 0, %s38
    %s39 = sphi 0, %s36
    %s40 = sphi 0, %s39
    %s56 = sphi 0, %s40
    %s66 = sphi 0, %s68
    %s69 = sphi 0, %s66
    %s70 = sphi 0, %s69
    %s86 = sphi 0, %s70
    %s96 = sphi 0, %s98
    %s99 = sphi 0, %s96
    %s100 = sphi 0, %s99
    %s116 = sphi 0, %s100
    %s120 = sphi 0, %s120
    %s122 = sphi 0, %s120
    %s123 = sphi 0, %s122
    %s137 = sphi 0, %s123
    %s145 = sphi 0, %s147
    %s148 = sphi 0, %s145
    %s149 = sphi 0, %s148
    %s165 = sphi 0, %s149
    %s173 = sphi 0, %s175
    %s176 = sphi 0, %s173
    %s177 = sphi 0, %s176
    %s193 = sphi 0, %s177
  $region4: #{basic_block_forward.4} parent=0 // loop_header_branch
    %15 = sbr.rel (%p13) target = $region8
  $region5: #{basic_block_forward.4} parent=0 // loop_body
    %s17 = ssub.s32 %s12, 1
    %s18 = ssub.s32 %s12, 2
    %s25 = sadd.s32 1, %s20
    %p26 = scmp.ge.s32.totalorder %s25, 4
    %s27 = scalar_select %p26, 0, %s25
    %s28 = sadd.s32 1, %s19
    %s29 = scalar_select %p26, %s28, %s19
    %p30 = scmp.ge.s32.totalorder %s29, 2
    %s31 = scalar_select %p30, 0, %s29
    %s32 = ssub.s32 %s19, %s31
    %s33 = ssub.s32 %s20, %s27
    %s34 = sor.u32 %s32, %s33
    %p35 = scmp.eq.s32.totalorder %s34, 0
    %s37 = sadd.s32 %s36, 1
    %s38 = scalar_select %p35, %s36, %s37
    %p41 = pneg %p35
    %p42 = scmp.eq.s32.totalorder %s12, 7
    %p43 = por %p41, %p42
    %p44 = scmp.ne.s32.totalorder %s36, %s39
    %p45 = scmp.eq.s32.totalorder %s12, 0
    %p46 = por %p44, %p45
    %p47 = scmp.ne.s32.totalorder %s36, %s39
    %p48 = scmp.eq.s32.totalorder %s17, 7
    %p49 = por %p47, %p48
    %p50 = scmp.ne.s32.totalorder %s39, %s40
    %p51 = scmp.eq.s32.totalorder %s17, 0
    %p52 = por %p50, %p51
    %p53 = scmp.ne.s32.totalorder %s39, %s40
    %p54 = scmp.eq.s32.totalorder %s18, 7
    %p55 = por %p53, %p54
    %p57 = scmp.ne.s32.totalorder %s40, %s56
    %p58 = scmp.eq.s32.totalorder %s18, 0
    %p59 = por %p57, %p58
    %s60 = sadd.s32 %s20, 1
    %s61 = sadd.s32 %s27, 1
    %s62 = ssub.s32 %s19, %s31
    %s63 = ssub.s32 %s60, %s61
    %s64 = sor.u32 %s62, %s63
    %p65 = scmp.eq.s32.totalorder %s64, 0
    %s67 = sadd.s32 %s66, 1
    %s68 = scalar_select %p65, %s66, %s67
    %p71 = pneg %p65
    %p72 = scmp.eq.s32.totalorder %s12, 7
    %p73 = por %p71, %p72
    %p74 = scmp.ne.s32.totalorder %s66, %s69
    %p75 = scmp.eq.s32.totalorder %s12, 0
    %p76 = por %p74, %p75
    %p77 = scmp.ne.s32.totalorder %s66, %s69
    %p78 = scmp.eq.s32.totalorder %s17, 7
    %p79 = por %p77, %p78
    %p80 = scmp.ne.s32.totalorder %s69, %s70
    %p81 = scmp.eq.s32.totalorder %s17, 0
    %p82 = por %p80, %p81
    %p83 = scmp.ne.s32.totalorder %s69, %s70
    %p84 = scmp.eq.s32.totalorder %s18, 7
    %p85 = por %p83, %p84
    %p87 = scmp.ne.s32.totalorder %s70, %s86
    %p88 = scmp.eq.s32.totalorder %s18, 0
    %p89 = por %p87, %p88
    %s90 = sadd.s32 %s20, 2
    %s91 = sadd.s32 %s27, 2
    %s92 = ssub.s32 %s19, %s31
    %s93 = ssub.s32 %s90, %s91
    %s94 = sor.u32 %s92, %s93
    %p95 = scmp.eq.s32.totalorder %s94, 0
    %s97 = sadd.s32 %s96, 1
    %s98 = scalar_select %p95, %s96, %s97
    %p101 = pneg %p95
    %p102 = scmp.eq.s32.totalorder %s12, 7
    %p103 = por %p101, %p102
    %p104 = scmp.ne.s32.totalorder %s96, %s99
    %p105 = scmp.eq.s32.totalorder %s12, 0
    %p106 = por %p104, %p105
    %p107 = scmp.ne.s32.totalorder %s96, %s99
    %p108 = scmp.eq.s32.totalorder %s17, 7
    %p109 = por %p107, %p108
    %p110 = scmp.ne.s32.totalorder %s99, %s100
    %p111 = scmp.eq.s32.totalorder %s17, 0
    %p112 = por %p110, %p111
    %p113 = scmp.ne.s32.totalorder %s99, %s100
    %p114 = scmp.eq.s32.totalorder %s18, 7
    %p115 = por %p113, %p114
    %p117 = scmp.ne.s32.totalorder %s100, %s116
    %p118 = scmp.eq.s32.totalorder %s18, 0
    %p119 = por %p117, %p118
    %s121 = sadd.s32 %s120, 1
    %p124 = scmp.eq.s32.totalorder %s12, 7
    %p125 = scmp.ne.s32.totalorder %s120, %s122
    %p126 = scmp.eq.s32.totalorder %s12, 0
    %p127 = por %p125, %p126
    %p128 = scmp.ne.s32.totalorder %s120, %s122
    %p129 = scmp.eq.s32.totalorder %s17, 7
    %p130 = por %p128, %p129
    %p131 = scmp.ne.s32.totalorder %s122, %s123
    %p132 = scmp.eq.s32.totalorder %s17, 0
    %p133 = por %p131, %p132
    %p134 = scmp.ne.s32.totalorder %s122, %s123
    %p135 = scmp.eq.s32.totalorder %s18, 7
    %p136 = por %p134, %p135
    %p138 = scmp.ne.s32.totalorder %s123, %s137
    %p139 = scmp.eq.s32.totalorder %s18, 0
    %p140 = por %p138, %p139
    %s141 = ssub.s32 %s19, %s31
    %s142 = ssub.s32 %s20, %s27
    %s143 = sor.u32 %s141, %s142
    %p144 = scmp.eq.s32.totalorder %s143, 0
    %s146 = sadd.s32 %s145, 1
    %s147 = scalar_select %p144, %s145, %s146
    %p150 = pneg %p144
    %p151 = scmp.eq.s32.totalorder %s12, 7
    %p152 = por %p150, %p151
    %p153 = scmp.ne.s32.totalorder %s145, %s148
    %p154 = scmp.eq.s32.totalorder %s12, 0
    %p155 = por %p153, %p154
    %p156 = scmp.ne.s32.totalorder %s145, %s148
    %p157 = scmp.eq.s32.totalorder %s17, 7
    %p158 = por %p156, %p157
    %p159 = scmp.ne.s32.totalorder %s148, %s149
    %p160 = scmp.eq.s32.totalorder %s17, 0
    %p161 = por %p159, %p160
    %p162 = scmp.ne.s32.totalorder %s148, %s149
    %p163 = scmp.eq.s32.totalorder %s18, 7
    %p164 = por %p162, %p163
    %p166 = scmp.ne.s32.totalorder %s149, %s165
    %p167 = scmp.eq.s32.totalorder %s18, 0
    %p168 = por %p166, %p167
    %s169 = ssub.s32 %s19, %s31
    %s170 = ssub.s32 %s20, %s27
    %s171 = sor.u32 %s169, %s170
    %p172 = scmp.eq.s32.totalorder %s171, 0
    %s174 = sadd.s32 %s173, 1
    %s175 = scalar_select %p172, %s173, %s174
    %p178 = pneg %p172
    %p179 = scmp.eq.s32.totalorder %s12, 7
    %p180 = por %p178, %p179
    %p181 = scmp.ne.s32.totalorder %s173, %s176
    %p182 = scmp.eq.s32.totalorder %s12, 0
    %p183 = por %p181, %p182
    %p184 = scmp.ne.s32.totalorder %s173, %s176
    %p185 = scmp.eq.s32.totalorder %s17, 7
    %p186 = por %p184, %p185
    %p187 = scmp.ne.s32.totalorder %s176, %s177
    %p188 = scmp.eq.s32.totalorder %s17, 0
    %p189 = por %p187, %p188
    %p190 = scmp.ne.s32.totalorder %s176, %s177
    %p191 = scmp.eq.s32.totalorder %s18, 7
    %p192 = por %p190, %p191
    %p194 = scmp.ne.s32.totalorder %s177, %s193
    %p195 = scmp.eq.s32.totalorder %s18, 0
    %p196 = por %p194, %p195
    %p197 = scmp.le.s32.totalorder 1, %s12
    %p198 = scmp.lt.s32.totalorder %s12, 9
    %p199 = pnand %p197, %p198
    %p200 = pneg %p199
    // Predicated region
    $region9: #{basic_block_forward.4} parent=5 // pred_check
      _
    $region10: #{basic_block_forward.4} parent=5 // pred_check_branch
      %202 = sbr.rel (%p199) target = $region12
    $region11: #{basic_block_forward.4} parent=5 // pred_region
      %s203 = ssub.s32 %s12, 1
      // Predicated region
      $region13: #{basic_block_forward.4} parent=11 // pred_check
        %p204 = pneg %p133
      $region14: #{basic_block_forward.4} parent=11 // pred_check_branch
        %206 = sbr.rel (%p204) target = $region16
      $region15: #{basic_block_forward.4} parent=11 // pred_region
        _
      $region16: #{basic_block_forward.4} parent=11 // pred_fallthru
        _
    $region12: #{basic_block_forward.4} parent=5 // pred_fallthru
      _
    %p207 = scmp.lt.s32.totalorder %s12, 8
    // Predicated region
    $region17: #{basic_block_forward.4} parent=5 // pred_check
      %p208 = pneg %p207
    $region18: #{basic_block_forward.4} parent=5 // pred_check_branch
      %210 = sbr.rel (%p208) target = $region20
    $region19: #{basic_block_forward.4} parent=5 // pred_region
      // Predicated region
      $region21: #{basic_block_forward.4} parent=19 // pred_check
        %p211 = pneg %p46
      $region22: #{basic_block_forward.4} parent=19 // pred_check_branch
        %213 = sbr.rel (%p211) target = $region24
      $region23: #{basic_block_forward.4} parent=19 // pred_region
        %p214 = scmp.lt.s32.totalorder %s19, 1
        %s215 = scalar_select %p214, %s19, 1
        %p216 = scmp.lt.s32.totalorder %s20, 5
        %s217 = scalar_select %p216, %s20, 5
        %s218 = smul.addr %s217, 20
        %s219 = smul.addr %s215, 120
        %s220 = sadd.s32 %s218, %s219
        %s221 = smul.addr %s220, 4
        %s222 = scalar_lea.vmem %s0, %s221
      $region24: #{basic_block_forward.4} parent=19 // pred_fallthru
        _
      // Predicated region
      $region25: #{basic_block_forward.4} parent=19 // pred_check
        %p223 = pneg %p76
      $region26: #{basic_block_forward.4} parent=19 // pred_check_branch
        %225 = sbr.rel (%p223) target = $region28
      $region27: #{basic_block_forward.4} parent=19 // pred_region
        %s226 = sadd.s32 %s20, 1
        %p227 = scmp.lt.s32.totalorder %s19, 1
        %s228 = scalar_select %p227, %s19, 1
        %p229 = scmp.lt.s32.totalorder %s226, 5
        %s230 = scalar_select %p229, %s226, 5
        %s231 = smul.addr %s230, 20
        %s232 = smul.addr %s228, 120
        %s233 = sadd.s32 %s231, %s232
        %s234 = smul.addr %s233, 4
        %s235 = scalar_lea.vmem %s1, %s234
        %s236 = sadd.s32 %s20, 1
      $region28: #{basic_block_forward.4} parent=19 // pred_fallthru
        _
      // Predicated region
      $region29: #{basic_block_forward.4} parent=19 // pred_check
        %p237 = pneg %p106
      $region30: #{basic_block_forward.4} parent=19 // pred_check_branch
        %239 = sbr.rel (%p237) target = $region32
      $region31: #{basic_block_forward.4} parent=19 // pred_region
        %s240 = sadd.s32 %s20, 2
        %p241 = scmp.lt.s32.totalorder %s19, 1
        %s242 = scalar_select %p241, %s19, 1
        %p243 = scmp.lt.s32.totalorder %s240, 5
        %s244 = scalar_select %p243, %s240, 5
        %s245 = smul.addr %s244, 20
        %s246 = smul.addr %s242, 120
        %s247 = sadd.s32 %s245, %s246
        %s248 = smul.addr %s247, 4
        %s249 = scalar_lea.vmem %s2, %s248
        %s250 = sadd.s32 %s20, 2
      $region32: #{basic_block_forward.4} parent=19 // pred_fallthru
        _
    $region20: #{basic_block_forward.4} parent=5 // pred_fallthru
      _
    %p251 = scmp.le.s32.totalorder 1, %s12
    %p252 = scmp.lt.s32.totalorder %s12, 9
    %p253 = pnand %p251, %p252
    %p254 = pneg %p253
    // Predicated region
    $region33: #{basic_block_forward.4} parent=5 // pred_check
      _
    $region34: #{basic_block_forward.4} parent=5 // pred_check_branch
      %256 = sbr.rel (%p253) target = $region36
    $region35: #{basic_block_forward.4} parent=5 // pred_region
      %s257 = ssub.s32 %s12, 1
      %p258 = scmp.lt.s32.totalorder %s21, 1
      %s259 = scalar_select %p258, %s21, 1
      %p260 = scmp.lt.s32.totalorder %s22, 5
      %s261 = scalar_select %p260, %s22, 5
      %s262 = smul.addr %s261, 20
      %s263 = smul.addr %s259, 120
      %s264 = sadd.s32 %s262, %s263
      %s265 = smul.addr %s264, 4
      %s266 = scalar_lea.vmem %s0, %s265
      %p267 = pneg %p52
      %p268 = pneg %p49
      %s269 = sadd.s32 %s22, 1
      %p270 = scmp.lt.s32.totalorder %s21, 1
      %s271 = scalar_select %p270, %s21, 1
      %p272 = scmp.lt.s32.totalorder %s269, 5
      %s273 = scalar_select %p272, %s269, 5
      %s274 = smul.addr %s273, 20
      %s275 = smul.addr %s271, 120
      %s276 = sadd.s32 %s274, %s275
      %s277 = smul.addr %s276, 4
      %s278 = scalar_lea.vmem %s1, %s277
      %p279 = pneg %p82
      %p280 = pneg %p79
      %s281 = sadd.s32 %s22, 2
      %p282 = scmp.lt.s32.totalorder %s21, 1
      %s283 = scalar_select %p282, %s21, 1
      %p284 = scmp.lt.s32.totalorder %s281, 5
      %s285 = scalar_select %p284, %s281, 5
      %s286 = smul.addr %s285, 20
      %s287 = smul.addr %s283, 120
      %s288 = sadd.s32 %s286, %s287
      %s289 = smul.addr %s288, 4
      %s290 = scalar_lea.vmem %s2, %s289
      %p291 = pneg %p112
      %p292 = pneg %p109
      %p293 = pneg %p133
      %p294 = pneg %p130
      %p295 = pneg %p161
      %p296 = pneg %p158
      %p297 = scmp.lt.s32.totalorder %s21, 1
      %s298 = scalar_select %p297, %s21, 1
      %p299 = scmp.lt.s32.totalorder %s22, 3
      %s300 = scalar_select %p299, %s22, 3
      %s301 = smul.addr %s300, 8
      %s302 = smul.addr %s298, 32
      %s303 = sadd.s32 %s301, %s302
      %s304 = smul.addr %s303, 8
      %s305 = scalar_lea.vmem %s4, %s304
      %p306 = pneg %p189
      %p307 = pneg %p186
      %p308 = scmp.lt.s32.totalorder %s21, 1
      %s309 = scalar_select %p308, %s21, 1
      %p310 = scmp.lt.s32.totalorder %s22, 3
      %s311 = scalar_select %p310, %s22, 3
      %s312 = smul.addr %s309, 4
      %s313 = sadd.s32 %s311, %s312
      %s314 = smul.addr %s313, 2
      %s315 = scalar_lea.vmem %s5, %s314
      %p316 = scmp.lt.s32.totalorder %s21, 1
      %s317 = scalar_select %p316, %s21, 1
      %p318 = scmp.lt.s32.totalorder %s22, 5
      %s319 = scalar_select %p318, %s22, 5
      %s320 = smul.addr %s319, 20
      %s321 = smul.addr %s317, 120
      %s322 = sadd.s32 %s320, %s321
      %s323 = smul.addr %s322, 4
      %s324 = scalar_lea.vmem %s0, %s323
      %s325 = sadd.s32 %s22, 1
      %p326 = scmp.lt.s32.totalorder %s21, 1
      %s327 = scalar_select %p326, %s21, 1
      %p328 = scmp.lt.s32.totalorder %s325, 5
      %s329 = scalar_select %p328, %s325, 5
      %s330 = smul.addr %s329, 20
      %s331 = smul.addr %s327, 120
      %s332 = sadd.s32 %s330, %s331
      %s333 = smul.addr %s332, 4
      %s334 = scalar_lea.vmem %s1, %s333
      %s335 = sadd.s32 %s22, 1
      %s336 = sadd.s32 %s22, 2
      %p337 = scmp.lt.s32.totalorder %s21, 1
      %s338 = scalar_select %p337, %s21, 1
      %p339 = scmp.lt.s32.totalorder %s336, 5
      %s340 = scalar_select %p339, %s336, 5
      %s341 = smul.addr %s340, 20
      %s342 = smul.addr %s338, 120
      %s343 = sadd.s32 %s341, %s342
      %s344 = smul.addr %s343, 4
      %s345 = scalar_lea.vmem %s2, %s344
      %s346 = sadd.s32 %s22, 2
      %p347 = scmp.lt.s32.totalorder %s21, 1
      %s348 = scalar_select %p347, %s21, 1
      %p349 = scmp.lt.s32.totalorder %s22, 3
      %s350 = scalar_select %p349, %s22, 3
      %s351 = smul.addr %s350, 8
      %s352 = smul.addr %s348, 32
      %s353 = sadd.s32 %s351, %s352
      %s354 = smul.addr %s353, 8
      %s355 = scalar_lea.vmem %s4, %s354
      %p356 = scmp.lt.s32.totalorder %s21, 1
      %s357 = scalar_select %p356, %s21, 1
      %p358 = scmp.lt.s32.totalorder %s22, 3
      %s359 = scalar_select %p358, %s22, 3
      %s360 = smul.addr %s357, 4
      %s361 = sadd.s32 %s359, %s360
      %s362 = smul.addr %s361, 2
      %s363 = scalar_lea.vmem %s5, %s362
      %365 = vst [vmem:[#allocation2] sm:$0xff] 0.0
      %366 = vst [vmem:[#allocation2 + $0x8] sm:$0xff] 0.0
      %367 = vst [vmem:[#allocation2 + $0x10] sm:$0xff] 0.0
      %368 = vst [vmem:[#allocation2 + $0x18] sm:$0xff] 0.0
      %369 = vst [vmem:[#allocation2 + $0x20] sm:$0xff] 0.0
      %370 = vst [vmem:[#allocation2 + $0x28] sm:$0xff] 0.0
      %371 = vst [vmem:[#allocation2 + $0x30] sm:$0xff] 0.0
      %372 = vst [vmem:[#allocation2 + $0x38] sm:$0xff] 0.0
      %v373 = vld [vmem:[%s324] sm:$0xf]
      %v374 = vld [vmem:[%s324 + $0x8] sm:$0xf]
      %v375 = vld [vmem:[%s324 + $0x10] sm:$0xf]
      %v376 = vld [vmem:[%s324 + $0x18] sm:$0xf]
      %v377 = vld [vmem:[%s324 + $0x20] sm:$0xf]
      %v378 = vld [vmem:[%s324 + $0x28] sm:$0xf]
      %v379 = vld [vmem:[%s324 + $0x30] sm:$0xf]
      %v380 = vld [vmem:[%s324 + $0x38] sm:$0xf]
      %v381 = vld [vmem:[%s324 + $0x40] sm:$0xf]
      %v382 = vld [vmem:[%s324 + $0x48] sm:$0xf]
      %v383 = vld [vmem:[%s324 + $0x4] sm:$0x1]
      %v384 = vld [vmem:[%s324 + $0xc] sm:$0x1]
      %v385 = vld [vmem:[%s324 + $0x14] sm:$0x1]
      %v386 = vld [vmem:[%s324 + $0x1c] sm:$0x1]
      %v387 = vld [vmem:[%s324 + $0x24] sm:$0x1]
      %v388 = vld [vmem:[%s324 + $0x2c] sm:$0x1]
      %v389 = vld [vmem:[%s324 + $0x34] sm:$0x1]
      %v390 = vld [vmem:[%s324 + $0x3c] sm:$0x1]
      %v391 = vld [vmem:[%s324 + $0x44] sm:$0x1]
      %v392 = vld [vmem:[%s324 + $0x4c] sm:$0x1]
      %v393 = vld [vmem:[%s324] sm:$0xe]
      %v394 = vld [vmem:[%s324 + $0x8] sm:$0xe]
      %v395 = vld [vmem:[%s324 + $0x10] sm:$0xe]
      %v396 = vld [vmem:[%s324 + $0x18] sm:$0xe]
      %v397 = vld [vmem:[%s324 + $0x20] sm:$0xe]
      %v398 = vld [vmem:[%s324 + $0x28] sm:$0xe]
      %v399 = vld [vmem:[%s324 + $0x30] sm:$0xe]
      %v400 = vld [vmem:[%s324 + $0x38] sm:$0xe]
      %v401 = vld [vmem:[%s324 + $0x40] sm:$0xe]
      %v402 = vld [vmem:[%s324 + $0x48] sm:$0xe]
      %v423 = vunpack.c.l.b16 %v373
      %v424 = vunpack.c.l.b16 %v383
      %v425 = vunpack.c.l.b16 %v374
      %v426 = vunpack.c.l.b16 %v384
      %v427 = vunpack.c.l.b16 %v375
      %v428 = vunpack.c.l.b16 %v385
      %v429 = vunpack.c.l.b16 %v376
      %v430 = vunpack.c.l.b16 %v386
      %v431 = vunpack.c.l.b16 %v377
      %v432 = vunpack.c.l.b16 %v387
      %v433 = vunpack.c.l.b16 %v378
      %v434 = vunpack.c.l.b16 %v388
      %v435 = vunpack.c.l.b16 %v379
      %v436 = vunpack.c.l.b16 %v389
      %v437 = vunpack.c.l.b16 %v380
      %v438 = vunpack.c.l.b16 %v390
      %v439 = vunpack.c.l.b16 %v381
      %v440 = vunpack.c.l.b16 %v391
      %v441 = vunpack.c.l.b16 %v382
      %v442 = vunpack.c.l.b16 %v392
      %v443 = vpack.c.b16 %v424, %v423
      %v444 = vpack.c.b16 %v426, %v425
      %v445 = vpack.c.b16 %v428, %v427
      %v446 = vpack.c.b16 %v430, %v429
      %v447 = vpack.c.b16 %v432, %v431
      %v448 = vpack.c.b16 %v434, %v433
      %v449 = vpack.c.b16 %v436, %v435
      %v450 = vpack.c.b16 %v438, %v437
      %v451 = vpack.c.b16 %v440, %v439
      %v452 = vpack.c.b16 %v442, %v441
      %v454 = vshrl.u32 %v443, 16
      %v456 = vshll.u32 %v443, 16
      %v458 = vrot.slane %v456, 1
      %v459 = vor.u32 %v454, %v458
      %v461 = vshrl.u32 %v444, 16
      %v463 = vshll.u32 %v444, 16
      %v465 = vrot.slane %v463, 1
      %v466 = vor.u32 %v461, %v465
      %v468 = vshrl.u32 %v445, 16
      %v470 = vshll.u32 %v445, 16
      %v472 = vrot.slane %v470, 1
      %v473 = vor.u32 %v468, %v472
      %v475 = vshrl.u32 %v446, 16
      %v477 = vshll.u32 %v446, 16
      %v479 = vrot.slane %v477, 1
      %v480 = vor.u32 %v475, %v479
      %v482 = vshrl.u32 %v447, 16
      %v484 = vshll.u32 %v447, 16
      %v486 = vrot.slane %v484, 1
      %v487 = vor.u32 %v482, %v486
      %v489 = vshrl.u32 %v448, 16
      %v491 = vshll.u32 %v448, 16
      %v493 = vrot.slane %v491, 1
      %v494 = vor.u32 %v489, %v493
      %v496 = vshrl.u32 %v449, 16
      %v498 = vshll.u32 %v449, 16
      %v500 = vrot.slane %v498, 1
      %v501 = vor.u32 %v496, %v500
      %v503 = vshrl.u32 %v450, 16
      %v505 = vshll.u32 %v450, 16
      %v507 = vrot.slane %v505, 1
      %v508 = vor.u32 %v503, %v507
      %v510 = vshrl.u32 %v451, 16
      %v512 = vshll.u32 %v451, 16
      %v514 = vrot.slane %v512, 1
      %v515 = vor.u32 %v510, %v514
      %v517 = vshrl.u32 %v452, 16
      %v519 = vshll.u32 %v452, 16
      %v521 = vrot.slane %v519, 1
      %v522 = vor.u32 %v517, %v521
      %v533 = vunpack.c.l.b16 %v393
      %v534 = vunpack.c.l.b16 %v394
      %v535 = vunpack.c.l.b16 %v395
      %v536 = vunpack.c.l.b16 %v396
      %v537 = vunpack.c.l.b16 %v397
      %v538 = vunpack.c.l.b16 %v398
      %v539 = vunpack.c.l.b16 %v399
      %v540 = vunpack.c.l.b16 %v400
      %v541 = vunpack.c.l.b16 %v401
      %v542 = vunpack.c.l.b16 %v402
      %v543 = vpack.c.b16 %v424, %v533
      %v544 = vpack.c.b16 %v426, %v534
      %v545 = vpack.c.b16 %v428, %v535
      %v546 = vpack.c.b16 %v430, %v536
      %v547 = vpack.c.b16 %v432, %v537
      %v548 = vpack.c.b16 %v434, %v538
      %v549 = vpack.c.b16 %v436, %v539
      %v550 = vpack.c.b16 %v438, %v540
      %v551 = vpack.c.b16 %v440, %v541
      %v552 = vpack.c.b16 %v442, %v542
      %v553 = vrot.slane %v543, 1
      %v554 = vrot.slane %v544, 1
      %v555 = vrot.slane %v545, 1
      %v556 = vrot.slane %v546, 1
      %v557 = vrot.slane %v547, 1
      %v558 = vrot.slane %v548, 1
      %v559 = vrot.slane %v549, 1
      %v560 = vrot.slane %v550, 1
      %v561 = vrot.slane %v551, 1
      %v562 = vrot.slane %v552, 1
      %v563 = vunpack.c.l.b16 %v459
      %v564 = vunpack.c.l.b16 %v553
      %v565 = vunpack.c.l.b16 %v466
      %v566 = vunpack.c.l.b16 %v554
      %v567 = vunpack.c.l.b16 %v473
      %v568 = vunpack.c.l.b16 %v555
      %v569 = vunpack.c.l.b16 %v480
      %v570 = vunpack.c.l.b16 %v556
      %v571 = vunpack.c.l.b16 %v487
      %v572 = vunpack.c.l.b16 %v557
      %v573 = vunpack.c.l.b16 %v494
      %v574 = vunpack.c.l.b16 %v558
      %v575 = vunpack.c.l.b16 %v501
      %v576 = vunpack.c.l.b16 %v559
      %v577 = vunpack.c.l.b16 %v508
      %v578 = vunpack.c.l.b16 %v560
      %v579 = vld [vmem:[#allocation2] sm:$0xff]
      %v580 = vld [vmem:[#allocation2 + $0x8] sm:$0xff]
      %v581 = vld [vmem:[#allocation2 + $0x10] sm:$0xff]
      %v582 = vld [vmem:[#allocation2 + $0x18] sm:$0xff]
      %v583 = vld [vmem:[#allocation2 + $0x20] sm:$0xff]
      %v584 = vld [vmem:[#allocation2 + $0x28] sm:$0xff]
      %v585 = vld [vmem:[#allocation2 + $0x30] sm:$0xff]
      %v586 = vld [vmem:[#allocation2 + $0x38] sm:$0xff]
      %v587 = vld [vmem:[%s3] sm:$0xf]
      %v588 = vld [vmem:[%s3 + $0x4] sm:$0xf]
      %v589 = vld [vmem:[%s3 + $0x8] sm:$0xf]
      %v590 = vld [vmem:[%s3 + $0xc] sm:$0xf]
      %v591 = vld [vmem:[%s3 + $0x10] sm:$0xf]
      %v592 = vld [vmem:[%s3 + $0x14] sm:$0xf]
      %v593 = vld [vmem:[%s3 + $0x18] sm:$0xf]
      %v594 = vld [vmem:[%s3 + $0x1c] sm:$0xf]
      %v595 = vld [vmem:[%s3 + $0x20] sm:$0xf]
      %v596 = vld [vmem:[%s3 + $0x24] sm:$0xf]
      %v597 = vld [vmem:[%s3 + $0x28] sm:$0xf]
      %v598 = vld [vmem:[%s3 + $0x2c] sm:$0xf]
      %v599 = vld [vmem:[%s3 + $0x30] sm:$0xf]
      %v600 = vld [vmem:[%s3 + $0x34] sm:$0xf]
      %v601 = vld [vmem:[%s3 + $0x38] sm:$0xf]
      %v602 = vld [vmem:[%s3 + $0x3c] sm:$0xf]
      %v603 = vld [vmem:[%s3 + $0x40] sm:$0xf]
      %v604 = vld [vmem:[%s3 + $0x44] sm:$0xf]
      %v605 = vld [vmem:[%s3 + $0x48] sm:$0xf]
      %v606 = vld [vmem:[%s3 + $0x4c] sm:$0xf]
      %v607 = vld [vmem:[%s3 + $0x50] sm:$0xf]
      %v608 = vld [vmem:[%s3 + $0x54] sm:$0xf]
      %v609 = vld [vmem:[%s3 + $0x58] sm:$0xf]
      %v610 = vld [vmem:[%s3 + $0x5c] sm:$0xf]
      %v611 = vld [vmem:[%s3 + $0x60] sm:$0xf]
      %v612 = vld [vmem:[%s3 + $0x64] sm:$0xf]
      %v613 = vld [vmem:[%s3 + $0x68] sm:$0xf]
      %v614 = vld [vmem:[%s3 + $0x6c] sm:$0xf]
      %v615 = vld [vmem:[%s3 + $0x70] sm:$0xf]
      %v616 = vld [vmem:[%s3 + $0x74] sm:$0xf]
      %v617 = vld [vmem:[%s3 + $0x78] sm:$0xf]
      %v618 = vld [vmem:[%s3 + $0x7c] sm:$0xf]
      %v619 = vld [vmem:[%s3 + $0x80] sm:$0xf]
      %v620 = vld [vmem:[%s3 + $0x84] sm:$0xf]
      %v621 = vld [vmem:[%s3 + $0x88] sm:$0xf]
      %v622 = vld [vmem:[%s3 + $0x8c] sm:$0xf]
      %v623 = vld [vmem:[%s3 + $0x90] sm:$0xf]
      %v624 = vld [vmem:[%s3 + $0x94] sm:$0xf]
      %v625 = vld [vmem:[%s3 + $0x98] sm:$0xf]
      %v626 = vld [vmem:[%s3 + $0x9c] sm:$0xf]
      %v627 = vld [vmem:[%s3 + $0xa0] sm:$0xf]
      %v628 = vld [vmem:[%s3 + $0xa4] sm:$0xf]
      %v629 = vld [vmem:[%s3 + $0xa8] sm:$0xf]
      %v630 = vld [vmem:[%s3 + $0xac] sm:$0xf]
      %v631 = vld [vmem:[%s3 + $0xb0] sm:$0xf]
      %v632 = vld [vmem:[%s3 + $0xb4] sm:$0xf]
      %v633 = vld [vmem:[%s3 + $0xb8] sm:$0xf]
      %v634 = vld [vmem:[%s3 + $0xbc] sm:$0xf]
      %v635 = vpack.c.b16 %v425, %v423
      %v636 = vpack.c.b16 %v565, %v563
      %v637 = vpack.c.b16 %v566, %v564
      %v638 = vpack.c.b16 %v429, %v427
      %v639 = vpack.c.b16 %v569, %v567
      %v640 = vpack.c.b16 %v570, %v568
      %v641 = vpack.c.b16 %v433, %v431
      %v642 = vpack.c.b16 %v573, %v571
      %v643 = vpack.c.b16 %v574, %v572
      %v644 = vpack.c.b16 %v437, %v435
      %v645 = vpack.c.b16 %v577, %v575
      %v646 = vpack.c.b16 %v578, %v576
      %v707 = vunpack.c.l.b16 %v587
      %v708 = vunpack.c.l.b16 %v588
      %v709 = vunpack.c.l.b16 %v589
      %v710 = vunpack.c.l.b16 %v590
      %v711 = vunpack.c.l.b16 %v591
      %v712 = vunpack.c.l.b16 %v592
      %v713 = vunpack.c.l.b16 %v593
      %v714 = vunpack.c.l.b16 %v594
      %v715 = vunpack.c.l.b16 %v595
      %v716 = vunpack.c.l.b16 %v596
      %v717 = vunpack.c.l.b16 %v597
      %v718 = vunpack.c.l.b16 %v598
      %v719 = vunpack.c.l.b16 %v599
      %v720 = vunpack.c.l.b16 %v600
      %v721 = vunpack.c.l.b16 %v601
      %v722 = vunpack.c.l.b16 %v602
      %v723 = vunpack.c.l.b16 %v603
      %v724 = vunpack.c.l.b16 %v604
      %v725 = vunpack.c.l.b16 %v605
      %v726 = vunpack.c.l.b16 %v606
      %v727 = vunpack.c.l.b16 %v607
      %v728 = vunpack.c.l.b16 %v608
      %v729 = vunpack.c.l.b16 %v609
      %v730 = vunpack.c.l.b16 %v610
      %v731 = vunpack.c.l.b16 %v611
      %v732 = vunpack.c.l.b16 %v612
      %v733 = vunpack.c.l.b16 %v613
      %v734 = vunpack.c.l.b16 %v614
      %v735 = vunpack.c.l.b16 %v615
      %v736 = vunpack.c.l.b16 %v616
      %v737 = vunpack.c.l.b16 %v617
      %v738 = vunpack.c.l.b16 %v618
      %v739 = vunpack.c.l.b16 %v619
      %v740 = vunpack.c.l.b16 %v620
      %v741 = vunpack.c.l.b16 %v621
      %v742 = vunpack.c.l.b16 %v622
      %v743 = vunpack.c.l.b16 %v623
      %v744 = vunpack.c.l.b16 %v624
      %v745 = vunpack.c.l.b16 %v625
      %v746 = vunpack.c.l.b16 %v626
      %v747 = vunpack.c.l.b16 %v627
      %v748 = vunpack.c.l.b16 %v628
      %v749 = vunpack.c.l.b16 %v629
      %v750 = vunpack.c.l.b16 %v630
      %v751 = vunpack.c.l.b16 %v631
      %v752 = vunpack.c.l.b16 %v632
      %v753 = vunpack.c.l.b16 %v633
      %v754 = vunpack.c.l.b16 %v634
      %v755 = vpack.c.b16 %v708, %v707
      %v756 = vpack.c.b16 %v710, %v709
      %v757 = vpack.c.b16 %v712, %v711
      %v758 = vpack.c.b16 %v714, %v713
      %v759 = vpack.c.b16 %v716, %v715
      %v760 = vpack.c.b16 %v718, %v717
      %v761 = vpack.c.b16 %v720, %v719
      %v762 = vpack.c.b16 %v722, %v721
      %v763 = vpack.c.b16 %v724, %v723
      %v764 = vpack.c.b16 %v726, %v725
      %v765 = vpack.c.b16 %v728, %v727
      %v766 = vpack.c.b16 %v730, %v729
      %v767 = vpack.c.b16 %v732, %v731
      %v768 = vpack.c.b16 %v734, %v733
      %v769 = vpack.c.b16 %v736, %v735
      %v770 = vpack.c.b16 %v738, %v737
      %v771 = vpack.c.b16 %v740, %v739
      %v772 = vpack.c.b16 %v742, %v741
      %v773 = vpack.c.b16 %v744, %v743
      %v774 = vpack.c.b16 %v746, %v745
      %v775 = vpack.c.b16 %v748, %v747
      %v776 = vpack.c.b16 %v750, %v749
      %v777 = vpack.c.b16 %v752, %v751
      %v778 = vpack.c.b16 %v754, %v753
      %803 = vmatprep.subr.bf16.mxu0 0
      %804 = vmatpush1.bf16.msra.mxu0 %v755
      %805 = vmatprep.subr.bf16.mxu0 0
      %806 = vmatpush1.bf16.msra.mxu0 %v756
      %807 = vmatprep.subr.bf16.mxu0 0
      %808 = vmatpush1.bf16.msra.mxu0 %v757
      %809 = vmatprep.subr.bf16.mxu0 0
      %810 = vmatpush1.bf16.msra.mxu0 %v758
      %811 = vmatprep.subr.bf16.mxu0 0
      %812 = vmatpush1.bf16.msra.mxu0 %v759
      %813 = vmatprep.subr.bf16.mxu0 0
      %814 = vmatpush1.bf16.msra.mxu0 %v760
      %815 = vmatprep.subr.bf16.mxu0 0
      %816 = vmatpush1.bf16.msra.mxu0 %v761
      %817 = vmatprep.subr.bf16.mxu0 0
      %818 = vmatpush1.bf16.msra.mxu0 %v762
      %819 = vmatprep.subr.bf16.mxu0 0
      %820 = vmatpush1.bf16.msra.mxu0 %v763
      %821 = vmatprep.subr.bf16.mxu0 0
      %822 = vmatpush1.bf16.msra.mxu0 %v764
      %823 = vmatprep.subr.bf16.mxu0 0
      %824 = vmatpush1.bf16.msra.mxu0 %v765
      %825 = vmatprep.subr.bf16.mxu0 0
      %826 = vmatpush1.bf16.msra.mxu0 %v766
      %827 = vmatprep.subr.bf16.mxu0 0
      %828 = vmatpush1.bf16.msra.mxu0 %v767
      %829 = vmatprep.subr.bf16.mxu0 0
      %830 = vmatpush1.bf16.msra.mxu0 %v768
      %831 = vmatprep.subr.bf16.mxu0 0
      %832 = vmatpush1.bf16.msra.mxu0 %v769
      %833 = vmatprep.subr.bf16.mxu0 0
      %834 = vmatpush1.bf16.msra.mxu0 %v770
      %835 = vmatprep.mubr.bf16.mxu0 %v636
      %836 = vmatmul.mubr.bf16.gmra.mrb[0].mxu0 %v635
      %v837 = vpop.f32.mrb[0].mxu0
      %v838 = vadd.f32 0.0, %v837
      %v839 = vpop.f32.mrb[0].mxu0
      %v840 = vpop.f32.mrb[0].mxu0
      %v841 = vadd.f32 0.0, %v840
      %v842 = vpop.f32.mrb[0].mxu0
      %843 = vmatprep.mubr.bf16.mxu0 %v639
      %844 = vmatmul.mubr.bf16.gmra.mrb[0].mxu0 %v638
      %v845 = vpop.f32.mrb[0].mxu0
      %v846 = vadd.f32 0.0, %v845
      %v847 = vpop.f32.mrb[0].mxu0
      %v848 = vpop.f32.mrb[0].mxu0
      %v849 = vadd.f32 0.0, %v848
      %v850 = vpop.f32.mrb[0].mxu0
      %851 = vmatprep.mubr.bf16.mxu0 %v642
      %852 = vmatmul.mubr.bf16.gmra.mrb[0].mxu0 %v641
      %v853 = vpop.f32.mrb[0].mxu0
      %v854 = vadd.f32 0.0, %v853
      %v855 = vpop.f32.mrb[0].mxu0
      %v856 = vpop.f32.mrb[0].mxu0
      %v857 = vadd.f32 0.0, %v856
      %v858 = vpop.f32.mrb[0].mxu0
      %859 = vmatprep.mubr.bf16.mxu0 %v645
      %860 = vmatmul.mubr.bf16.gmra.mrb[0].mxu0 %v644
      %v861 = vpop.f32.mrb[0].mxu0
      %v862 = vadd.f32 0.0, %v861
      %v863 = vpop.f32.mrb[0].mxu0
      %v864 = vpop.f32.mrb[0].mxu0
      %v865 = vadd.f32 0.0, %v864
      %v866 = vpop.f32.mrb[0].mxu0
      %867 = vdwg.mxu0
      %868 = vmatprep.subr.bf16.mxu0 0
      %869 = vmatpush1.bf16.msra.mxu0 %v771
      %870 = vmatprep.subr.bf16.mxu0 0
      %871 = vmatpush1.bf16.msra.mxu0 %v772
      %872 = vmatprep.subr.bf16.mxu0 0
      %873 = vmatpush1.bf16.msra.mxu0 %v773
      %874 = vmatprep.subr.bf16.mxu0 0
      %875 = vmatpush1.bf16.msra.mxu0 %v774
      %876 = vmatprep.subr.bf16.mxu0 0
      %877 = vmatpush1.bf16.msra.mxu0 %v775
      %878 = vmatprep.subr.bf16.mxu0 0
      %879 = vmatpush1.bf16.msra.mxu0 %v776
      %880 = vmatprep.subr.bf16.mxu0 0
      %881 = vmatpush1.bf16.msra.mxu0 %v777
      %882 = vmatprep.subr.bf16.mxu0 0
      %883 = vmatpush1.bf16.msra.mxu0 %v778
      %884 = vmatprep.subr.bf16.mxu0 0
      %885 = vmatpush1.bf16.msra.mxu0 0
      %886 = vmatprep.subr.bf16.mxu0 0
      %887 = vmatpush1.bf16.msra.mxu0 0
      %888 = vmatprep.subr.bf16.mxu0 0
      %889 = vmatpush1.bf16.msra.mxu0 0
      %890 = vmatprep.subr.bf16.mxu0 0
      %891 = vmatpush1.bf16.msra.mxu0 0
      %892 = vmatprep.subr.bf16.mxu0 0
      %893 = vmatpush1.bf16.msra.mxu0 0
      %894 = vmatprep.subr.bf16.mxu0 0
      %895 = vmatpush1.bf16.msra.mxu0 0
      %896 = vmatprep.subr.bf16.mxu0 0
      %897 = vmatpush1.bf16.msra.mxu0 0
      %898 = vmatprep.subr.bf16.mxu0 0
      %899 = vmatpush1.bf16.msra.mxu0 0
      %900 = vmatprep.mubr.bf16.mxu0 0
      %901 = vmatmul.mubr.bf16.gmra.mrb[0].mxu0 %v637
      %v902 = vpop.f32.mrb[0].mxu0
      %v903 = vadd.f32 %v838, %v902
      %v904 = vpop.f32.mrb[0].mxu0
      %v905 = vpop.f32.mrb[0].mxu0
      %v906 = vadd.f32 %v841, %v905
      %v907 = vpop.f32.mrb[0].mxu0
      %908 = vmatprep.mubr.bf16.mxu0 0
      %909 = vmatmul.mubr.bf16.gmra.mrb[0].mxu0 %v640
      %v910 = vpop.f32.mrb[0].mxu0
      %v911 = vadd.f32 %v846, %v910
      %v912 = vpop.f32.mrb[0].mxu0
      %v913 = vpop.f32.mrb[0].mxu0
      %v914 = vadd.f32 %v849, %v913
      %v915 = vpop.f32.mrb[0].mxu0
      %916 = vmatprep.mubr.bf16.mxu0 0
      %917 = vmatmul.mubr.bf16.gmra.mrb[0].mxu0 %v643
      %v918 = vpop.f32.mrb[0].mxu0
      %v919 = vadd.f32 %v854, %v918
      %v920 = vpop.f32.mrb[0].mxu0
      %v921 = vpop.f32.mrb[0].mxu0
      %v922 = vadd.f32 %v857, %v921
      %v923 = vpop.f32.mrb[0].mxu0
      %924 = vmatprep.mubr.bf16.mxu0 0
      %925 = vmatmul.mubr.bf16.gmra.mrb[0].mxu0 %v646
      %v926 = vpop.f32.mrb[0].mxu0
      %v927 = vadd.f32 %v862, %v926
      %v928 = vpop.f32.mrb[0].mxu0
      %v929 = vpop.f32.mrb[0].mxu0
      %v930 = vadd.f32 %v865, %v929
      %v931 = vpop.f32.mrb[0].mxu0
      %932 = vdwg.mxu0
      %v933 = vadd.f32 %v579, %v903
      %v934 = vadd.f32 %v580, %v906
      %v935 = vadd.f32 %v581, %v911
      %v936 = vadd.f32 %v582, %v914
      %v937 = vadd.f32 %v583, %v919
      %v938 = vadd.f32 %v584, %v922
      %v939 = vadd.f32 %v585, %v927
      %v940 = vadd.f32 %v586, %v930
      %941 = vst [vmem:[#allocation2] sm:$0xff] %v933
      %942 = vst [vmem:[#allocation2 + $0x8] sm:$0xff] %v934
      %943 = vst [vmem:[#allocation2 + $0x10] sm:$0xff] %v935
      %944 = vst [vmem:[#allocation2 + $0x18] sm:$0xff] %v936
      %945 = vst [vmem:[#allocation2 + $0x20] sm:$0xff] %v937
      %946 = vst [vmem:[#allocation2 + $0x28] sm:$0xff] %v938
      %947 = vst [vmem:[#allocation2 + $0x30] sm:$0xff] %v939
      %948 = vst [vmem:[#allocation2 + $0x38] sm:$0xff] %v940
      %v949 = vunpack.c.l.b16 %v515
      %v950 = vunpack.c.l.b16 %v561
      %v951 = vld [vmem:[#allocation2] sm:$0xff]
      %v952 = vld [vmem:[#allocation2 + $0x8] sm:$0xff]
      %v953 = vld [vmem:[#allocation2 + $0x10] sm:$0xff]
      %v954 = vld [vmem:[#allocation2 + $0x18] sm:$0xff]
      %v955 = vld [vmem:[#allocation2 + $0x20] sm:$0xff]
      %v956 = vld [vmem:[#allocation2 + $0x28] sm:$0xff]
      %v957 = vld [vmem:[#allocation2 + $0x30] sm:$0xff]
      %v958 = vld [vmem:[#allocation2 + $0x38] sm:$0xff]
      %s959 = scalar_lea.vmem %s3, 192
      %v960 = vld [vmem:[%s959] sm:$0xf]
      %v961 = vld [vmem:[%s959 + $0x4] sm:$0xf]
      %v962 = vld [vmem:[%s959 + $0x8] sm:$0xf]
      %v963 = vld [vmem:[%s959 + $0xc] sm:$0xf]
      %v964 = vld [vmem:[%s959 + $0x10] sm:$0xf]
      %v965 = vld [vmem:[%s959 + $0x14] sm:$0xf]
      %v966 = vld [vmem:[%s959 + $0x18] sm:$0xf]
      %v967 = vld [vmem:[%s959 + $0x1c] sm:$0xf]
      %v968 = vld [vmem:[%s959 + $0x20] sm:$0xf]
      %v969 = vld [vmem:[%s959 + $0x24] sm:$0xf]
      %v970 = vld [vmem:[%s959 + $0x28] sm:$0xf]
      %v971 = vld [vmem:[%s959 + $0x2c] sm:$0xf]
      %v972 = vld [vmem:[%s959 + $0x30] sm:$0xf]
      %v973 = vld [vmem:[%s959 + $0x34] sm:$0xf]
      %v974 = vld [vmem:[%s959 + $0x38] sm:$0xf]
      %v975 = vld [vmem:[%s959 + $0x3c] sm:$0xf]
      %v976 = vld [vmem:[%s959 + $0x40] sm:$0xf]
      %v977 = vld [vmem:[%s959 + $0x44] sm:$0xf]
      %v978 = vld [vmem:[%s959 + $0x48] sm:$0xf]
      %v979 = vld [vmem:[%s959 + $0x4c] sm:$0xf]
      %v980 = vld [vmem:[%s959 + $0x50] sm:$0xf]
      %v981 = vld [vmem:[%s959 + $0x54] sm:$0xf]
      %v982 = vld [vmem:[%s959 + $0x58] sm:$0xf]
      %v983 = vld [vmem:[%s959 + $0x5c] sm:$0xf]
      %v984 = vld [vmem:[%s959 + $0x60] sm:$0xf]
      %v985 = vld [vmem:[%s959 + $0x64] sm:$0xf]
      %v986 = vld [vmem:[%s959 + $0x68] sm:$0xf]
      %v987 = vld [vmem:[%s959 + $0x6c] sm:$0xf]
      %v988 = vld [vmem:[%s959 + $0x70] sm:$0xf]
      %v989 = vld [vmem:[%s959 + $0x74] sm:$0xf]
      %v990 = vld [vmem:[%s959 + $0x78] sm:$0xf]
      %v991 = vld [vmem:[%s959 + $0x7c] sm:$0xf]
      %v992 = vld [vmem:[%s959 + $0x80] sm:$0xf]
      %v993 = vld [vmem:[%s959 + $0x84] sm:$0xf]
      %v994 = vld [vmem:[%s959 + $0x88] sm:$0xf]
      %v995 = vld [vmem:[%s959 + $0x8c] sm:$0xf]
      %v996 = vld [vmem:[%s959 + $0x90] sm:$0xf]
      %v997 = vld [vmem:[%s959 + $0x94] sm:$0xf]
      %v998 = vld [vmem:[%s959 + $0x98] sm:$0xf]
      %v999 = vld [vmem:[%s959 + $0x9c] sm:$0xf]
      %v1000 = vld [vmem:[%s959 + $0xa0] sm:$0xf]
      %v1001 = vld [vmem:[%s959 + $0xa4] sm:$0xf]
      %v1002 = vld [vmem:[%s959 + $0xa8] sm:$0xf]
      %v1003 = vld [vmem:[%s959 + $0xac] sm:$0xf]
      %v1004 = vld [vmem:[%s959 + $0xb0] sm:$0xf]
      %v1005 = vld [vmem:[%s959 + $0xb4] sm:$0xf]
      %v1006 = vld [vmem:[%s959 + $0xb8] sm:$0xf]
      %v1007 = vld [vmem:[%s959 + $0xbc] sm:$0xf]
      %v1008 = vpack.c.b16 %v427, %v425
      %v1009 = vpack.c.b16 %v567, %v565
      %v1010 = vpack.c.b16 %v568, %v566
      %v1011 = vpack.c.b16 %v431, %v429
      %v1012 = vpack.c.b16 %v571, %v569
      %v1013 = vpack.c.b16 %v572, %v570
      %v1014 = vpack.c.b16 %v435, %v433
      %v1015 = vpack.c.b16 %v575, %v573
      %v1016 = vpack.c.b16 %v576, %v574
      %v1017 = vpack.c.b16 %v439, %v437
      %v1018 = vpack.c.b16 %v949, %v577
      %v1019 = vpack.c.b16 %v950, %v578
      %v1080 = vunpack.c.l.b16 %v960
      %v1081 = vunpack.c.l.b16 %v961
      %v1082 = vunpack.c.l.b16 %v962
      %v1083 = vunpack.c.l.b16 %v963
      %v1084 = vunpack.c.l.b16 %v964
      %v1085 = vunpack.c.l.b16 %v965
      %v1086 = vunpack.c.l.b16 %v966
      %v1087 = vunpack.c.l.b16 %v967
      %v1088 = vunpack.c.l.b16 %v968
      %v1089 = vunpack.c.l.b16 %v969
      %v1090 = vunpack.c.l.b16 %v970
      %v1091 = vunpack.c.l.b16 %v971
      %v1092 = vunpack.c.l.b16 %v972
      %v1093 = vunpack.c.l.b16 %v973
      %v1094 = vunpack.c.l.b16 %v974
      %v1095 = vunpack.c.l.b16 %v975
      %v1096 = vunpack.c.l.b16 %v976
      %v1097 = vunpack.c.l.b16 %v977
      %v1098 = vunpack.c.l.b16 %v978
      %v1099 = vunpack.c.l.b16 %v979
      %v1100 = vunpack.c.l.b16 %v980
      %v1101 = vunpack.c.l.b16 %v981
      %v1102 = vunpack.c.l.b16 %v982
      %v1103 = vunpack.c.l.b16 %v983
      %v1104 = vunpack.c.l.b16 %v984
      %v1105 = vunpack.c.l.b16 %v985
      %v1106 = vunpack.c.l.b16 %v986
      %v1107 = vunpack.c.l.b16 %v987
      %v1108 = vunpack.c.l.b16 %v988
      %v1109 = vunpack.c.l.b16 %v989
      %v1110 = vunpack.c.l.b16 %v990
      %v1111 = vunpack.c.l.b16 %v991
      %v1112 = vunpack.c.l.b16 %v992
      %v1113 = vunpack.c.l.b16 %v993
      %v1114 = vunpack.c.l.b16 %v994
      %v1115 = vunpack.c.l.b16 %v995
      %v1116 = vunpack.c.l.b16 %v996
      %v1117 = vunpack.c.l.b16 %v997
      %v1118 = vunpack.c.l.b16 %v998
      %v1119 = vunpack.c.l.b16 %v999
      %v1120 = vunpack.c.l.b16 %v1000
      %v1121 = vunpack.c.l.b16 %v1001
      %v1122 = vunpack.c.l.b16 %v1002
      %v1123 = vunpack.c.l.b16 %v1003
      %v1124 = vunpack.c.l.b16 %v1004
      %v1125 = vunpack.c.l.b16 %v1005
      %v1126 = vunpack.c.l.b16 %v1006
      %v1127 = vunpack.c.l.b16 %v1007
      %v1128 = vpack.c.b16 %v1081, %v1080
      %v1129 = vpack.c.b16 %v1083, %v1082
      %v1130 = vpack.c.b16 %v1085, %v1084
      %v1131 = vpack.c.b16 %v1087, %v1086
      %v1132 = vpack.c.b16 %v1089, %v1088
      %v1133 = vpack.c.b16 %v1091, %v1090
      %v1134 = vpack.c.b16 %v1093, %v1092
      %v1135 = vpack.c.b16 %v1095, %v1094
      %v1136 = vpack.c.b16 %v1097, %v1096
      %v1137 = vpack.c.b16 %v1099, %v1098
      %v1138 = vpack.c.b16 %v1101, %v1100
      %v1139 = vpack.c.b16 %v1103, %v1102
      %v1140 = vpack.c.b16 %v1105, %v1104
      %v1141 = vpack.c.b16 %v1107, %v1106
      %v1142 = vpack.c.b16 %v1109, %v1108
      %v1143 = vpack.c.b16 %v1111, %v1110
      %v1144 = vpack.c.b16 %v1113, %v1112
      %v1145 = vpack.c.b16 %v1115, %v1114
      %v1146 = vpack.c.b16 %v1117, %v1116
      %v1147 = vpack.c.b16 %v1119, %v1118
      %v1148 = vpack.c.b16 %v1121, %v1120
      %v1149 = vpack.c.b16 %v1123, %v1122
      %v1150 = vpack.c.b16 %v1125, %v1124
      %v1151 = vpack.c.b16 %v1127, %v1126
      %1176 = vmatprep.subr.bf16.mxu0 0
      %1177 = vmatpush1.bf16.msra.mxu0 %v1128
      %1178 = vmatprep.subr.bf16.mxu0 0
      %1179 = vmatpush1.bf16.msra.mxu0 %v1129
      %1180 = vmatprep.subr.bf16.mxu0 0
      %1181 = vmatpush1.bf16.msra.mxu0 %v1130
      %1182 = vmatprep.subr.bf16.mxu0 0
      %1183 = vmatpush1.bf16.msra.mxu0 %v1131
      %1184 = vmatprep.subr.bf16.mxu0 0
      %1185 = vmatpush1.bf16.msra.mxu0 %v1132
      %1186 = vmatprep.subr.bf16.mxu0 0
      %1187 = vmatpush1.bf16.msra.mxu0 %v1133
      %1188 = vmatprep.subr.bf16.mxu0 0
      %1189 = vmatpush1.bf16.msra.mxu0 %v1134
      %1190 = vmatprep.subr.bf16.mxu0 0
      %1191 = vmatpush1.bf16.msra.mxu0 %v1135
      %1192 = vmatprep.subr.bf16.mxu0 0
      %1193 = vmatpush1.bf16.msra.mxu0 %v1136
      %1194 = vmatprep.subr.bf16.mxu0 0
      %1195 = vmatpush1.bf16.msra.mxu0 %v1137
      %1196 = vmatprep.subr.bf16.mxu0 0
      %1197 = vmatpush1.bf16.msra.mxu0 %v1138
      %1198 = vmatprep.subr.bf16.mxu0 0
      %1199 = vmatpush1.bf16.msra.mxu0 %v1139
      %1200 = vmatprep.subr.bf16.mxu0 0
      %1201 = vmatpush1.bf16.msra.mxu0 %v1140
      %1202 = vmatprep.subr.bf16.mxu0 0
      %1203 = vmatpush1.bf16.msra.mxu0 %v1141
      %1204 = vmatprep.subr.bf16.mxu0 0
      %1205 = vmatpush1.bf16.msra.mxu0 %v1142
      %1206 = vmatprep.subr.bf16.mxu0 0
      %1207 = vmatpush1.bf16.msra.mxu0 %v1143
      %1208 = vmatprep.mubr.bf16.mxu0 %v1009
      %1209 = vmatmul.mubr.bf16.gmra.mrb[0].mxu0 %v1008
      %v1210 = vpop.f32.mrb[0].mxu0
      %v1211 = vadd.f32 0.0, %v1210
      %v1212 = vpop.f32.mrb[0].mxu0
      %v1213 = vpop.f32.mrb[0].mxu0
      %v1214 = vadd.f32 0.0, %v1213
      %v1215 = vpop.f32.mrb[0].mxu0
      %1216 = vmatprep.mubr.bf16.mxu0 %v1012
      %1217 = vmatmul.mubr.bf16.gmra.mrb[0].mxu0 %v1011
      %v1218 = vpop.f32.mrb[0].mxu0
      %v1219 = vadd.f32 0.0, %v1218
      %v1220 = vpop.f32.mrb[0].mxu0
      %v1221 = vpop.f32.mrb[0].mxu0
      %v1222 = vadd.f32 0.0, %v1221
      %v1223 = vpop.f32.mrb[0].mxu0
      %1224 = vmatprep.mubr.bf16.mxu0 %v1015
      %1225 = vmatmul.mubr.bf16.gmra.mrb[0].mxu0 %v1014
      %v1226 = vpop.f32.mrb[0].mxu0
      %v1227 = vadd.f32 0.0, %v1226
      %v1228 = vpop.f32.mrb[0].mxu0
      %v1229 = vpop.f32.mrb[0].mxu0
      %v1230 = vadd.f32 0.0, %v1229
      %v1231 = vpop.f32.mrb[0].mxu0
      %1232 = vmatprep.mubr.bf16.mxu0 %v1018
      %1233 = vmatmul.mubr.bf16.gmra.mrb[0].mxu0 %v1017
      %v1234 = vpop.f32.mrb[0].mxu0
      %v1235 = vadd.f32 0.0, %v1234
      %v1236 = vpop.f32.mrb[0].mxu0
      %v1237 = vpop.f32.mrb[0].mxu0
      %v1238 = vadd.f32 0.0, %v1237
      %v1239 = vpop.f32.mrb[0].mxu0
      %1240 = vdwg.mxu0
      %1241 = vmatprep.subr.bf16.mxu0 0
      %1242 = vmatpush1.bf16.msra.mxu0 %v1144
      %1243 = vmatprep.subr.bf16.mxu0 0
      %1244 = vmatpush1.bf16.msra.mxu0 %v1145
      %1245 = vmatprep.subr.bf16.mxu0 0
      %1246 = vmatpush1.bf16.msra.mxu0 %v1146
      %1247 = vmatprep.subr.bf16.mxu0 0
      %1248 = vmatpush1.bf16.msra.mxu0 %v1147
      %1249 = vmatprep.subr.bf16.mxu0 0
      %1250 = vmatpush1.bf16.msra.mxu0 %v1148
      %1251 = vmatprep.subr.bf16.mxu0 0
      %1252 = vmatpush1.bf16.msra.mxu0 %v1149
      %1253 = vmatprep.subr.bf16.mxu0 0
      %1254 = vmatpush1.bf16.msra.mxu0 %v1150
      %1255 = vmatprep.subr.bf16.mxu0 0
      %1256 = vmatpush1.bf16.msra.mxu0 %v1151
      %1257 = vmatprep.subr.bf16.mxu0 0
      %1258 = vmatpush1.bf16.msra.mxu0 0
      %1259 = vmatprep.subr.bf16.mxu0 0
      %1260 = vmatpush1.bf16.msra.mxu0 0
      %1261 = vmatprep.subr.bf16.mxu0 0
      %1262 = vmatpush1.bf16.msra.mxu0 0
      %1263 = vmatprep.subr.bf16.mxu0 0
      %1264 = vmatpush1.bf16.msra.mxu0 0
      %1265 = vmatprep.subr.bf16.mxu0 0
      %1266 = vmatpush1.bf16.msra.mxu0 0
      %1267 = vmatprep.subr.bf16.mxu0 0
      %1268 = vmatpush1.bf16.msra.mxu0 0
      %1269 = vmatprep.subr.bf16.mxu0 0
      %1270 = vmatpush1.bf16.msra.mxu0 0
      %1271 = vmatprep.subr.bf16.mxu0 0
      %1272 = vmatpush1.bf16.msra.mxu0 0
      %1273 = vmatprep.mubr.bf16.mxu0 0
      %1274 = vmatmul.mubr.bf16.gmra.mrb[0].mxu0 %v1010
      %v1275 = vpop.f32.mrb[0].mxu0
      %v1276 = vadd.f32 %v1211, %v1275
      %v1277 = vpop.f32.mrb[0].mxu0
      %v1278 = vpop.f32.mrb[0].mxu0
      %v1279 = vadd.f32 %v1214, %v1278
      %v1280 = vpop.f32.mrb[0].mxu0
      %1281 = vmatprep.mubr.bf16.mxu0 0
      %1282 = vmatmul.mubr.bf16.gmra.mrb[0].mxu0 %v1013
      %v1283 = vpop.f32.mrb[0].mxu0
      %v1284 = vadd.f32 %v1219, %v1283
      %v1285 = vpop.f32.mrb[0].mxu0
      %v1286 = vpop.f32.mrb[0].mxu0
      %v1287 = vadd.f32 %v1222, %v1286
      %v1288 = vpop.f32.mrb[0].mxu0
      %1289 = vmatprep.mubr.bf16.mxu0 0
      %1290 = vmatmul.mubr.bf16.gmra.mrb[0].mxu0 %v1016
      %v1291 = vpop.f32.mrb[0].mxu0
      %v1292 = vadd.f32 %v1227, %v1291
      %v1293 = vpop.f32.mrb[0].mxu0
      %v1294 = vpop.f32.mrb[0].mxu0
      %v1295 = vadd.f32 %v1230, %v1294
      %v1296 = vpop.f32.mrb[0].mxu0
      %1297 = vmatprep.mubr.bf16.mxu0 0
      %1298 = vmatmul.mubr.bf16.gmra.mrb[0].mxu0 %v1019
      %v1299 = vpop.f32.mrb[0].mxu0
      %v1300 = vadd.f32 %v1235, %v1299
      %v1301 = vpop.f32.mrb[0].mxu0
      %v1302 = vpop.f32.mrb[0].mxu0
      %v1303 = vadd.f32 %v1238, %v1302
      %v1304 = vpop.f32.mrb[0].mxu0
      %1305 = vdwg.mxu0
      %v1306 = vadd.f32 %v951, %v1276
      %v1307 = vadd.f32 %v952, %v1279
      %v1308 = vadd.f32 %v953, %v1284
      %v1309 = vadd.f32 %v954, %v1287
      %v1310 = vadd.f32 %v955, %v1292
      %v1311 = vadd.f32 %v956, %v1295
      %v1312 = vadd.f32 %v957, %v1300
      %v1313 = vadd.f32 %v958, %v1303
      %1314 = vst [vmem:[#allocation2] sm:$0xff] %v1306
      %1315 = vst [vmem:[#allocation2 + $0x8] sm:$0xff] %v1307
      %1316 = vst [vmem:[#allocation2 + $0x10] sm:$0xff] %v1308
      %1317 = vst [vmem:[#allocation2 + $0x18] sm:$0xff] %v1309
      %1318 = vst [vmem:[#allocation2 + $0x20] sm:$0xff] %v1310
      %1319 = vst [vmem:[#allocation2 + $0x28] sm:$0xff] %v1311
      %1320 = vst [vmem:[#allocation2 + $0x30] sm:$0xff] %v1312
      %1321 = vst [vmem:[#allocation2 + $0x38] sm:$0xff] %v1313
      %v1322 = vunpack.c.l.b16 %v522
      %v1323 = vunpack.c.l.b16 %v562
      %v1324 = vld [vmem:[#allocation2] sm:$0xff]
      %v1325 = vld [vmem:[#allocation2 + $0x8] sm:$0xff]
      %v1326 = vld [vmem:[#allocation2 + $0x10] sm:$0xff]
      %v1327 = vld [vmem:[#allocation2 + $0x18] sm:$0xff]
      %v1328 = vld [vmem:[#allocation2 + $0x20] sm:$0xff]
      %v1329 = vld [vmem:[#allocation2 + $0x28] sm:$0xff]
      %v1330 = vld [vmem:[#allocation2 + $0x30] sm:$0xff]
      %v1331 = vld [vmem:[#allocation2 + $0x38] sm:$0xff]
      %s1332 = scalar_lea.vmem %s3, 384
      %v1333 = vld [vmem:[%s1332] sm:$0xf]
      %v1334 = vld [vmem:[%s1332 + $0x4] sm:$0xf]
      %v1335 = vld [vmem:[%s1332 + $0x8] sm:$0xf]
      %v1336 = vld [vmem:[%s1332 + $0xc] sm:$0xf]
      %v1337 = vld [vmem:[%s1332 + $0x10] sm:$0xf]
      %v1338 = vld [vmem:[%s1332 + $0x14] sm:$0xf]
      %v1339 = vld [vmem:[%s1332 + $0x18] sm:$0xf]
      %v1340 = vld [vmem:[%s1332 + $0x1c] sm:$0xf]
      %v1341 = vld [vmem:[%s1332 + $0x20] sm:$0xf]
      %v1342 = vld [vmem:[%s1332 + $0x24] sm:$0xf]
      %v1343 = vld [vmem:[%s1332 + $0x28] sm:$0xf]
      %v1344 = vld [vmem:[%s1332 + $0x2c] sm:$0xf]
      %v1345 = vld [vmem:[%s1332 + $0x30] sm:$0xf]
      %v1346 = vld [vmem:[%s1332 + $0x34] sm:$0xf]
      %v1347 = vld [vmem:[%s1332 + $0x38] sm:$0xf]
      %v1348 = vld [vmem:[%s1332 + $0x3c] sm:$0xf]
      %v1349 = vld [vmem:[%s1332 + $0x40] sm:$0xf]
      %v1350 = vld [vmem:[%s1332 + $0x44] sm:$0xf]
      %v1351 = vld [vmem:[%s1332 + $0x48] sm:$0xf]
      %v1352 = vld [vmem:[%s1332 + $0x4c] sm:$0xf]
      %v1353 = vld [vmem:[%s1332 + $0x50] sm:$0xf]
      %v1354 = vld [vmem:[%s1332 + $0x54] sm:$0xf]
      %v1355 = vld [vmem:[%s1332 + $0x58] sm:$0xf]
      %v1356 = vld [vmem:[%s1332 + $0x5c] sm:$0xf]
      %v1357 = vld [vmem:[%s1332 + $0x60] sm:$0xf]
      %v1358 = vld [vmem:[%s1332 + $0x64] sm:$0xf]
      %v1359 = vld [vmem:[%s1332 + $0x68] sm:$0xf]
      %v1360 = vld [vmem:[%s1332 + $0x6c] sm:$0xf]
      %v1361 = vld [vmem:[%s1332 + $0x70] sm:$0xf]
      %v1362 = vld [vmem:[%s1332 + $0x74] sm:$0xf]
      %v1363 = vld [vmem:[%s1332 + $0x78] sm:$0xf]
      %v1364 = vld [vmem:[%s1332 + $0x7c] sm:$0xf]
      %v1365 = vld [vmem:[%s1332 + $0x80] sm:$0xf]
      %v1366 = vld [vmem:[%s1332 + $0x84] sm:$0xf]
      %v1367 = vld [vmem:[%s1332 + $0x88] sm:$0xf]
      %v1368 = vld [vmem:[%s1332 + $0x8c] sm:$0xf]
      %v1369 = vld [vmem:[%s1332 + $0x90] sm:$0xf]
      %v1370 = vld [vmem:[%s1332 + $0x94] sm:$0xf]
      %v1371 = vld [vmem:[%s1332 + $0x98] sm:$0xf]
      %v1372 = vld [vmem:[%s1332 + $0x9c] sm:$0xf]
      %v1373 = vld [vmem:[%s1332 + $0xa0] sm:$0xf]
      %v1374 = vld [vmem:[%s1332 + $0xa4] sm:$0xf]
      %v1375 = vld [vmem:[%s1332 + $0xa8] sm:$0xf]
      %v1376 = vld [vmem:[%s1332 + $0xac] sm:$0xf]
      %v1377 = vld [vmem:[%s1332 + $0xb0] sm:$0xf]
      %v1378 = vld [vmem:[%s1332 + $0xb4] sm:$0xf]
      %v1379 = vld [vmem:[%s1332 + $0xb8] sm:$0xf]
      %v1380 = vld [vmem:[%s1332 + $0xbc] sm:$0xf]
      %v1381 = vpack.c.b16 %v441, %v439
      %v1382 = vpack.c.b16 %v1322, %v949
      %v1383 = vpack.c.b16 %v1323, %v950
      %v1435 = vunpack.c.l.b16 %v1333
      %v1436 = vunpack.c.l.b16 %v1334
      %v1437 = vunpack.c.l.b16 %v1335
      %v1438 = vunpack.c.l.b16 %v1336
      %v1439 = vunpack.c.l.b16 %v1337
      %v1440 = vunpack.c.l.b16 %v1338
      %v1441 = vunpack.c.l.b16 %v1339
      %v1442 = vunpack.c.l.b16 %v1340
      %v1443 = vunpack.c.l.b16 %v1341
      %v1444 = vunpack.c.l.b16 %v1342
      %v1445 = vunpack.c.l.b16 %v1343
      %v1446 = vunpack.c.l.b16 %v1344
      %v1447 = vunpack.c.l.b16 %v1345
      %v1448 = vunpack.c.l.b16 %v1346
      %v1449 = vunpack.c.l.b16 %v1347
      %v1450 = vunpack.c.l.b16 %v1348
      %v1451 = vunpack.c.l.b16 %v1349
      %v1452 = vunpack.c.l.b16 %v1350
      %v1453 = vunpack.c.l.b16 %v1351
      %v1454 = vunpack.c.l.b16 %v1352
      %v1455 = vunpack.c.l.b16 %v1353
      %v1456 = vunpack.c.l.b16 %v1354
      %v1457 = vunpack.c.l.b16 %v1355
      %v1458 = vunpack.c.l.b16 %v1356
      %v1459 = vunpack.c.l.b16 %v1357
      %v1460 = vunpack.c.l.b16 %v1358
      %v1461 = vunpack.c.l.b16 %v1359
      %v1462 = vunpack.c.l.b16 %v1360
      %v1463 = vunpack.c.l.b16 %v1361
      %v1464 = vunpack.c.l.b16 %v1362
      %v1465 = vunpack.c.l.b16 %v1363
      %v1466 = vunpack.c.l.b16 %v1364
      %v1467 = vunpack.c.l.b16 %v1365
      %v1468 = vunpack.c.l.b16 %v1366
      %v1469 = vunpack.c.l.b16 %v1367
      %v1470 = vunpack.c.l.b16 %v1368
      %v1471 = vunpack.c.l.b16 %v1369
      %v1472 = vunpack.c.l.b16 %v1370
      %v1473 = vunpack.c.l.b16 %v1371
      %v1474 = vunpack.c.l.b16 %v1372
      %v1475 = vunpack.c.l.b16 %v1373
      %v1476 = vunpack.c.l.b16 %v1374
      %v1477 = vunpack.c.l.b16 %v1375
      %v1478 = vunpack.c.l.b16 %v1376
      %v1479 = vunpack.c.l.b16 %v1377
      %v1480 = vunpack.c.l.b16 %v1378
      %v1481 = vunpack.c.l.b16 %v1379
      %v1482 = vunpack.c.l.b16 %v1380
      %v1483 = vpack.c.b16 %v1436, %v1435
      %v1484 = vpack.c.b16 %v1438, %v1437
      %v1485 = vpack.c.b16 %v1440, %v1439
      %v1486 = vpack.c.b16 %v1442, %v1441
      %v1487 = vpack.c.b16 %v1444, %v1443
      %v1488 = vpack.c.b16 %v1446, %v1445
      %v1489 = vpack.c.b16 %v1448, %v1447
      %v1490 = vpack.c.b16 %v1450, %v1449
      %v1491 = vpack.c.b16 %v1452, %v1451
      %v1492 = vpack.c.b16 %v1454, %v1453
      %v1493 = vpack.c.b16 %v1456, %v1455
      %v1494 = vpack.c.b16 %v1458, %v1457
      %v1495 = vpack.c.b16 %v1460, %v1459
      %v1496 = vpack.c.b16 %v1462, %v1461
      %v1497 = vpack.c.b16 %v1464, %v1463
      %v1498 = vpack.c.b16 %v1466, %v1465
      %v1499 = vpack.c.b16 %v1468, %v1467
      %v1500 = vpack.c.b16 %v1470, %v1469
      %v1501 = vpack.c.b16 %v1472, %v1471
      %v1502 = vpack.c.b16 %v1474, %v1473
      %v1503 = vpack.c.b16 %v1476, %v1475
      %v1504 = vpack.c.b16 %v1478, %v1477
      %v1505 = vpack.c.b16 %v1480, %v1479
      %v1506 = vpack.c.b16 %v1482, %v1481
      %1531 = vmatprep.subr.bf16.mxu0 0
      %1532 = vmatpush1.bf16.msra.mxu0 %v1483
      %1533 = vmatprep.subr.bf16.mxu0 0
      %1534 = vmatpush1.bf16.msra.mxu0 %v1484
      %1535 = vmatprep.subr.bf16.mxu0 0
      %1536 = vmatpush1.bf16.msra.mxu0 %v1485
      %1537 = vmatprep.subr.bf16.mxu0 0
      %1538 = vmatpush1.bf16.msra.mxu0 %v1486
      %1539 = vmatprep.subr.bf16.mxu0 0
      %1540 = vmatpush1.bf16.msra.mxu0 %v1487
      %1541 = vmatprep.subr.bf16.mxu0 0
      %1542 = vmatpush1.bf16.msra.mxu0 %v1488
      %1543 = vmatprep.subr.bf16.mxu0 0
      %1544 = vmatpush1.bf16.msra.mxu0 %v1489
      %1545 = vmatprep.subr.bf16.mxu0 0
      %1546 = vmatpush1.bf16.msra.mxu0 %v1490
      %1547 = vmatprep.subr.bf16.mxu0 0
      %1548 = vmatpush1.bf16.msra.mxu0 %v1491
      %1549 = vmatprep.subr.bf16.mxu0 0
      %1550 = vmatpush1.bf16.msra.mxu0 %v1492
      %1551 = vmatprep.subr.bf16.mxu0 0
      %1552 = vmatpush1.bf16.msra.mxu0 %v1493
      %1553 = vmatprep.subr.bf16.mxu0 0
      %1554 = vmatpush1.bf16.msra.mxu0 %v1494
      %1555 = vmatprep.subr.bf16.mxu0 0
      %1556 = vmatpush1.bf16.msra.mxu0 %v1495
      %1557 = vmatprep.subr.bf16.mxu0 0
      %1558 = vmatpush1.bf16.msra.mxu0 %v1496
      %1559 = vmatprep.subr.bf16.mxu0 0
      %1560 = vmatpush1.bf16.msra.mxu0 %v1497
      %1561 = vmatprep.subr.bf16.mxu0 0
      %1562 = vmatpush1.bf16.msra.mxu0 %v1498
      %1563 = vmatprep.mubr.bf16.mxu0 %v639
      %1564 = vmatmul.mubr.bf16.gmra.mrb[0].mxu0 %v638
      %v1565 = vpop.f32.mrb[0].mxu0
      %v1566 = vadd.f32 0.0, %v1565
      %v1567 = vpop.f32.mrb[0].mxu0
      %v1568 = vpop.f32.mrb[0].mxu0
      %v1569 = vadd.f32 0.0, %v1568
      %v1570 = vpop.f32.mrb[0].mxu0
      %1571 = vmatprep.mubr.bf16.mxu0 %v642
      %1572 = vmatmul.mubr.bf16.gmra.mrb[0].mxu0 %v641
      %v1573 = vpop.f32.mrb[0].mxu0
      %v1574 = vadd.f32 0.0, %v1573
      %v1575 = vpop.f32.mrb[0].mxu0
      %v1576 = vpop.f32.mrb[0].mxu0
      %v1577 = vadd.f32 0.0, %v1576
      %v1578 = vpop.f32.mrb[0].mxu0
      %1579 = vmatprep.mubr.bf16.mxu0 %v645
      %1580 = vmatmul.mubr.bf16.gmra.mrb[0].mxu0 %v644
      %v1581 = vpop.f32.mrb[0].mxu0
      %v1582 = vadd.f32 0.0, %v1581
      %v1583 = vpop.f32.mrb[0].mxu0
      %v1584 = vpop.f32.mrb[0].mxu0
      %v1585 = vadd.f32 0.0, %v1584
      %v1586 = vpop.f32.mrb[0].mxu0
      %1587 = vmatprep.mubr.bf16.mxu0 %v1382
      %1588 = vmatmul.mubr.bf16.gmra.mrb[0].mxu0 %v1381
      %v1589 = vpop.f32.mrb[0].mxu0
      %v1590 = vadd.f32 0.0, %v1589
      %v1591 = vpop.f32.mrb[0].mxu0
      %v1592 = vpop.f32.mrb[0].mxu0
      %v1593 = vadd.f32 0.0, %v1592
      %v1594 = vpop.f32.mrb[0].mxu0
      %1595 = vdwg.mxu0
      %1596 = vmatprep.subr.bf16.mxu0 0
      %1597 = vmatpush1.bf16.msra.mxu0 %v1499
      %1598 = vmatprep.subr.bf16.mxu0 0
      %1599 = vmatpush1.bf16.msra.mxu0 %v1500
      %1600 = vmatprep.subr.bf16.mxu0 0
      %1601 = vmatpush1.bf16.msra.mxu0 %v1501
      %1602 = vmatprep.subr.bf16.mxu0 0
      %1603 = vmatpush1.bf16.msra.mxu0 %v1502
      %1604 = vmatprep.subr.bf16.mxu0 0
      %1605 = vmatpush1.bf16.msra.mxu0 %v1503
      %1606 = vmatprep.subr.bf16.mxu0 0
      %1607 = vmatpush1.bf16.msra.mxu0 %v1504
      %1608 = vmatprep.subr.bf16.mxu0 0
      %1609 = vmatpush1.bf16.msra.mxu0 %v1505
      %1610 = vmatprep.subr.bf16.mxu0 0
      %1611 = vmatpush1.bf16.msra.mxu0 %v1506
      %1612 = vmatprep.subr.bf16.mxu0 0
      %1613 = vmatpush1.bf16.msra.mxu0 0
      %1614 = vmatprep.subr.bf16.mxu0 0
      %1615 = vmatpush1.bf16.msra.mxu0 0
      %1616 = vmatprep.subr.bf16.mxu0 0
      %1617 = vmatpush1.bf16.msra.mxu0 0
      %1618 = vmatprep.subr.bf16.mxu0 0
      %1619 = vmatpush1.bf16.msra.mxu0 0
      %1620 = vmatprep.subr.bf16.mxu0 0
      %1621 = vmatpush1.bf16.msra.mxu0 0
      %1622 = vmatprep.subr.bf16.mxu0 0
      %1623 = vmatpush1.bf16.msra.mxu0 0
      %1624 = vmatprep.subr.bf16.mxu0 0
      %1625 = vmatpush1.bf16.msra.mxu0 0
      %1626 = vmatprep.subr.bf16.mxu0 0
      %1627 = vmatpush1.bf16.msra.mxu0 0
      %1628 = vmatprep.mubr.bf16.mxu0 0
      %1629 = vmatmul.mubr.bf16.gmra.mrb[0].mxu0 %v640
      %v1630 = vpop.f32.mrb[0].mxu0
      %v1631 = vadd.f32 %v1566, %v1630
      %v1632 = vpop.f32.mrb[0].mxu0
      %v1633 = vpop.f32.mrb[0].mxu0
      %v1634 = vadd.f32 %v1569, %v1633
      %v1635 = vpop.f32.mrb[0].mxu0
      %1636 = vmatprep.mubr.bf16.mxu0 0
      %1637 = vmatmul.mubr.bf16.gmra.mrb[0].mxu0 %v643
      %v1638 = vpop.f32.mrb[0].mxu0
      %v1639 = vadd.f32 %v1574, %v1638
      %v1640 = vpop.f32.mrb[0].mxu0
      %v1641 = vpop.f32.mrb[0].mxu0
      %v1642 = vadd.f32 %v1577, %v1641
      %v1643 = vpop.f32.mrb[0].mxu0
      %1644 = vmatprep.mubr.bf16.mxu0 0
      %1645 = vmatmul.mubr.bf16.gmra.mrb[0].mxu0 %v646
      %v1646 = vpop.f32.mrb[0].mxu0
      %v1647 = vadd.f32 %v1582, %v1646
      %v1648 = vpop.f32.mrb[0].mxu0
      %v1649 = vpop.f32.mrb[0].mxu0
      %v1650 = vadd.f32 %v1585, %v1649
      %v1651 = vpop.f32.mrb[0].mxu0
      %1652 = vmatprep.mubr.bf16.mxu0 0
      %1653 = vmatmul.mubr.bf16.gmra.mrb[0].mxu0 %v1383
      %v1654 = vpop.f32.mrb[0].mxu0
      %v1655 = vadd.f32 %v1590, %v1654
      %v1656 = vpop.f32.mrb[0].mxu0
      %v1657 = vpop.f32.mrb[0].mxu0
      %v1658 = vadd.f32 %v1593, %v1657
      %v1659 = vpop.f32.mrb[0].mxu0
      %1660 = vdwg.mxu0
      %v1661 = vadd.f32 %v1324, %v1631
      %v1662 = vadd.f32 %v1325, %v1634
      %v1663 = vadd.f32 %v1326, %v1639
      %v1664 = vadd.f32 %v1327, %v1642
      %v1665 = vadd.f32 %v1328, %v1647
      %v1666 = vadd.f32 %v1329, %v1650
      %v1667 = vadd.f32 %v1330, %v1655
      %v1668 = vadd.f32 %v1331, %v1658
      %1669 = vst [vmem:[#allocation2] sm:$0xff] %v1661
      %1670 = vst [vmem:[#allocation2 + $0x8] sm:$0xff] %v1662
      %1671 = vst [vmem:[#allocation2 + $0x10] sm:$0xff] %v1663
      %1672 = vst [vmem:[#allocation2 + $0x18] sm:$0xff] %v1664
      %1673 = vst [vmem:[#allocation2 + $0x20] sm:$0xff] %v1665
      %1674 = vst [vmem:[#allocation2 + $0x28] sm:$0xff] %v1666
      %1675 = vst [vmem:[#allocation2 + $0x30] sm:$0xff] %v1667
      %1676 = vst [vmem:[#allocation2 + $0x38] sm:$0xff] %v1668
      %v1677 = vld [vmem:[%s334] sm:$0xf]
      %v1678 = vld [vmem:[%s334 + $0x8] sm:$0xf]
      %v1679 = vld [vmem:[%s334 + $0x10] sm:$0xf]
      %v1680 = vld [vmem:[%s334 + $0x18] sm:$0xf]
      %v1681 = vld [vmem:[%s334 + $0x20] sm:$0xf]
      %v1682 = vld [vmem:[%s334 + $0x28] sm:$0xf]
      %v1683 = vld [vmem:[%s334 + $0x30] sm:$0xf]
      %v1684 = vld [vmem:[%s334 + $0x38] sm:$0xf]
      %v1685 = vld [vmem:[%s334 + $0x40] sm:$0xf]
      %v1686 = vld [vmem:[%s334 + $0x48] sm:$0xf]
      %v1687 = vld [vmem:[%s334 + $0x4] sm:$0x1]
      %v1688 = vld [vmem:[%s334 + $0xc] sm:$0x1]
      %v1689 = vld [vmem:[%s334 + $0x14] sm:$0x1]
      %v1690 = vld [vmem:[%s334 + $0x1c] sm:$0x1]
      %v1691 = vld [vmem:[%s334 + $0x24] sm:$0x1]
      %v1692 = vld [vmem:[%s334 + $0x2c] sm:$0x1]
      %v1693 = vld [vmem:[%s334 + $0x34] sm:$0x1]
      %v1694 = vld [vmem:[%s334 + $0x3c] sm:$0x1]
      %v1695 = vld [vmem:[%s334 + $0x44] sm:$0x1]
      %v1696 = vld [vmem:[%s334 + $0x4c] sm:$0x1]
      %v1697 = vld [vmem:[%s334] sm:$0xe]
      %v1698 = vld [vmem:[%s334 + $0x8] sm:$0xe]
      %v1699 = vld [vmem:[%s334 + $0x10] sm:$0xe]
      %v1700 = vld [vmem:[%s334 + $0x18] sm:$0xe]
      %v1701 = vld [vmem:[%s334 + $0x20] sm:$0xe]
      %v1702 = vld [vmem:[%s334 + $0x28] sm:$0xe]
      %v1703 = vld [vmem:[%s334 + $0x30] sm:$0xe]
      %v1704 = vld [vmem:[%s334 + $0x38] sm:$0xe]
      %v1705 = vld [vmem:[%s334 + $0x40] sm:$0xe]
      %v1706 = vld [vmem:[%s334 + $0x48] sm:$0xe]
      %v1727 = vunpack.c.l.b16 %v1677
      %v1728 = vunpack.c.l.b16 %v1687
      %v1729 = vunpack.c.l.b16 %v1678
      %v1730 = vunpack.c.l.b16 %v1688
      %v1731 = vunpack.c.l.b16 %v1679
      %v1732 = vunpack.c.l.b16 %v1689
      %v1733 = vunpack.c.l.b16 %v1680
      %v1734 = vunpack.c.l.b16 %v1690
      %v1735 = vunpack.c.l.b16 %v1681
      %v1736 = vunpack.c.l.b16 %v1691
      %v1737 = vunpack.c.l.b16 %v1682
      %v1738 = vunpack.c.l.b16 %v1692
      %v1739 = vunpack.c.l.b16 %v1683
      %v1740 = vunpack.c.l.b16 %v1693
      %v1741 = vunpack.c.l.b16 %v1684
      %v1742 = vunpack.c.l.b16 %v1694
      %v1743 = vunpack.c.l.b16 %v1685
      %v1744 = vunpack.c.l.b16 %v1695
      %v1745 = vunpack.c.l.b16 %v1686
      %v1746 = vunpack.c.l.b16 %v1696
      %v1747 = vpack.c.b16 %v1728, %v1727
      %v1748 = vpack.c.b16 %v1730, %v1729
      %v1749 = vpack.c.b16 %v1732, %v1731
      %v1750 = vpack.c.b16 %v1734, %v1733
      %v1751 = vpack.c.b16 %v1736, %v1735
      %v1752 = vpack.c.b16 %v1738, %v1737
      %v1753 = vpack.c.b16 %v1740, %v1739
      %v1754 = vpack.c.b16 %v1742, %v1741
      %v1755 = vpack.c.b16 %v1744, %v1743
      %v1756 = vpack.c.b16 %v1746, %v1745
      %v1758 = vshrl.u32 %v1747, 16
      %v1760 = vshll.u32 %v1747, 16
      %v1762 = vrot.slane %v1760, 1
      %v1763 = vor.u32 %v1758, %v1762
      %v1765 = vshrl.u32 %v1748, 16
      %v1767 = vshll.u32 %v1748, 16
      %v1769 = vrot.slane %v1767, 1
      %v1770 = vor.u32 %v1765, %v1769
      %v1772 = vshrl.u32 %v1749, 16
      %v1774 = vshll.u32 %v1749, 16
      %v1776 = vrot.slane %v1774, 1
      %v1777 = vor.u32 %v1772, %v1776
      %v1779 = vshrl.u32 %v1750, 16
      %v1781 = vshll.u32 %v1750, 16
      %v1783 = vrot.slane %v1781, 1
      %v1784 = vor.u32 %v1779, %v1783
      %v1786 = vshrl.u32 %v1751, 16
      %v1788 = vshll.u32 %v1751, 16
      %v1790 = vrot.slane %v1788, 1
      %v1791 = vor.u32 %v1786, %v1790
      %v1793 = vshrl.u32 %v1752, 16
      %v1795 = vshll.u32 %v1752, 16
      %v1797 = vrot.slane %v1795, 1
      %v1798 = vor.u32 %v1793, %v1797
      %v1800 = vshrl.u32 %v1753, 16
      %v1802 = vshll.u32 %v1753, 16
      %v1804 = vrot.slane %v1802, 1
      %v1805 = vor.u32 %v1800, %v1804
      %v1807 = vshrl.u32 %v1754, 16
      %v1809 = vshll.u32 %v1754, 16
      %v1811 = vrot.slane %v1809, 1
      %v1812 = vor.u32 %v1807, %v1811
      %v1814 = vshrl.u32 %v1755, 16
      %v1816 = vshll.u32 %v1755, 16
      %v1818 = vrot.slane %v1816, 1
      %v1819 = vor.u32 %v1814, %v1818
      %v1821 = vshrl.u32 %v1756, 16
      %v1823 = vshll.u32 %v1756, 16
      %v1825 = vrot.slane %v1823, 1
      %v1826 = vor.u32 %v1821, %v1825
      %v1837 = vunpack.c.l.b16 %v1697
      %v1838 = vunpack.c.l.b16 %v1698
      %v1839 = vunpack.c.l.b16 %v1699
      %v1840 = vunpack.c.l.b16 %v1700
      %v1841 = vunpack.c.l.b16 %v1701
      %v1842 = vunpack.c.l.b16 %v1702
      %v1843 = vunpack.c.l.b16 %v1703
      %v1844 = vunpack.c.l.b16 %v1704
      %v1845 = vunpack.c.l.b16 %v1705
      %v1846 = vunpack.c.l.b16 %v1706
      %v1847 = vpack.c.b16 %v1728, %v1837
      %v1848 = vpack.c.b16 %v1730, %v1838
      %v1849 = vpack.c.b16 %v1732, %v1839
      %v1850 = vpack.c.b16 %v1734, %v1840
      %v1851 = vpack.c.b16 %v1736, %v1841
      %v1852 = vpack.c.b16 %v1738, %v1842
      %v1853 = vpack.c.b16 %v1740, %v1843
      %v1854 = vpack.c.b16 %v1742, %v1844
      %v1855 = vpack.c.b16 %v1744, %v1845
      %v1856 = vpack.c.b16 %v1746, %v1846
      %v1857 = vrot.slane %v1847, 1
      %v1858 = vrot.slane %v1848, 1
      %v1859 = vrot.slane %v1849, 1
      %v1860 = vrot.slane %v1850, 1
      %v1861 = vrot.slane %v1851, 1
      %v1862 = vrot.slane %v1852, 1
      %v1863 = vrot.slane %v1853, 1
      %v1864 = vrot.slane %v1854, 1
      %v1865 = vrot.slane %v1855, 1
      %v1866 = vrot.slane %v1856, 1
      %v1867 = vunpack.c.l.b16 %v1763
      %v1868 = vunpack.c.l.b16 %v1857
      %v1869 = vunpack.c.l.b16 %v1770
      %v1870 = vunpack.c.l.b16 %v1858
      %v1871 = vunpack.c.l.b16 %v1777
      %v1872 = vunpack.c.l.b16 %v1859
      %v1873 = vunpack.c.l.b16 %v1784
      %v1874 = vunpack.c.l.b16 %v1860
      %v1875 = vunpack.c.l.b16 %v1791
      %v1876 = vunpack.c.l.b16 %v1861
      %v1877 = vunpack.c.l.b16 %v1798
      %v1878 = vunpack.c.l.b16 %v1862
      %v1879 = vunpack.c.l.b16 %v1805
      %v1880 = vunpack.c.l.b16 %v1863
      %v1881 = vunpack.c.l.b16 %v1812
      %v1882 = vunpack.c.l.b16 %v1864
      %v1883 = vld [vmem:[#allocation2] sm:$0xff]
      %v1884 = vld [vmem:[#allocation2 + $0x8] sm:$0xff]
      %v1885 = vld [vmem:[#allocation2 + $0x10] sm:$0xff]
      %v1886 = vld [vmem:[#allocation2 + $0x18] sm:$0xff]
      %v1887 = vld [vmem:[#allocation2 + $0x20] sm:$0xff]
      %v1888 = vld [vmem:[#allocation2 + $0x28] sm:$0xff]
      %v1889 = vld [vmem:[#allocation2 + $0x30] sm:$0xff]
      %v1890 = vld [vmem:[#allocation2 + $0x38] sm:$0xff]
      %s1891 = scalar_lea.vmem %s3, 576
      %v1892 = vld [vmem:[%s1891] sm:$0xf]
      %v1893 = vld [vmem:[%s1891 + $0x4] sm:$0xf]
      %v1894 = vld [vmem:[%s1891 + $0x8] sm:$0xf]
      %v1895 = vld [vmem:[%s1891 + $0xc] sm:$0xf]
      %v1896 = vld [vmem:[%s1891 + $0x10] sm:$0xf]
      %v1897 = vld [vmem:[%s1891 + $0x14] sm:$0xf]
      %v1898 = vld [vmem:[%s1891 + $0x18] sm:$0xf]
      %v1899 = vld [vmem:[%s1891 + $0x1c] sm:$0xf]
      %v1900 = vld [vmem:[%s1891 + $0x20] sm:$0xf]
      %v1901 = vld [vmem:[%s1891 + $0x24] sm:$0xf]
      %v1902 = vld [vmem:[%s1891 + $0x28] sm:$0xf]
      %v1903 = vld [vmem:[%s1891 + $0x2c] sm:$0xf]
      %v1904 = vld [vmem:[%s1891 + $0x30] sm:$0xf]
      %v1905 = vld [vmem:[%s1891 + $0x34] sm:$0xf]
      %v1906 = vld [vmem:[%s1891 + $0x38] sm:$0xf]
      %v1907 = vld [vmem:[%s1891 + $0x3c] sm:$0xf]
      %v1908 = vld [vmem:[%s1891 + $0x40] sm:$0xf]
      %v1909 = vld [vmem:[%s1891 + $0x44] sm:$0xf]
      %v1910 = vld [vmem:[%s1891 + $0x48] sm:$0xf]
      %v1911 = vld [vmem:[%s1891 + $0x4c] sm:$0xf]
      %v1912 = vld [vmem:[%s1891 + $0x50] sm:$0xf]
      %v1913 = vld [vmem:[%s1891 + $0x54] sm:$0xf]
      %v1914 = vld [vmem:[%s1891 + $0x58] sm:$0xf]
      %v1915 = vld [vmem:[%s1891 + $0x5c] sm:$0xf]
      %v1916 = vld [vmem:[%s1891 + $0x60] sm:$0xf]
      %v1917 = vld [vmem:[%s1891 + $0x64] sm:$0xf]
      %v1918 = vld [vmem:[%s1891 + $0x68] sm:$0xf]
      %v1919 = vld [vmem:[%s1891 + $0x6c] sm:$0xf]
      %v1920 = vld [vmem:[%s1891 + $0x70] sm:$0xf]
      %v1921 = vld [vmem:[%s1891 + $0x74] sm:$0xf]
      %v1922 = vld [vmem:[%s1891 + $0x78] sm:$0xf]
      %v1923 = vld [vmem:[%s1891 + $0x7c] sm:$0xf]
      %v1924 = vld [vmem:[%s1891 + $0x80] sm:$0xf]
      %v1925 = vld [vmem:[%s1891 + $0x84] sm:$0xf]
      %v1926 = vld [vmem:[%s1891 + $0x88] sm:$0xf]
      %v1927 = vld [vmem:[%s1891 + $0x8c] sm:$0xf]
      %v1928 = vld [vmem:[%s1891 + $0x90] sm:$0xf]
      %v1929 = vld [vmem:[%s1891 + $0x94] sm:$0xf]
      %v1930 = vld [vmem:[%s1891 + $0x98] sm:$0xf]
      %v1931 = vld [vmem:[%s1891 + $0x9c] sm:$0xf]
      %v1932 = vld [vmem:[%s1891 + $0xa0] sm:$0xf]
      %v1933 = vld [vmem:[%s1891 + $0xa4] sm:$0xf]
      %v1934 = vld [vmem:[%s1891 + $0xa8] sm:$0xf]
      %v1935 = vld [vmem:[%s1891 + $0xac] sm:$0xf]
      %v1936 = vld [vmem:[%s1891 + $0xb0] sm:$0xf]
      %v1937 = vld [vmem:[%s1891 + $0xb4] sm:$0xf]
      %v1938 = vld [vmem:[%s1891 + $0xb8] sm:$0xf]
      %v1939 = vld [vmem:[%s1891 + $0xbc] sm:$0xf]
      %v1940 = vpack.c.b16 %v1729, %v1727
      %v1941 = vpack.c.b16 %v1869, %v1867
      %v1942 = vpack.c.b16 %v1870, %v1868
      %v1943 = vpack.c.b16 %v1733, %v1731
      %v1944 = vpack.c.b16 %v1873, %v1871
      %v1945 = vpack.c.b16 %v1874, %v1872
      %v1946 = vpack.c.b16 %v1737, %v1735
      %v1947 = vpack.c.b16 %v1877, %v1875
      %v1948 = vpack.c.b16 %v1878, %v1876
      %v1949 = vpack.c.b16 %v1741, %v1739
      %v1950 = vpack.c.b16 %v1881, %v1879
      %v1951 = vpack.c.b16 %v1882, %v1880
      %v2012 = vunpack.c.l.b16 %v1892
      %v2013 = vunpack.c.l.b16 %v1893
      %v2014 = vunpack.c.l.b16 %v1894
      %v2015 = vunpack.c.l.b16 %v1895
      %v2016 = vunpack.c.l.b16 %v1896
      %v2017 = vunpack.c.l.b16 %v1897
      %v2018 = vunpack.c.l.b16 %v1898
      %v2019 = vunpack.c.l.b16 %v1899
      %v2020 = vunpack.c.l.b16 %v1900
      %v2021 = vunpack.c.l.b16 %v1901
      %v2022 = vunpack.c.l.b16 %v1902
      %v2023 = vunpack.c.l.b16 %v1903
      %v2024 = vunpack.c.l.b16 %v1904
      %v2025 = vunpack.c.l.b16 %v1905
      %v2026 = vunpack.c.l.b16 %v1906
      %v2027 = vunpack.c.l.b16 %v1907
      %v2028 = vunpack.c.l.b16 %v1908
      %v2029 = vunpack.c.l.b16 %v1909
      %v2030 = vunpack.c.l.b16 %v1910
      %v2031 = vunpack.c.l.b16 %v1911
      %v2032 = vunpack.c.l.b16 %v1912
      %v2033 = vunpack.c.l.b16 %v1913
      %v2034 = vunpack.c.l.b16 %v1914
      %v2035 = vunpack.c.l.b16 %v1915
      %v2036 = vunpack.c.l.b16 %v1916
      %v2037 = vunpack.c.l.b16 %v1917
      %v2038 = vunpack.c.l.b16 %v1918
      %v2039 = vunpack.c.l.b16 %v1919
      %v2040 = vunpack.c.l.b16 %v1920
      %v2041 = vunpack.c.l.b16 %v1921
      %v2042 = vunpack.c.l.b16 %v1922
      %v2043 = vunpack.c.l.b16 %v1923
      %v2044 = vunpack.c.l.b16 %v1924
      %v2045 = vunpack.c.l.b16 %v1925
      %v2046 = vunpack.c.l.b16 %v1926
      %v2047 = vunpack.c.l.b16 %v1927
      %v2048 = vunpack.c.l.b16 %v1928
      %v2049 = vunpack.c.l.b16 %v1929
      %v2050 = vunpack.c.l.b16 %v1930
      %v2051 = vunpack.c.l.b16 %v1931
      %v2052 = vunpack.c.l.b16 %v1932
      %v2053 = vunpack.c.l.b16 %v1933
      %v2054 = vunpack.c.l.b16 %v1934
      %v2055 = vunpack.c.l.b16 %v1935
      %v2056 = vunpack.c.l.b16 %v1936
      %v2057 = vunpack.c.l.b16 %v1937
      %v2058 = vunpack.c.l.b16 %v1938
      %v2059 = vunpack.c.l.b16 %v1939
      %v2060 = vpack.c.b16 %v2013, %v2012
      %v2061 = vpack.c.b16 %v2015, %v2014
      %v2062 = vpack.c.b16 %v2017, %v2016
      %v2063 = vpack.c.b16 %v2019, %v2018
      %v2064 = vpack.c.b16 %v2021, %v2020
      %v2065 = vpack.c.b16 %v2023, %v2022
      %v2066 = vpack.c.b16 %v2025, %v2024
      %v2067 = vpack.c.b16 %v2027, %v2026
      %v2068 = vpack.c.b16 %v2029, %v2028
      %v2069 = vpack.c.b16 %v2031, %v2030
      %v2070 = vpack.c.b16 %v2033, %v2032
      %v2071 = vpack.c.b16 %v2035, %v2034
      %v2072 = vpack.c.b16 %v2037, %v2036
      %v2073 = vpack.c.b16 %v2039, %v2038
      %v2074 = vpack.c.b16 %v2041, %v2040
      %v2075 = vpack.c.b16 %v2043, %v2042
      %v2076 = vpack.c.b16 %v2045, %v2044
      %v2077 = vpack.c.b16 %v2047, %v2046
      %v2078 = vpack.c.b16 %v2049, %v2048
      %v2079 = vpack.c.b16 %v2051, %v2050
      %v2080 = vpack.c.b16 %v2053, %v2052
      %v2081 = vpack.c.b16 %v2055, %v2054
      %v2082 = vpack.c.b16 %v2057, %v2056
      %v2083 = vpack.c.b16 %v2059, %v2058
      %2108 = vmatprep.subr.bf16.mxu0 0
      %2109 = vmatpush1.bf16.msra.mxu0 %v2060
      %2110 = vmatprep.subr.bf16.mxu0 0
      %2111 = vmatpush1.bf16.msra.mxu0 %v2061
      %2112 = vmatprep.subr.bf16.mxu0 0
      %2113 = vmatpush1.bf16.msra.mxu0 %v2062
      %2114 = vmatprep.subr.bf16.mxu0 0
      %2115 = vmatpush1.bf16.msra.mxu0 %v2063
      %2116 = vmatprep.subr.bf16.mxu0 0
      %2117 = vmatpush1.bf16.msra.mxu0 %v2064
      %2118 = vmatprep.subr.bf16.mxu0 0
      %2119 = vmatpush1.bf16.msra.mxu0 %v2065
      %2120 = vmatprep.subr.bf16.mxu0 0
      %2121 = vmatpush1.bf16.msra.mxu0 %v2066
      %2122 = vmatprep.subr.bf16.mxu0 0
      %2123 = vmatpush1.bf16.msra.mxu0 %v2067
      %2124 = vmatprep.subr.bf16.mxu0 0
      %2125 = vmatpush1.bf16.msra.mxu0 %v2068
      %2126 = vmatprep.subr.bf16.mxu0 0
      %2127 = vmatpush1.bf16.msra.mxu0 %v2069
      %2128 = vmatprep.subr.bf16.mxu0 0
      %2129 = vmatpush1.bf16.msra.mxu0 %v2070
      %2130 = vmatprep.subr.bf16.mxu0 0
      %2131 = vmatpush1.bf16.msra.mxu0 %v2071
      %2132 = vmatprep.subr.bf16.mxu0 0
      %2133 = vmatpush1.bf16.msra.mxu0 %v2072
      %2134 = vmatprep.subr.bf16.mxu0 0
      %2135 = vmatpush1.bf16.msra.mxu0 %v2073
      %2136 = vmatprep.subr.bf16.mxu0 0
      %2137 = vmatpush1.bf16.msra.mxu0 %v2074
      %2138 = vmatprep.subr.bf16.mxu0 0
      %2139 = vmatpush1.bf16.msra.mxu0 %v2075
      %2140 = vmatprep.mubr.bf16.mxu0 %v1941
      %2141 = vmatmul.mubr.bf16.gmra.mrb[0].mxu0 %v1940
      %v2142 = vpop.f32.mrb[0].mxu0
      %v2143 = vadd.f32 0.0, %v2142
      %v2144 = vpop.f32.mrb[0].mxu0
      %v2145 = vpop.f32.mrb[0].mxu0
      %v2146 = vadd.f32 0.0, %v2145
      %v2147 = vpop.f32.mrb[0].mxu0
      %2148 = vmatprep.mubr.bf16.mxu0 %v1944
      %2149 = vmatmul.mubr.bf16.gmra.mrb[0].mxu0 %v1943
      %v2150 = vpop.f32.mrb[0].mxu0
      %v2151 = vadd.f32 0.0, %v2150
      %v2152 = vpop.f32.mrb[0].mxu0
      %v2153 = vpop.f32.mrb[0].mxu0
      %v2154 = vadd.f32 0.0, %v2153
      %v2155 = vpop.f32.mrb[0].mxu0
      %2156 = vmatprep.mubr.bf16.mxu0 %v1947
      %2157 = vmatmul.mubr.bf16.gmra.mrb[0].mxu0 %v1946
      %v2158 = vpop.f32.mrb[0].mxu0
      %v2159 = vadd.f32 0.0, %v2158
      %v2160 = vpop.f32.mrb[0].mxu0
      %v2161 = vpop.f32.mrb[0].mxu0
      %v2162 = vadd.f32 0.0, %v2161
      %v2163 = vpop.f32.mrb[0].mxu0
      %2164 = vmatprep.mubr.bf16.mxu0 %v1950
      %2165 = vmatmul.mubr.bf16.gmra.mrb[0].mxu0 %v1949
      %v2166 = vpop.f32.mrb[0].mxu0
      %v2167 = vadd.f32 0.0, %v2166
      %v2168 = vpop.f32.mrb[0].mxu0
      %v2169 = vpop.f32.mrb[0].mxu0
      %v2170 = vadd.f32 0.0, %v2169
      %v2171 = vpop.f32.mrb[0].mxu0
      %2172 = vdwg.mxu0
      %2173 = vmatprep.subr.bf16.mxu0 0
      %2174 = vmatpush1.bf16.msra.mxu0 %v2076
      %2175 = vmatprep.subr.bf16.mxu0 0
      %2176 = vmatpush1.bf16.msra.mxu0 %v2077
      %2177 = vmatprep.subr.bf16.mxu0 0
      %2178 = vmatpush1.bf16.msra.mxu0 %v2078
      %2179 = vmatprep.subr.bf16.mxu0 0
      %2180 = vmatpush1.bf16.msra.mxu0 %v2079
      %2181 = vmatprep.subr.bf16.mxu0 0
      %2182 = vmatpush1.bf16.msra.mxu0 %v2080
      %2183 = vmatprep.subr.bf16.mxu0 0
      %2184 = vmatpush1.bf16.msra.mxu0 %v2081
      %2185 = vmatprep.subr.bf16.mxu0 0
      %2186 = vmatpush1.bf16.msra.mxu0 %v2082
      %2187 = vmatprep.subr.bf16.mxu0 0
      %2188 = vmatpush1.bf16.msra.mxu0 %v2083
      %2189 = vmatprep.subr.bf16.mxu0 0
      %2190 = vmatpush1.bf16.msra.mxu0 0
      %2191 = vmatprep.subr.bf16.mxu0 0
      %2192 = vmatpush1.bf16.msra.mxu0 0
      %2193 = vmatprep.subr.bf16.mxu0 0
      %2194 = vmatpush1.bf16.msra.mxu0 0
      %2195 = vmatprep.subr.bf16.mxu0 0
      %2196 = vmatpush1.bf16.msra.mxu0 0
      %2197 = vmatprep.subr.bf16.mxu0 0
      %2198 = vmatpush1.bf16.msra.mxu0 0
      %2199 = vmatprep.subr.bf16.mxu0 0
      %2200 = vmatpush1.bf16.msra.mxu0 0
      %2201 = vmatprep.subr.bf16.mxu0 0
      %2202 = vmatpush1.bf16.msra.mxu0 0
      %2203 = vmatprep.subr.bf16.mxu0 0
      %2204 = vmatpush1.bf16.msra.mxu0 0
      %2205 = vmatprep.mubr.bf16.mxu0 0
      %2206 = vmatmul.mubr.bf16.gmra.mrb[0].mxu0 %v1942
      %v2207 = vpop.f32.mrb[0].mxu0
      %v2208 = vadd.f32 %v2143, %v2207
      %v2209 = vpop.f32.mrb[0].mxu0
      %v2210 = vpop.f32.mrb[0].mxu0
      %v2211 = vadd.f32 %v2146, %v2210
      %v2212 = vpop.f32.mrb[0].mxu0
      %2213 = vmatprep.mubr.bf16.mxu0 0
      %2214 = vmatmul.mubr.bf16.gmra.mrb[0].mxu0 %v1945
      %v2215 = vpop.f32.mrb[0].mxu0
      %v2216 = vadd.f32 %v2151, %v2215
      %v2217 = vpop.f32.mrb[0].mxu0
      %v2218 = vpop.f32.mrb[0].mxu0
      %v2219 = vadd.f32 %v2154, %v2218
      %v2220 = vpop.f32.mrb[0].mxu0
      %2221 = vmatprep.mubr.bf16.mxu0 0
      %2222 = vmatmul.mubr.bf16.gmra.mrb[0].mxu0 %v1948
      %v2223 = vpop.f32.mrb[0].mxu0
      %v2224 = vadd.f32 %v2159, %v2223
      %v2225 = vpop.f32.mrb[0].mxu0
      %v2226 = vpop.f32.mrb[0].mxu0
      %v2227 = vadd.f32 %v2162, %v2226
      %v2228 = vpop.f32.mrb[0].mxu0
      %2229 = vmatprep.mubr.bf16.mxu0 0
      %2230 = vmatmul.mubr.bf16.gmra.mrb[0].mxu0 %v1951
      %v2231 = vpop.f32.mrb[0].mxu0
      %v2232 = vadd.f32 %v2167, %v2231
      %v2233 = vpop.f32.mrb[0].mxu0
      %v2234 = vpop.f32.mrb[0].mxu0
      %v2235 = vadd.f32 %v2170, %v2234
      %v2236 = vpop.f32.mrb[0].mxu0
      %2237 = vdwg.mxu0
      %v2238 = vadd.f32 %v1883, %v2208
      %v2239 = vadd.f32 %v1884, %v2211
      %v2240 = vadd.f32 %v1885, %v2216
      %v2241 = vadd.f32 %v1886, %v2219
      %v2242 = vadd.f32 %v1887, %v2224
      %v2243 = vadd.f32 %v1888, %v2227
      %v2244 = vadd.f32 %v1889, %v2232
      %v2245 = vadd.f32 %v1890, %v2235
      %2246 = vst [vmem:[#allocation2] sm:$0xff] %v2238
      %2247 = vst [vmem:[#allocation2 + $0x8] sm:$0xff] %v2239
      %2248 = vst [vmem:[#allocation2 + $0x10] sm:$0xff] %v2240
      %2249 = vst [vmem:[#allocation2 + $0x18] sm:$0xff] %v2241
      %2250 = vst [vmem:[#allocation2 + $0x20] sm:$0xff] %v2242
      %2251 = vst [vmem:[#allocation2 + $0x28] sm:$0xff] %v2243
      %2252 = vst [vmem:[#allocation2 + $0x30] sm:$0xff] %v2244
      %2253 = vst [vmem:[#allocation2 + $0x38] sm:$0xff] %v2245
      %v2254 = vunpack.c.l.b16 %v1819
      %v2255 = vunpack.c.l.b16 %v1865
      %v2256 = vld [vmem:[#allocation2] sm:$0xff]
      %v2257 = vld [vmem:[#allocation2 + $0x8] sm:$0xff]
      %v2258 = vld [vmem:[#allocation2 + $0x10] sm:$0xff]
      %v2259 = vld [vmem:[#allocation2 + $0x18] sm:$0xff]
      %v2260 = vld [vmem:[#allocation2 + $0x20] sm:$0xff]
      %v2261 = vld [vmem:[#allocation2 + $0x28] sm:$0xff]
      %v2262 = vld [vmem:[#allocation2 + $0x30] sm:$0xff]
      %v2263 = vld [vmem:[#allocation2 + $0x38] sm:$0xff]
      %s2264 = scalar_lea.vmem %s3, 768
      %v2265 = vld [vmem:[%s2264] sm:$0xf]
      %v2266 = vld [vmem:[%s2264 + $0x4] sm:$0xf]
      %v2267 = vld [vmem:[%s2264 + $0x8] sm:$0xf]
      %v2268 = vld [vmem:[%s2264 + $0xc] sm:$0xf]
      %v2269 = vld [vmem:[%s2264 + $0x10] sm:$0xf]
      %v2270 = vld [vmem:[%s2264 + $0x14] sm:$0xf]
      %v2271 = vld [vmem:[%s2264 + $0x18] sm:$0xf]
      %v2272 = vld [vmem:[%s2264 + $0x1c] sm:$0xf]
      %v2273 = vld [vmem:[%s2264 + $0x20] sm:$0xf]
      %v2274 = vld [vmem:[%s2264 + $0x24] sm:$0xf]
      %v2275 = vld [vmem:[%s2264 + $0x28] sm:$0xf]
      %v2276 = vld [vmem:[%s2264 + $0x2c] sm:$0xf]
      %v2277 = vld [vmem:[%s2264 + $0x30] sm:$0xf]
      %v2278 = vld [vmem:[%s2264 + $0x34] sm:$0xf]
      %v2279 = vld [vmem:[%s2264 + $0x38] sm:$0xf]
      %v2280 = vld [vmem:[%s2264 + $0x3c] sm:$0xf]
      %v2281 = vld [vmem:[%s2264 + $0x40] sm:$0xf]
      %v2282 = vld [vmem:[%s2264 + $0x44] sm:$0xf]
      %v2283 = vld [vmem:[%s2264 + $0x48] sm:$0xf]
      %v2284 = vld [vmem:[%s2264 + $0x4c] sm:$0xf]
      %v2285 = vld [vmem:[%s2264 + $0x50] sm:$0xf]
      %v2286 = vld [vmem:[%s2264 + $0x54] sm:$0xf]
      %v2287 = vld [vmem:[%s2264 + $0x58] sm:$0xf]
      %v2288 = vld [vmem:[%s2264 + $0x5c] sm:$0xf]
      %v2289 = vld [vmem:[%s2264 + $0x60] sm:$0xf]
      %v2290 = vld [vmem:[%s2264 + $0x64] sm:$0xf]
      %v2291 = vld [vmem:[%s2264 + $0x68] sm:$0xf]
      %v2292 = vld [vmem:[%s2264 + $0x6c] sm:$0xf]
      %v2293 = vld [vmem:[%s2264 + $0x70] sm:$0xf]
      %v2294 = vld [vmem:[%s2264 + $0x74] sm:$0xf]
      %v2295 = vld [vmem:[%s2264 + $0x78] sm:$0xf]
      %v2296 = vld [vmem:[%s2264 + $0x7c] sm:$0xf]
      %v2297 = vld [vmem:[%s2264 + $0x80] sm:$0xf]
      %v2298 = vld [vmem:[%s2264 + $0x84] sm:$0xf]
      %v2299 = vld [vmem:[%s2264 + $0x88] sm:$0xf]
      %v2300 = vld [vmem:[%s2264 + $0x8c] sm:$0xf]
      %v2301 = vld [vmem:[%s2264 + $0x90] sm:$0xf]
      %v2302 = vld [vmem:[%s2264 + $0x94] sm:$0xf]
      %v2303 = vld [vmem:[%s2264 + $0x98] sm:$0xf]
      %v2304 = vld [vmem:[%s2264 + $0x9c] sm:$0xf]
      %v2305 = vld [vmem:[%s2264 + $0xa0] sm:$0xf]
      %v2306 = vld [vmem:[%s2264 + $0xa4] sm:$0xf]
      %v2307 = vld [vmem:[%s2264 + $0xa8] sm:$0xf]
      %v2308 = vld [vmem:[%s2264 + $0xac] sm:$0xf]
      %v2309 = vld [vmem:[%s2264 + $0xb0] sm:$0xf]
      %v2310 = vld [vmem:[%s2264 + $0xb4] sm:$0xf]
      %v2311 = vld [vmem:[%s2264 + $0xb8] sm:$0xf]
      %v2312 = vld [vmem:[%s2264 + $0xbc] sm:$0xf]
      %v2313 = vpack.c.b16 %v1731, %v1729
      %v2314 = vpack.c.b16 %v1871, %v1869
      %v2315 = vpack.c.b16 %v1872, %v1870
      %v2316 = vpack.c.b16 %v1735, %v1733
      %v2317 = vpack.c.b16 %v1875, %v1873
      %v2318 = vpack.c.b16 %v1876, %v1874
      %v2319 = vpack.c.b16 %v1739, %v1737
      %v2320 = vpack.c.b16 %v1879, %v1877
      %v2321 = vpack.c.b16 %v1880, %v1878
      %v2322 = vpack.c.b16 %v1743, %v1741
      %v2323 = vpack.c.b16 %v2254, %v1881
      %v2324 = vpack.c.b16 %v2255, %v1882
      %v2385 = vunpack.c.l.b16 %v2265
      %v2386 = vunpack.c.l.b16 %v2266
      %v2387 = vunpack.c.l.b16 %v2267
      %v2388 = vunpack.c.l.b16 %v2268
      %v2389 = vunpack.c.l.b16 %v2269
      %v2390 = vunpack.c.l.b16 %v2270
      %v2391 = vunpack.c.l.b16 %v2271
      %v2392 = vunpack.c.l.b16 %v2272
      %v2393 = vunpack.c.l.b16 %v2273
      %v2394 = vunpack.c.l.b16 %v2274
      %v2395 = vunpack.c.l.b16 %v2275
      %v2396 = vunpack.c.l.b16 %v2276
      %v2397 = vunpack.c.l.b16 %v2277
      %v2398 = vunpack.c.l.b16 %v2278
      %v2399 = vunpack.c.l.b16 %v2279
      %v2400 = vunpack.c.l.b16 %v2280
      %v2401 = vunpack.c.l.b16 %v2281
      %v2402 = vunpack.c.l.b16 %v2282
      %v2403 = vunpack.c.l.b16 %v2283
      %v2404 = vunpack.c.l.b16 %v2284
      %v2405 = vunpack.c.l.b16 %v2285
      %v2406 = vunpack.c.l.b16 %v2286
      %v2407 = vunpack.c.l.b16 %v2287
      %v2408 = vunpack.c.l.b16 %v2288
      %v2409 = vunpack.c.l.b16 %v2289
      %v2410 = vunpack.c.l.b16 %v2290
      %v2411 = vunpack.c.l.b16 %v2291
      %v2412 = vunpack.c.l.b16 %v2292
      %v2413 = vunpack.c.l.b16 %v2293
      %v2414 = vunpack.c.l.b16 %v2294
      %v2415 = vunpack.c.l.b16 %v2295
      %v2416 = vunpack.c.l.b16 %v2296
      %v2417 = vunpack.c.l.b16 %v2297
      %v2418 = vunpack.c.l.b16 %v2298
      %v2419 = vunpack.c.l.b16 %v2299
      %v2420 = vunpack.c.l.b16 %v2300
      %v2421 = vunpack.c.l.b16 %v2301
      %v2422 = vunpack.c.l.b16 %v2302
      %v2423 = vunpack.c.l.b16 %v2303
      %v2424 = vunpack.c.l.b16 %v2304
      %v2425 = vunpack.c.l.b16 %v2305
      %v2426 = vunpack.c.l.b16 %v2306
      %v2427 = vunpack.c.l.b16 %v2307
      %v2428 = vunpack.c.l.b16 %v2308
      %v2429 = vunpack.c.l.b16 %v2309
      %v2430 = vunpack.c.l.b16 %v2310
      %v2431 = vunpack.c.l.b16 %v2311
      %v2432 = vunpack.c.l.b16 %v2312
      %v2433 = vpack.c.b16 %v2386, %v2385
      %v2434 = vpack.c.b16 %v2388, %v2387
      %v2435 = vpack.c.b16 %v2390, %v2389
      %v2436 = vpack.c.b16 %v2392, %v2391
      %v2437 = vpack.c.b16 %v2394, %v2393
      %v2438 = vpack.c.b16 %v2396, %v2395
      %v2439 = vpack.c.b16 %v2398, %v2397
      %v2440 = vpack.c.b16 %v2400, %v2399
      %v2441 = vpack.c.b16 %v2402, %v2401
      %v2442 = vpack.c.b16 %v2404, %v2403
      %v2443 = vpack.c.b16 %v2406, %v2405
      %v2444 = vpack.c.b16 %v2408, %v2407
      %v2445 = vpack.c.b16 %v2410, %v2409
      %v2446 = vpack.c.b16 %v2412, %v2411
      %v2447 = vpack.c.b16 %v2414, %v2413
      %v2448 = vpack.c.b16 %v2416, %v2415
      %v2449 = vpack.c.b16 %v2418, %v2417
      %v2450 = vpack.c.b16 %v2420, %v2419
      %v2451 = vpack.c.b16 %v2422, %v2421
      %v2452 = vpack.c.b16 %v2424, %v2423
      %v2453 = vpack.c.b16 %v2426, %v2425
      %v2454 = vpack.c.b16 %v2428, %v2427
      %v2455 = vpack.c.b16 %v2430, %v2429
      %v2456 = vpack.c.b16 %v2432, %v2431
      %2481 = vmatprep.subr.bf16.mxu0 0
      %2482 = vmatpush1.bf16.msra.mxu0 %v2433
      %2483 = vmatprep.subr.bf16.mxu0 0
      %2484 = vmatpush1.bf16.msra.mxu0 %v2434
      %2485 = vmatprep.subr.bf16.mxu0 0
      %2486 = vmatpush1.bf16.msra.mxu0 %v2435
      %2487 = vmatprep.subr.bf16.mxu0 0
      %2488 = vmatpush1.bf16.msra.mxu0 %v2436
      %2489 = vmatprep.subr.bf16.mxu0 0
      %2490 = vmatpush1.bf16.msra.mxu0 %v2437
      %2491 = vmatprep.subr.bf16.mxu0 0
      %2492 = vmatpush1.bf16.msra.mxu0 %v2438
      %2493 = vmatprep.subr.bf16.mxu0 0
      %2494 = vmatpush1.bf16.msra.mxu0 %v2439
      %2495 = vmatprep.subr.bf16.mxu0 0
      %2496 = vmatpush1.bf16.msra.mxu0 %v2440
      %2497 = vmatprep.subr.bf16.mxu0 0
      %2498 = vmatpush1.bf16.msra.mxu0 %v2441
      %2499 = vmatprep.subr.bf16.mxu0 0
      %2500 = vmatpush1.bf16.msra.mxu0 %v2442
      %2501 = vmatprep.subr.bf16.mxu0 0
      %2502 = vmatpush1.bf16.msra.mxu0 %v2443
      %2503 = vmatprep.subr.bf16.mxu0 0
      %2504 = vmatpush1.bf16.msra.mxu0 %v2444
      %2505 = vmatprep.subr.bf16.mxu0 0
      %2506 = vmatpush1.bf16.msra.mxu0 %v2445
      %2507 = vmatprep.subr.bf16.mxu0 0
      %2508 = vmatpush1.bf16.msra.mxu0 %v2446
      %2509 = vmatprep.subr.bf16.mxu0 0
      %2510 = vmatpush1.bf16.msra.mxu0 %v2447
      %2511 = vmatprep.subr.bf16.mxu0 0
      %2512 = vmatpush1.bf16.msra.mxu0 %v2448
      %2513 = vmatprep.mubr.bf16.mxu0 %v2314
      %2514 = vmatmul.mubr.bf16.gmra.mrb[0].mxu0 %v2313
      %v2515 = vpop.f32.mrb[0].mxu0
      %v2516 = vadd.f32 0.0, %v2515
      %v2517 = vpop.f32.mrb[0].mxu0
      %v2518 = vpop.f32.mrb[0].mxu0
      %v2519 = vadd.f32 0.0, %v2518
      %v2520 = vpop.f32.mrb[0].mxu0
      %2521 = vmatprep.mubr.bf16.mxu0 %v2317
      %2522 = vmatmul.mubr.bf16.gmra.mrb[0].mxu0 %v2316
      %v2523 = vpop.f32.mrb[0].mxu0
      %v2524 = vadd.f32 0.0, %v2523
      %v2525 = vpop.f32.mrb[0].mxu0
      %v2526 = vpop.f32.mrb[0].mxu0
      %v2527 = vadd.f32 0.0, %v2526
      %v2528 = vpop.f32.mrb[0].mxu0
      %2529 = vmatprep.mubr.bf16.mxu0 %v2320
      %2530 = vmatmul.mubr.bf16.gmra.mrb[0].mxu0 %v2319
      %v2531 = vpop.f32.mrb[0].mxu0
      %v2532 = vadd.f32 0.0, %v2531
      %v2533 = vpop.f32.mrb[0].mxu0
      %v2534 = vpop.f32.mrb[0].mxu0
      %v2535 = vadd.f32 0.0, %v2534
      %v2536 = vpop.f32.mrb[0].mxu0
      %2537 = vmatprep.mubr.bf16.mxu0 %v2323
      %2538 = vmatmul.mubr.bf16.gmra.mrb[0].mxu0 %v2322
      %v2539 = vpop.f32.mrb[0].mxu0
      %v2540 = vadd.f32 0.0, %v2539
      %v2541 = vpop.f32.mrb[0].mxu0
      %v2542 = vpop.f32.mrb[0].mxu0
      %v2543 = vadd.f32 0.0, %v2542
      %v2544 = vpop.f32.mrb[0].mxu0
      %2545 = vdwg.mxu0
      %2546 = vmatprep.subr.bf16.mxu0 0
      %2547 = vmatpush1.bf16.msra.mxu0 %v2449
      %2548 = vmatprep.subr.bf16.mxu0 0
      %2549 = vmatpush1.bf16.msra.mxu0 %v2450
      %2550 = vmatprep.subr.bf16.mxu0 0
      %2551 = vmatpush1.bf16.msra.mxu0 %v2451
      %2552 = vmatprep.subr.bf16.mxu0 0
      %2553 = vmatpush1.bf16.msra.mxu0 %v2452
      %2554 = vmatprep.subr.bf16.mxu0 0
      %2555 = vmatpush1.bf16.msra.mxu0 %v2453
      %2556 = vmatprep.subr.bf16.mxu0 0
      %2557 = vmatpush1.bf16.msra.mxu0 %v2454
      %2558 = vmatprep.subr.bf16.mxu0 0
      %2559 = vmatpush1.bf16.msra.mxu0 %v2455
      %2560 = vmatprep.subr.bf16.mxu0 0
      %2561 = vmatpush1.bf16.msra.mxu0 %v2456
      %2562 = vmatprep.subr.bf16.mxu0 0
      %2563 = vmatpush1.bf16.msra.mxu0 0
      %2564 = vmatprep.subr.bf16.mxu0 0
      %2565 = vmatpush1.bf16.msra.mxu0 0
      %2566 = vmatprep.subr.bf16.mxu0 0
      %2567 = vmatpush1.bf16.msra.mxu0 0
      %2568 = vmatprep.subr.bf16.mxu0 0
      %2569 = vmatpush1.bf16.msra.mxu0 0
      %2570 = vmatprep.subr.bf16.mxu0 0
      %2571 = vmatpush1.bf16.msra.mxu0 0
      %2572 = vmatprep.subr.bf16.mxu0 0
      %2573 = vmatpush1.bf16.msra.mxu0 0
      %2574 = vmatprep.subr.bf16.mxu0 0
      %2575 = vmatpush1.bf16.msra.mxu0 0
      %2576 = vmatprep.subr.bf16.mxu0 0
      %2577 = vmatpush1.bf16.msra.mxu0 0
      %2578 = vmatprep.mubr.bf16.mxu0 0
      %2579 = vmatmul.mubr.bf16.gmra.mrb[0].mxu0 %v2315
      %v2580 = vpop.f32.mrb[0].mxu0
      %v2581 = vadd.f32 %v2516, %v2580
      %v2582 = vpop.f32.mrb[0].mxu0
      %v2583 = vpop.f32.mrb[0].mxu0
      %v2584 = vadd.f32 %v2519, %v2583
      %v2585 = vpop.f32.mrb[0].mxu0
      %2586 = vmatprep.mubr.bf16.mxu0 0
      %2587 = vmatmul.mubr.bf16.gmra.mrb[0].mxu0 %v2318
      %v2588 = vpop.f32.mrb[0].mxu0
      %v2589 = vadd.f32 %v2524, %v2588
      %v2590 = vpop.f32.mrb[0].mxu0
      %v2591 = vpop.f32.mrb[0].mxu0
      %v2592 = vadd.f32 %v2527, %v2591
      %v2593 = vpop.f32.mrb[0].mxu0
      %2594 = vmatprep.mubr.bf16.mxu0 0
      %2595 = vmatmul.mubr.bf16.gmra.mrb[0].mxu0 %v2321
      %v2596 = vpop.f32.mrb[0].mxu0
      %v2597 = vadd.f32 %v2532, %v2596
      %v2598 = vpop.f32.mrb[0].mxu0
      %v2599 = vpop.f32.mrb[0].mxu0
      %v2600 = vadd.f32 %v2535, %v2599
      %v2601 = vpop.f32.mrb[0].mxu0
      %2602 = vmatprep.mubr.bf16.mxu0 0
      %2603 = vmatmul.mubr.bf16.gmra.mrb[0].mxu0 %v2324
      %v2604 = vpop.f32.mrb[0].mxu0
      %v2605 = vadd.f32 %v2540, %v2604
      %v2606 = vpop.f32.mrb[0].mxu0
      %v2607 = vpop.f32.mrb[0].mxu0
      %v2608 = vadd.f32 %v2543, %v2607
      %v2609 = vpop.f32.mrb[0].mxu0
      %2610 = vdwg.mxu0
      %v2611 = vadd.f32 %v2256, %v2581
      %v2612 = vadd.f32 %v2257, %v2584
      %v2613 = vadd.f32 %v2258, %v2589
      %v2614 = vadd.f32 %v2259, %v2592
      %v2615 = vadd.f32 %v2260, %v2597
      %v2616 = vadd.f32 %v2261, %v2600
      %v2617 = vadd.f32 %v2262, %v2605
      %v2618 = vadd.f32 %v2263, %v2608
      %2619 = vst [vmem:[#allocation2] sm:$0xff] %v2611
      %2620 = vst [vmem:[#allocation2 + $0x8] sm:$0xff] %v2612
      %2621 = vst [vmem:[#allocation2 + $0x10] sm:$0xff] %v2613
      %2622 = vst [vmem:[#allocation2 + $0x18] sm:$0xff] %v2614
      %2623 = vst [vmem:[#allocation2 + $0x20] sm:$0xff] %v2615
      %2624 = vst [vmem:[#allocation2 + $0x28] sm:$0xff] %v2616
      %2625 = vst [vmem:[#allocation2 + $0x30] sm:$0xff] %v2617
      %2626 = vst [vmem:[#allocation2 + $0x38] sm:$0xff] %v2618
      %v2627 = vunpack.c.l.b16 %v1826
      %v2628 = vunpack.c.l.b16 %v1866
      %v2629 = vld [vmem:[#allocation2] sm:$0xff]
      %v2630 = vld [vmem:[#allocation2 + $0x8] sm:$0xff]
      %v2631 = vld [vmem:[#allocation2 + $0x10] sm:$0xff]
      %v2632 = vld [vmem:[#allocation2 + $0x18] sm:$0xff]
      %v2633 = vld [vmem:[#allocation2 + $0x20] sm:$0xff]
      %v2634 = vld [vmem:[#allocation2 + $0x28] sm:$0xff]
      %v2635 = vld [vmem:[#allocation2 + $0x30] sm:$0xff]
      %v2636 = vld [vmem:[#allocation2 + $0x38] sm:$0xff]
      %s2637 = scalar_lea.vmem %s3, 960
      %v2638 = vld [vmem:[%s2637] sm:$0xf]
      %v2639 = vld [vmem:[%s2637 + $0x4] sm:$0xf]
      %v2640 = vld [vmem:[%s2637 + $0x8] sm:$0xf]
      %v2641 = vld [vmem:[%s2637 + $0xc] sm:$0xf]
      %v2642 = vld [vmem:[%s2637 + $0x10] sm:$0xf]
      %v2643 = vld [vmem:[%s2637 + $0x14] sm:$0xf]
      %v2644 = vld [vmem:[%s2637 + $0x18] sm:$0xf]
      %v2645 = vld [vmem:[%s2637 + $0x1c] sm:$0xf]
      %v2646 = vld [vmem:[%s2637 + $0x20] sm:$0xf]
      %v2647 = vld [vmem:[%s2637 + $0x24] sm:$0xf]
      %v2648 = vld [vmem:[%s2637 + $0x28] sm:$0xf]
      %v2649 = vld [vmem:[%s2637 + $0x2c] sm:$0xf]
      %v2650 = vld [vmem:[%s2637 + $0x30] sm:$0xf]
      %v2651 = vld [vmem:[%s2637 + $0x34] sm:$0xf]
      %v2652 = vld [vmem:[%s2637 + $0x38] sm:$0xf]
      %v2653 = vld [vmem:[%s2637 + $0x3c] sm:$0xf]
      %v2654 = vld [vmem:[%s2637 + $0x40] sm:$0xf]
      %v2655 = vld [vmem:[%s2637 + $0x44] sm:$0xf]
      %v2656 = vld [vmem:[%s2637 + $0x48] sm:$0xf]
      %v2657 = vld [vmem:[%s2637 + $0x4c] sm:$0xf]
      %v2658 = vld [vmem:[%s2637 + $0x50] sm:$0xf]
      %v2659 = vld [vmem:[%s2637 + $0x54] sm:$0xf]
      %v2660 = vld [vmem:[%s2637 + $0x58] sm:$0xf]
      %v2661 = vld [vmem:[%s2637 + $0x5c] sm:$0xf]
      %v2662 = vld [vmem:[%s2637 + $0x60] sm:$0xf]
      %v2663 = vld [vmem:[%s2637 + $0x64] sm:$0xf]
      %v2664 = vld [vmem:[%s2637 + $0x68] sm:$0xf]
      %v2665 = vld [vmem:[%s2637 + $0x6c] sm:$0xf]
      %v2666 = vld [vmem:[%s2637 + $0x70] sm:$0xf]
      %v2667 = vld [vmem:[%s2637 + $0x74] sm:$0xf]
      %v2668 = vld [vmem:[%s2637 + $0x78] sm:$0xf]
      %v2669 = vld [vmem:[%s2637 + $0x7c] sm:$0xf]
      %v2670 = vld [vmem:[%s2637 + $0x80] sm:$0xf]
      %v2671 = vld [vmem:[%s2637 + $0x84] sm:$0xf]
      %v2672 = vld [vmem:[%s2637 + $0x88] sm:$0xf]
      %v2673 = vld [vmem:[%s2637 + $0x8c] sm:$0xf]
      %v2674 = vld [vmem:[%s2637 + $0x90] sm:$0xf]
      %v2675 = vld [vmem:[%s2637 + $0x94] sm:$0xf]
      %v2676 = vld [vmem:[%s2637 + $0x98] sm:$0xf]
      %v2677 = vld [vmem:[%s2637 + $0x9c] sm:$0xf]
      %v2678 = vld [vmem:[%s2637 + $0xa0] sm:$0xf]
      %v2679 = vld [vmem:[%s2637 + $0xa4] sm:$0xf]
      %v2680 = vld [vmem:[%s2637 + $0xa8] sm:$0xf]
      %v2681 = vld [vmem:[%s2637 + $0xac] sm:$0xf]
      %v2682 = vld [vmem:[%s2637 + $0xb0] sm:$0xf]
      %v2683 = vld [vmem:[%s2637 + $0xb4] sm:$0xf]
      %v2684 = vld [vmem:[%s2637 + $0xb8] sm:$0xf]
      %v2685 = vld [vmem:[%s2637 + $0xbc] sm:$0xf]
      %v2686 = vpack.c.b16 %v1745, %v1743
      %v2687 = vpack.c.b16 %v2627, %v2254
      %v2688 = vpack.c.b16 %v2628, %v2255
      %v2740 = vunpack.c.l.b16 %v2638
      %v2741 = vunpack.c.l.b16 %v2639
      %v2742 = vunpack.c.l.b16 %v2640
      %v2743 = vunpack.c.l.b16 %v2641
      %v2744 = vunpack.c.l.b16 %v2642
      %v2745 = vunpack.c.l.b16 %v2643
      %v2746 = vunpack.c.l.b16 %v2644
      %v2747 = vunpack.c.l.b16 %v2645
      %v2748 = vunpack.c.l.b16 %v2646
      %v2749 = vunpack.c.l.b16 %v2647
      %v2750 = vunpack.c.l.b16 %v2648
      %v2751 = vunpack.c.l.b16 %v2649
      %v2752 = vunpack.c.l.b16 %v2650
      %v2753 = vunpack.c.l.b16 %v2651
      %v2754 = vunpack.c.l.b16 %v2652
      %v2755 = vunpack.c.l.b16 %v2653
      %v2756 = vunpack.c.l.b16 %v2654
      %v2757 = vunpack.c.l.b16 %v2655
      %v2758 = vunpack.c.l.b16 %v2656
      %v2759 = vunpack.c.l.b16 %v2657
      %v2760 = vunpack.c.l.b16 %v2658
      %v2761 = vunpack.c.l.b16 %v2659
      %v2762 = vunpack.c.l.b16 %v2660
      %v2763 = vunpack.c.l.b16 %v2661
      %v2764 = vunpack.c.l.b16 %v2662
      %v2765 = vunpack.c.l.b16 %v2663
      %v2766 = vunpack.c.l.b16 %v2664
      %v2767 = vunpack.c.l.b16 %v2665
      %v2768 = vunpack.c.l.b16 %v2666
      %v2769 = vunpack.c.l.b16 %v2667
      %v2770 = vunpack.c.l.b16 %v2668
      %v2771 = vunpack.c.l.b16 %v2669
      %v2772 = vunpack.c.l.b16 %v2670
      %v2773 = vunpack.c.l.b16 %v2671
      %v2774 = vunpack.c.l.b16 %v2672
      %v2775 = vunpack.c.l.b16 %v2673
      %v2776 = vunpack.c.l.b16 %v2674
      %v2777 = vunpack.c.l.b16 %v2675
      %v2778 = vunpack.c.l.b16 %v2676
      %v2779 = vunpack.c.l.b16 %v2677
      %v2780 = vunpack.c.l.b16 %v2678
      %v2781 = vunpack.c.l.b16 %v2679
      %v2782 = vunpack.c.l.b16 %v2680
      %v2783 = vunpack.c.l.b16 %v2681
      %v2784 = vunpack.c.l.b16 %v2682
      %v2785 = vunpack.c.l.b16 %v2683
      %v2786 = vunpack.c.l.b16 %v2684
      %v2787 = vunpack.c.l.b16 %v2685
      %v2788 = vpack.c.b16 %v2741, %v2740
      %v2789 = vpack.c.b16 %v2743, %v2742
      %v2790 = vpack.c.b16 %v2745, %v2744
      %v2791 = vpack.c.b16 %v2747, %v2746
      %v2792 = vpack.c.b16 %v2749, %v2748
      %v2793 = vpack.c.b16 %v2751, %v2750
      %v2794 = vpack.c.b16 %v2753, %v2752
      %v2795 = vpack.c.b16 %v2755, %v2754
      %v2796 = vpack.c.b16 %v2757, %v2756
      %v2797 = vpack.c.b16 %v2759, %v2758
      %v2798 = vpack.c.b16 %v2761, %v2760
      %v2799 = vpack.c.b16 %v2763, %v2762
      %v2800 = vpack.c.b16 %v2765, %v2764
      %v2801 = vpack.c.b16 %v2767, %v2766
      %v2802 = vpack.c.b16 %v2769, %v2768
      %v2803 = vpack.c.b16 %v2771, %v2770
      %v2804 = vpack.c.b16 %v2773, %v2772
      %v2805 = vpack.c.b16 %v2775, %v2774
      %v2806 = vpack.c.b16 %v2777, %v2776
      %v2807 = vpack.c.b16 %v2779, %v2778
      %v2808 = vpack.c.b16 %v2781, %v2780
      %v2809 = vpack.c.b16 %v2783, %v2782
      %v2810 = vpack.c.b16 %v2785, %v2784
      %v2811 = vpack.c.b16 %v2787, %v2786
      %2836 = vmatprep.subr.bf16.mxu0 0
      %2837 = vmatpush1.bf16.msra.mxu0 %v2788
      %2838 = vmatprep.subr.bf16.mxu0 0
      %2839 = vmatpush1.bf16.msra.mxu0 %v2789
      %2840 = vmatprep.subr.bf16.mxu0 0
      %2841 = vmatpush1.bf16.msra.mxu0 %v2790
      %2842 = vmatprep.subr.bf16.mxu0 0
      %2843 = vmatpush1.bf16.msra.mxu0 %v2791
      %2844 = vmatprep.subr.bf16.mxu0 0
      %2845 = vmatpush1.bf16.msra.mxu0 %v2792
      %2846 = vmatprep.subr.bf16.mxu0 0
      %2847 = vmatpush1.bf16.msra.mxu0 %v2793
      %2848 = vmatprep.subr.bf16.mxu0 0
      %2849 = vmatpush1.bf16.msra.mxu0 %v2794
      %2850 = vmatprep.subr.bf16.mxu0 0
      %2851 = vmatpush1.bf16.msra.mxu0 %v2795
      %2852 = vmatprep.subr.bf16.mxu0 0
      %2853 = vmatpush1.bf16.msra.mxu0 %v2796
      %2854 = vmatprep.subr.bf16.mxu0 0
      %2855 = vmatpush1.bf16.msra.mxu0 %v2797
      %2856 = vmatprep.subr.bf16.mxu0 0
      %2857 = vmatpush1.bf16.msra.mxu0 %v2798
      %2858 = vmatprep.subr.bf16.mxu0 0
      %2859 = vmatpush1.bf16.msra.mxu0 %v2799
      %2860 = vmatprep.subr.bf16.mxu0 0
      %2861 = vmatpush1.bf16.msra.mxu0 %v2800
      %2862 = vmatprep.subr.bf16.mxu0 0
      %2863 = vmatpush1.bf16.msra.mxu0 %v2801
      %2864 = vmatprep.subr.bf16.mxu0 0
      %2865 = vmatpush1.bf16.msra.mxu0 %v2802
      %2866 = vmatprep.subr.bf16.mxu0 0
      %2867 = vmatpush1.bf16.msra.mxu0 %v2803
      %2868 = vmatprep.mubr.bf16.mxu0 %v1944
      %2869 = vmatmul.mubr.bf16.gmra.mrb[0].mxu0 %v1943
      %v2870 = vpop.f32.mrb[0].mxu0
      %v2871 = vadd.f32 0.0, %v2870
      %v2872 = vpop.f32.mrb[0].mxu0
      %v2873 = vpop.f32.mrb[0].mxu0
      %v2874 = vadd.f32 0.0, %v2873
      %v2875 = vpop.f32.mrb[0].mxu0
      %2876 = vmatprep.mubr.bf16.mxu0 %v1947
      %2877 = vmatmul.mubr.bf16.gmra.mrb[0].mxu0 %v1946
      %v2878 = vpop.f32.mrb[0].mxu0
      %v2879 = vadd.f32 0.0, %v2878
      %v2880 = vpop.f32.mrb[0].mxu0
      %v2881 = vpop.f32.mrb[0].mxu0
      %v2882 = vadd.f32 0.0, %v2881
      %v2883 = vpop.f32.mrb[0].mxu0
      %2884 = vmatprep.mubr.bf16.mxu0 %v1950
      %2885 = vmatmul.mubr.bf16.gmra.mrb[0].mxu0 %v1949
      %v2886 = vpop.f32.mrb[0].mxu0
      %v2887 = vadd.f32 0.0, %v2886
      %v2888 = vpop.f32.mrb[0].mxu0
      %v2889 = vpop.f32.mrb[0].mxu0
      %v2890 = vadd.f32 0.0, %v2889
      %v2891 = vpop.f32.mrb[0].mxu0
      %2892 = vmatprep.mubr.bf16.mxu0 %v2687
      %2893 = vmatmul.mubr.bf16.gmra.mrb[0].mxu0 %v2686
      %v2894 = vpop.f32.mrb[0].mxu0
      %v2895 = vadd.f32 0.0, %v2894
      %v2896 = vpop.f32.mrb[0].mxu0
      %v2897 = vpop.f32.mrb[0].mxu0
      %v2898 = vadd.f32 0.0, %v2897
      %v2899 = vpop.f32.mrb[0].mxu0
      %2900 = vdwg.mxu0
      %2901 = vmatprep.subr.bf16.mxu0 0
      %2902 = vmatpush1.bf16.msra.mxu0 %v2804
      %2903 = vmatprep.subr.bf16.mxu0 0
      %2904 = vmatpush1.bf16.msra.mxu0 %v2805
      %2905 = vmatprep.subr.bf16.mxu0 0
      %2906 = vmatpush1.bf16.msra.mxu0 %v2806
      %2907 = vmatprep.subr.bf16.mxu0 0
      %2908 = vmatpush1.bf16.msra.mxu0 %v2807
      %2909 = vmatprep.subr.bf16.mxu0 0
      %2910 = vmatpush1.bf16.msra.mxu0 %v2808
      %2911 = vmatprep.subr.bf16.mxu0 0
      %2912 = vmatpush1.bf16.msra.mxu0 %v2809
      %2913 = vmatprep.subr.bf16.mxu0 0
      %2914 = vmatpush1.bf16.msra.mxu0 %v2810
      %2915 = vmatprep.subr.bf16.mxu0 0
      %2916 = vmatpush1.bf16.msra.mxu0 %v2811
      %2917 = vmatprep.subr.bf16.mxu0 0
      %2918 = vmatpush1.bf16.msra.mxu0 0
      %2919 = vmatprep.subr.bf16.mxu0 0
      %2920 = vmatpush1.bf16.msra.mxu0 0
      %2921 = vmatprep.subr.bf16.mxu0 0
      %2922 = vmatpush1.bf16.msra.mxu0 0
      %2923 = vmatprep.subr.bf16.mxu0 0
      %2924 = vmatpush1.bf16.msra.mxu0 0
      %2925 = vmatprep.subr.bf16.mxu0 0
      %2926 = vmatpush1.bf16.msra.mxu0 0
      %2927 = vmatprep.subr.bf16.mxu0 0
      %2928 = vmatpush1.bf16.msra.mxu0 0
      %2929 = vmatprep.subr.bf16.mxu0 0
      %2930 = vmatpush1.bf16.msra.mxu0 0
      %2931 = vmatprep.subr.bf16.mxu0 0
      %2932 = vmatpush1.bf16.msra.mxu0 0
      %2933 = vmatprep.mubr.bf16.mxu0 0
      %2934 = vmatmul.mubr.bf16.gmra.mrb[0].mxu0 %v1945
      %v2935 = vpop.f32.mrb[0].mxu0
      %v2936 = vadd.f32 %v2871, %v2935
      %v2937 = vpop.f32.mrb[0].mxu0
      %v2938 = vpop.f32.mrb[0].mxu0
      %v2939 = vadd.f32 %v2874, %v2938
      %v2940 = vpop.f32.mrb[0].mxu0
      %2941 = vmatprep.mubr.bf16.mxu0 0
      %2942 = vmatmul.mubr.bf16.gmra.mrb[0].mxu0 %v1948
      %v2943 = vpop.f32.mrb[0].mxu0
      %v2944 = vadd.f32 %v2879, %v2943
      %v2945 = vpop.f32.mrb[0].mxu0
      %v2946 = vpop.f32.mrb[0].mxu0
      %v2947 = vadd.f32 %v2882, %v2946
      %v2948 = vpop.f32.mrb[0].mxu0
      %2949 = vmatprep.mubr.bf16.mxu0 0
      %2950 = vmatmul.mubr.bf16.gmra.mrb[0].mxu0 %v1951
      %v2951 = vpop.f32.mrb[0].mxu0
      %v2952 = vadd.f32 %v2887, %v2951
      %v2953 = vpop.f32.mrb[0].mxu0
      %v2954 = vpop.f32.mrb[0].mxu0
      %v2955 = vadd.f32 %v2890, %v2954
      %v2956 = vpop.f32.mrb[0].mxu0
      %2957 = vmatprep.mubr.bf16.mxu0 0
      %2958 = vmatmul.mubr.bf16.gmra.mrb[0].mxu0 %v2688
      %v2959 = vpop.f32.mrb[0].mxu0
      %v2960 = vadd.f32 %v2895, %v2959
      %v2961 = vpop.f32.mrb[0].mxu0
      %v2962 = vpop.f32.mrb[0].mxu0
      %v2963 = vadd.f32 %v2898, %v2962
      %v2964 = vpop.f32.mrb[0].mxu0
      %2965 = vdwg.mxu0
      %v2966 = vadd.f32 %v2629, %v2936
      %v2967 = vadd.f32 %v2630, %v2939
      %v2968 = vadd.f32 %v2631, %v2944
      %v2969 = vadd.f32 %v2632, %v2947
      %v2970 = vadd.f32 %v2633, %v2952
      %v2971 = vadd.f32 %v2634, %v2955
      %v2972 = vadd.f32 %v2635, %v2960
      %v2973 = vadd.f32 %v2636, %v2963
      %2974 = vst [vmem:[#allocation2] sm:$0xff] %v2966
      %2975 = vst [vmem:[#allocation2 + $0x8] sm:$0xff] %v2967
      %2976 = vst [vmem:[#allocation2 + $0x10] sm:$0xff] %v2968
      %2977 = vst [vmem:[#allocation2 + $0x18] sm:$0xff] %v2969
      %2978 = vst [vmem:[#allocation2 + $0x20] sm:$0xff] %v2970
      %2979 = vst [vmem:[#allocation2 + $0x28] sm:$0xff] %v2971
      %2980 = vst [vmem:[#allocation2 + $0x30] sm:$0xff] %v2972
      %2981 = vst [vmem:[#allocation2 + $0x38] sm:$0xff] %v2973
      %v2982 = vld [vmem:[%s345] sm:$0xf]
      %v2983 = vld [vmem:[%s345 + $0x8] sm:$0xf]
      %v2984 = vld [vmem:[%s345 + $0x10] sm:$0xf]
      %v2985 = vld [vmem:[%s345 + $0x18] sm:$0xf]
      %v2986 = vld [vmem:[%s345 + $0x20] sm:$0xf]
      %v2987 = vld [vmem:[%s345 + $0x28] sm:$0xf]
      %v2988 = vld [vmem:[%s345 + $0x30] sm:$0xf]
      %v2989 = vld [vmem:[%s345 + $0x38] sm:$0xf]
      %v2990 = vld [vmem:[%s345 + $0x40] sm:$0xf]
      %v2991 = vld [vmem:[%s345 + $0x48] sm:$0xf]
      %v2992 = vld [vmem:[%s345 + $0x4] sm:$0x1]
      %v2993 = vld [vmem:[%s345 + $0xc] sm:$0x1]
      %v2994 = vld [vmem:[%s345 + $0x14] sm:$0x1]
      %v2995 = vld [vmem:[%s345 + $0x1c] sm:$0x1]
      %v2996 = vld [vmem:[%s345 + $0x24] sm:$0x1]
      %v2997 = vld [vmem:[%s345 + $0x2c] sm:$0x1]
      %v2998 = vld [vmem:[%s345 + $0x34] sm:$0x1]
      %v2999 = vld [vmem:[%s345 + $0x3c] sm:$0x1]
      %v3000 = vld [vmem:[%s345 + $0x44] sm:$0x1]
      %v3001 = vld [vmem:[%s345 + $0x4c] sm:$0x1]
      %v3002 = vld [vmem:[%s345] sm:$0xe]
      %v3003 = vld [vmem:[%s345 + $0x8] sm:$0xe]
      %v3004 = vld [vmem:[%s345 + $0x10] sm:$0xe]
      %v3005 = vld [vmem:[%s345 + $0x18] sm:$0xe]
      %v3006 = vld [vmem:[%s345 + $0x20] sm:$0xe]
      %v3007 = vld [vmem:[%s345 + $0x28] sm:$0xe]
      %v3008 = vld [vmem:[%s345 + $0x30] sm:$0xe]
      %v3009 = vld [vmem:[%s345 + $0x38] sm:$0xe]
      %v3010 = vld [vmem:[%s345 + $0x40] sm:$0xe]
      %v3011 = vld [vmem:[%s345 + $0x48] sm:$0xe]
      %v3032 = vunpack.c.l.b16 %v2982
      %v3033 = vunpack.c.l.b16 %v2992
      %v3034 = vunpack.c.l.b16 %v2983
      %v3035 = vunpack.c.l.b16 %v2993
      %v3036 = vunpack.c.l.b16 %v2984
      %v3037 = vunpack.c.l.b16 %v2994
      %v3038 = vunpack.c.l.b16 %v2985
      %v3039 = vunpack.c.l.b16 %v2995
      %v3040 = vunpack.c.l.b16 %v2986
      %v3041 = vunpack.c.l.b16 %v2996
      %v3042 = vunpack.c.l.b16 %v2987
      %v3043 = vunpack.c.l.b16 %v2997
      %v3044 = vunpack.c.l.b16 %v2988
      %v3045 = vunpack.c.l.b16 %v2998
      %v3046 = vunpack.c.l.b16 %v2989
      %v3047 = vunpack.c.l.b16 %v2999
      %v3048 = vunpack.c.l.b16 %v2990
      %v3049 = vunpack.c.l.b16 %v3000
      %v3050 = vunpack.c.l.b16 %v2991
      %v3051 = vunpack.c.l.b16 %v3001
      %v3052 = vpack.c.b16 %v3033, %v3032
      %v3053 = vpack.c.b16 %v3035, %v3034
      %v3054 = vpack.c.b16 %v3037, %v3036
      %v3055 = vpack.c.b16 %v3039, %v3038
      %v3056 = vpack.c.b16 %v3041, %v3040
      %v3057 = vpack.c.b16 %v3043, %v3042
      %v3058 = vpack.c.b16 %v3045, %v3044
      %v3059 = vpack.c.b16 %v3047, %v3046
      %v3060 = vpack.c.b16 %v3049, %v3048
      %v3061 = vpack.c.b16 %v3051, %v3050
      %v3063 = vshrl.u32 %v3052, 16
      %v3065 = vshll.u32 %v3052, 16
      %v3067 = vrot.slane %v3065, 1
      %v3068 = vor.u32 %v3063, %v3067
      %v3070 = vshrl.u32 %v3053, 16
      %v3072 = vshll.u32 %v3053, 16
      %v3074 = vrot.slane %v3072, 1
      %v3075 = vor.u32 %v3070, %v3074
      %v3077 = vshrl.u32 %v3054, 16
      %v3079 = vshll.u32 %v3054, 16
      %v3081 = vrot.slane %v3079, 1
      %v3082 = vor.u32 %v3077, %v3081
      %v3084 = vshrl.u32 %v3055, 16
      %v3086 = vshll.u32 %v3055, 16
      %v3088 = vrot.slane %v3086, 1
      %v3089 = vor.u32 %v3084, %v3088
      %v3091 = vshrl.u32 %v3056, 16
      %v3093 = vshll.u32 %v3056, 16
      %v3095 = vrot.slane %v3093, 1
      %v3096 = vor.u32 %v3091, %v3095
      %v3098 = vshrl.u32 %v3057, 16
      %v3100 = vshll.u32 %v3057, 16
      %v3102 = vrot.slane %v3100, 1
      %v3103 = vor.u32 %v3098, %v3102
      %v3105 = vshrl.u32 %v3058, 16
      %v3107 = vshll.u32 %v3058, 16
      %v3109 = vrot.slane %v3107, 1
      %v3110 = vor.u32 %v3105, %v3109
      %v3112 = vshrl.u32 %v3059, 16
      %v3114 = vshll.u32 %v3059, 16
      %v3116 = vrot.slane %v3114, 1
      %v3117 = vor.u32 %v3112, %v3116
      %v3119 = vshrl.u32 %v3060, 16
      %v3121 = vshll.u32 %v3060, 16
      %v3123 = vrot.slane %v3121, 1
      %v3124 = vor.u32 %v3119, %v3123
      %v3126 = vshrl.u32 %v3061, 16
      %v3128 = vshll.u32 %v3061, 16
      %v3130 = vrot.slane %v3128, 1
      %v3131 = vor.u32 %v3126, %v3130
      %v3142 = vunpack.c.l.b16 %v3002
      %v3143 = vunpack.c.l.b16 %v3003
      %v3144 = vunpack.c.l.b16 %v3004
      %v3145 = vunpack.c.l.b16 %v3005
      %v3146 = vunpack.c.l.b16 %v3006
      %v3147 = vunpack.c.l.b16 %v3007
      %v3148 = vunpack.c.l.b16 %v3008
      %v3149 = vunpack.c.l.b16 %v3009
      %v3150 = vunpack.c.l.b16 %v3010
      %v3151 = vunpack.c.l.b16 %v3011
      %v3152 = vpack.c.b16 %v3033, %v3142
      %v3153 = vpack.c.b16 %v3035, %v3143
      %v3154 = vpack.c.b16 %v3037, %v3144
      %v3155 = vpack.c.b16 %v3039, %v3145
      %v3156 = vpack.c.b16 %v3041, %v3146
      %v3157 = vpack.c.b16 %v3043, %v3147
      %v3158 = vpack.c.b16 %v3045, %v3148
      %v3159 = vpack.c.b16 %v3047, %v3149
      %v3160 = vpack.c.b16 %v3049, %v3150
      %v3161 = vpack.c.b16 %v3051, %v3151
      %v3162 = vrot.slane %v3152, 1
      %v3163 = vrot.slane %v3153, 1
      %v3164 = vrot.slane %v3154, 1
      %v3165 = vrot.slane %v3155, 1
      %v3166 = vrot.slane %v3156, 1
      %v3167 = vrot.slane %v3157, 1
      %v3168 = vrot.slane %v3158, 1
      %v3169 = vrot.slane %v3159, 1
      %v3170 = vrot.slane %v3160, 1
      %v3171 = vrot.slane %v3161, 1
      %v3172 = vunpack.c.l.b16 %v3068
      %v3173 = vunpack.c.l.b16 %v3162
      %v3174 = vunpack.c.l.b16 %v3075
      %v3175 = vunpack.c.l.b16 %v3163
      %v3176 = vunpack.c.l.b16 %v3082
      %v3177 = vunpack.c.l.b16 %v3164
      %v3178 = vunpack.c.l.b16 %v3089
      %v3179 = vunpack.c.l.b16 %v3165
      %v3180 = vunpack.c.l.b16 %v3096
      %v3181 = vunpack.c.l.b16 %v3166
      %v3182 = vunpack.c.l.b16 %v3103
      %v3183 = vunpack.c.l.b16 %v3167
      %v3184 = vunpack.c.l.b16 %v3110
      %v3185 = vunpack.c.l.b16 %v3168
      %v3186 = vunpack.c.l.b16 %v3117
      %v3187 = vunpack.c.l.b16 %v3169
      %v3188 = vld [vmem:[#allocation2] sm:$0xff]
      %v3189 = vld [vmem:[#allocation2 + $0x8] sm:$0xff]
      %v3190 = vld [vmem:[#allocation2 + $0x10] sm:$0xff]
      %v3191 = vld [vmem:[#allocation2 + $0x18] sm:$0xff]
      %v3192 = vld [vmem:[#allocation2 + $0x20] sm:$0xff]
      %v3193 = vld [vmem:[#allocation2 + $0x28] sm:$0xff]
      %v3194 = vld [vmem:[#allocation2 + $0x30] sm:$0xff]
      %v3195 = vld [vmem:[#allocation2 + $0x38] sm:$0xff]
      %s3196 = scalar_lea.vmem %s3, 1152
      %v3197 = vld [vmem:[%s3196] sm:$0xf]
      %v3198 = vld [vmem:[%s3196 + $0x4] sm:$0xf]
      %v3199 = vld [vmem:[%s3196 + $0x8] sm:$0xf]
      %v3200 = vld [vmem:[%s3196 + $0xc] sm:$0xf]
      %v3201 = vld [vmem:[%s3196 + $0x10] sm:$0xf]
      %v3202 = vld [vmem:[%s3196 + $0x14] sm:$0xf]
      %v3203 = vld [vmem:[%s3196 + $0x18] sm:$0xf]
      %v3204 = vld [vmem:[%s3196 + $0x1c] sm:$0xf]
      %v3205 = vld [vmem:[%s3196 + $0x20] sm:$0xf]
      %v3206 = vld [vmem:[%s3196 + $0x24] sm:$0xf]
      %v3207 = vld [vmem:[%s3196 + $0x28] sm:$0xf]
      %v3208 = vld [vmem:[%s3196 + $0x2c] sm:$0xf]
      %v3209 = vld [vmem:[%s3196 + $0x30] sm:$0xf]
      %v3210 = vld [vmem:[%s3196 + $0x34] sm:$0xf]
      %v3211 = vld [vmem:[%s3196 + $0x38] sm:$0xf]
      %v3212 = vld [vmem:[%s3196 + $0x3c] sm:$0xf]
      %v3213 = vld [vmem:[%s3196 + $0x40] sm:$0xf]
      %v3214 = vld [vmem:[%s3196 + $0x44] sm:$0xf]
      %v3215 = vld [vmem:[%s3196 + $0x48] sm:$0xf]
      %v3216 = vld [vmem:[%s3196 + $0x4c] sm:$0xf]
      %v3217 = vld [vmem:[%s3196 + $0x50] sm:$0xf]
      %v3218 = vld [vmem:[%s3196 + $0x54] sm:$0xf]
      %v3219 = vld [vmem:[%s3196 + $0x58] sm:$0xf]
      %v3220 = vld [vmem:[%s3196 + $0x5c] sm:$0xf]
      %v3221 = vld [vmem:[%s3196 + $0x60] sm:$0xf]
      %v3222 = vld [vmem:[%s3196 + $0x64] sm:$0xf]
      %v3223 = vld [vmem:[%s3196 + $0x68] sm:$0xf]
      %v3224 = vld [vmem:[%s3196 + $0x6c] sm:$0xf]
      %v3225 = vld [vmem:[%s3196 + $0x70] sm:$0xf]
      %v3226 = vld [vmem:[%s3196 + $0x74] sm:$0xf]
      %v3227 = vld [vmem:[%s3196 + $0x78] sm:$0xf]
      %v3228 = vld [vmem:[%s3196 + $0x7c] sm:$0xf]
      %v3229 = vld [vmem:[%s3196 + $0x80] sm:$0xf]
      %v3230 = vld [vmem:[%s3196 + $0x84] sm:$0xf]
      %v3231 = vld [vmem:[%s3196 + $0x88] sm:$0xf]
      %v3232 = vld [vmem:[%s3196 + $0x8c] sm:$0xf]
      %v3233 = vld [vmem:[%s3196 + $0x90] sm:$0xf]
      %v3234 = vld [vmem:[%s3196 + $0x94] sm:$0xf]
      %v3235 = vld [vmem:[%s3196 + $0x98] sm:$0xf]
      %v3236 = vld [vmem:[%s3196 + $0x9c] sm:$0xf]
      %v3237 = vld [vmem:[%s3196 + $0xa0] sm:$0xf]
      %v3238 = vld [vmem:[%s3196 + $0xa4] sm:$0xf]
      %v3239 = vld [vmem:[%s3196 + $0xa8] sm:$0xf]
      %v3240 = vld [vmem:[%s3196 + $0xac] sm:$0xf]
      %v3241 = vld [vmem:[%s3196 + $0xb0] sm:$0xf]
      %v3242 = vld [vmem:[%s3196 + $0xb4] sm:$0xf]
      %v3243 = vld [vmem:[%s3196 + $0xb8] sm:$0xf]
      %v3244 = vld [vmem:[%s3196 + $0xbc] sm:$0xf]
      %v3245 = vpack.c.b16 %v3034, %v3032
      %v3246 = vpack.c.b16 %v3174, %v3172
      %v3247 = vpack.c.b16 %v3175, %v3173
      %v3248 = vpack.c.b16 %v3038, %v3036
      %v3249 = vpack.c.b16 %v3178, %v3176
      %v3250 = vpack.c.b16 %v3179, %v3177
      %v3251 = vpack.c.b16 %v3042, %v3040
      %v3252 = vpack.c.b16 %v3182, %v3180
      %v3253 = vpack.c.b16 %v3183, %v3181
      %v3254 = vpack.c.b16 %v3046, %v3044
      %v3255 = vpack.c.b16 %v3186, %v3184
      %v3256 = vpack.c.b16 %v3187, %v3185
      %v3317 = vunpack.c.l.b16 %v3197
      %v3318 = vunpack.c.l.b16 %v3198
      %v3319 = vunpack.c.l.b16 %v3199
      %v3320 = vunpack.c.l.b16 %v3200
      %v3321 = vunpack.c.l.b16 %v3201
      %v3322 = vunpack.c.l.b16 %v3202
      %v3323 = vunpack.c.l.b16 %v3203
      %v3324 = vunpack.c.l.b16 %v3204
      %v3325 = vunpack.c.l.b16 %v3205
      %v3326 = vunpack.c.l.b16 %v3206
      %v3327 = vunpack.c.l.b16 %v3207
      %v3328 = vunpack.c.l.b16 %v3208
      %v3329 = vunpack.c.l.b16 %v3209
      %v3330 = vunpack.c.l.b16 %v3210
      %v3331 = vunpack.c.l.b16 %v3211
      %v3332 = vunpack.c.l.b16 %v3212
      %v3333 = vunpack.c.l.b16 %v3213
      %v3334 = vunpack.c.l.b16 %v3214
      %v3335 = vunpack.c.l.b16 %v3215
      %v3336 = vunpack.c.l.b16 %v3216
      %v3337 = vunpack.c.l.b16 %v3217
      %v3338 = vunpack.c.l.b16 %v3218
      %v3339 = vunpack.c.l.b16 %v3219
      %v3340 = vunpack.c.l.b16 %v3220
      %v3341 = vunpack.c.l.b16 %v3221
      %v3342 = vunpack.c.l.b16 %v3222
      %v3343 = vunpack.c.l.b16 %v3223
      %v3344 = vunpack.c.l.b16 %v3224
      %v3345 = vunpack.c.l.b16 %v3225
      %v3346 = vunpack.c.l.b16 %v3226
      %v3347 = vunpack.c.l.b16 %v3227
      %v3348 = vunpack.c.l.b16 %v3228
      %v3349 = vunpack.c.l.b16 %v3229
      %v3350 = vunpack.c.l.b16 %v3230
      %v3351 = vunpack.c.l.b16 %v3231
      %v3352 = vunpack.c.l.b16 %v3232
      %v3353 = vunpack.c.l.b16 %v3233
      %v3354 = vunpack.c.l.b16 %v3234
      %v3355 = vunpack.c.l.b16 %v3235
      %v3356 = vunpack.c.l.b16 %v3236
      %v3357 = vunpack.c.l.b16 %v3237
      %v3358 = vunpack.c.l.b16 %v3238
      %v3359 = vunpack.c.l.b16 %v3239
      %v3360 = vunpack.c.l.b16 %v3240
      %v3361 = vunpack.c.l.b16 %v3241
      %v3362 = vunpack.c.l.b16 %v3242
      %v3363 = vunpack.c.l.b16 %v3243
      %v3364 = vunpack.c.l.b16 %v3244
      %v3365 = vpack.c.b16 %v3318, %v3317
      %v3366 = vpack.c.b16 %v3320, %v3319
      %v3367 = vpack.c.b16 %v3322, %v3321
      %v3368 = vpack.c.b16 %v3324, %v3323
      %v3369 = vpack.c.b16 %v3326, %v3325
      %v3370 = vpack.c.b16 %v3328, %v3327
      %v3371 = vpack.c.b16 %v3330, %v3329
      %v3372 = vpack.c.b16 %v3332, %v3331
      %v3373 = vpack.c.b16 %v3334, %v3333
      %v3374 = vpack.c.b16 %v3336, %v3335
      %v3375 = vpack.c.b16 %v3338, %v3337
      %v3376 = vpack.c.b16 %v3340, %v3339
      %v3377 = vpack.c.b16 %v3342, %v3341
      %v3378 = vpack.c.b16 %v3344, %v3343
      %v3379 = vpack.c.b16 %v3346, %v3345
      %v3380 = vpack.c.b16 %v3348, %v3347
      %v3381 = vpack.c.b16 %v3350, %v3349
      %v3382 = vpack.c.b16 %v3352, %v3351
      %v3383 = vpack.c.b16 %v3354, %v3353
      %v3384 = vpack.c.b16 %v3356, %v3355
      %v3385 = vpack.c.b16 %v3358, %v3357
      %v3386 = vpack.c.b16 %v3360, %v3359
      %v3387 = vpack.c.b16 %v3362, %v3361
      %v3388 = vpack.c.b16 %v3364, %v3363
      %3413 = vmatprep.subr.bf16.mxu0 0
      %3414 = vmatpush1.bf16.msra.mxu0 %v3365
      %3415 = vmatprep.subr.bf16.mxu0 0
      %3416 = vmatpush1.bf16.msra.mxu0 %v3366
      %3417 = vmatprep.subr.bf16.mxu0 0
      %3418 = vmatpush1.bf16.msra.mxu0 %v3367
      %3419 = vmatprep.subr.bf16.mxu0 0
      %3420 = vmatpush1.bf16.msra.mxu0 %v3368
      %3421 = vmatprep.subr.bf16.mxu0 0
      %3422 = vmatpush1.bf16.msra.mxu0 %v3369
      %3423 = vmatprep.subr.bf16.mxu0 0
      %3424 = vmatpush1.bf16.msra.mxu0 %v3370
      %3425 = vmatprep.subr.bf16.mxu0 0
      %3426 = vmatpush1.bf16.msra.mxu0 %v3371
      %3427 = vmatprep.subr.bf16.mxu0 0
      %3428 = vmatpush1.bf16.msra.mxu0 %v3372
      %3429 = vmatprep.subr.bf16.mxu0 0
      %3430 = vmatpush1.bf16.msra.mxu0 %v3373
      %3431 = vmatprep.subr.bf16.mxu0 0
      %3432 = vmatpush1.bf16.msra.mxu0 %v3374
      %3433 = vmatprep.subr.bf16.mxu0 0
      %3434 = vmatpush1.bf16.msra.mxu0 %v3375
      %3435 = vmatprep.subr.bf16.mxu0 0
      %3436 = vmatpush1.bf16.msra.mxu0 %v3376
      %3437 = vmatprep.subr.bf16.mxu0 0
      %3438 = vmatpush1.bf16.msra.mxu0 %v3377
      %3439 = vmatprep.subr.bf16.mxu0 0
      %3440 = vmatpush1.bf16.msra.mxu0 %v3378
      %3441 = vmatprep.subr.bf16.mxu0 0
      %3442 = vmatpush1.bf16.msra.mxu0 %v3379
      %3443 = vmatprep.subr.bf16.mxu0 0
      %3444 = vmatpush1.bf16.msra.mxu0 %v3380
      %3445 = vmatprep.mubr.bf16.mxu0 %v3246
      %3446 = vmatmul.mubr.bf16.gmra.mrb[0].mxu0 %v3245
      %v3447 = vpop.f32.mrb[0].mxu0
      %v3448 = vadd.f32 0.0, %v3447
      %v3449 = vpop.f32.mrb[0].mxu0
      %v3450 = vpop.f32.mrb[0].mxu0
      %v3451 = vadd.f32 0.0, %v3450
      %v3452 = vpop.f32.mrb[0].mxu0
      %3453 = vmatprep.mubr.bf16.mxu0 %v3249
      %3454 = vmatmul.mubr.bf16.gmra.mrb[0].mxu0 %v3248
      %v3455 = vpop.f32.mrb[0].mxu0
      %v3456 = vadd.f32 0.0, %v3455
      %v3457 = vpop.f32.mrb[0].mxu0
      %v3458 = vpop.f32.mrb[0].mxu0
      %v3459 = vadd.f32 0.0, %v3458
      %v3460 = vpop.f32.mrb[0].mxu0
      %3461 = vmatprep.mubr.bf16.mxu0 %v3252
      %3462 = vmatmul.mubr.bf16.gmra.mrb[0].mxu0 %v3251
      %v3463 = vpop.f32.mrb[0].mxu0
      %v3464 = vadd.f32 0.0, %v3463
      %v3465 = vpop.f32.mrb[0].mxu0
      %v3466 = vpop.f32.mrb[0].mxu0
      %v3467 = vadd.f32 0.0, %v3466
      %v3468 = vpop.f32.mrb[0].mxu0
      %3469 = vmatprep.mubr.bf16.mxu0 %v3255
      %3470 = vmatmul.mubr.bf16.gmra.mrb[0].mxu0 %v3254
      %v3471 = vpop.f32.mrb[0].mxu0
      %v3472 = vadd.f32 0.0, %v3471
      %v3473 = vpop.f32.mrb[0].mxu0
      %v3474 = vpop.f32.mrb[0].mxu0
      %v3475 = vadd.f32 0.0, %v3474
      %v3476 = vpop.f32.mrb[0].mxu0
      %3477 = vdwg.mxu0
      %3478 = vmatprep.subr.bf16.mxu0 0
      %3479 = vmatpush1.bf16.msra.mxu0 %v3381
      %3480 = vmatprep.subr.bf16.mxu0 0
      %3481 = vmatpush1.bf16.msra.mxu0 %v3382
      %3482 = vmatprep.subr.bf16.mxu0 0
      %3483 = vmatpush1.bf16.msra.mxu0 %v3383
      %3484 = vmatprep.subr.bf16.mxu0 0
      %3485 = vmatpush1.bf16.msra.mxu0 %v3384
      %3486 = vmatprep.subr.bf16.mxu0 0
      %3487 = vmatpush1.bf16.msra.mxu0 %v3385
      %3488 = vmatprep.subr.bf16.mxu0 0
      %3489 = vmatpush1.bf16.msra.mxu0 %v3386
      %3490 = vmatprep.subr.bf16.mxu0 0
      %3491 = vmatpush1.bf16.msra.mxu0 %v3387
      %3492 = vmatprep.subr.bf16.mxu0 0
      %3493 = vmatpush1.bf16.msra.mxu0 %v3388
      %3494 = vmatprep.subr.bf16.mxu0 0
      %3495 = vmatpush1.bf16.msra.mxu0 0
      %3496 = vmatprep.subr.bf16.mxu0 0
      %3497 = vmatpush1.bf16.msra.mxu0 0
      %3498 = vmatprep.subr.bf16.mxu0 0
      %3499 = vmatpush1.bf16.msra.mxu0 0
      %3500 = vmatprep.subr.bf16.mxu0 0
      %3501 = vmatpush1.bf16.msra.mxu0 0
      %3502 = vmatprep.subr.bf16.mxu0 0
      %3503 = vmatpush1.bf16.msra.mxu0 0
      %3504 = vmatprep.subr.bf16.mxu0 0
      %3505 = vmatpush1.bf16.msra.mxu0 0
      %3506 = vmatprep.subr.bf16.mxu0 0
      %3507 = vmatpush1.bf16.msra.mxu0 0
      %3508 = vmatprep.subr.bf16.mxu0 0
      %3509 = vmatpush1.bf16.msra.mxu0 0
      %3510 = vmatprep.mubr.bf16.mxu0 0
      %3511 = vmatmul.mubr.bf16.gmra.mrb[0].mxu0 %v3247
      %v3512 = vpop.f32.mrb[0].mxu0
      %v3513 = vadd.f32 %v3448, %v3512
      %v3514 = vpop.f32.mrb[0].mxu0
      %v3515 = vpop.f32.mrb[0].mxu0
      %v3516 = vadd.f32 %v3451, %v3515
      %v3517 = vpop.f32.mrb[0].mxu0
      %3518 = vmatprep.mubr.bf16.mxu0 0
      %3519 = vmatmul.mubr.bf16.gmra.mrb[0].mxu0 %v3250
      %v3520 = vpop.f32.mrb[0].mxu0
      %v3521 = vadd.f32 %v3456, %v3520
      %v3522 = vpop.f32.mrb[0].mxu0
      %v3523 = vpop.f32.mrb[0].mxu0
      %v3524 = vadd.f32 %v3459, %v3523
      %v3525 = vpop.f32.mrb[0].mxu0
      %3526 = vmatprep.mubr.bf16.mxu0 0
      %3527 = vmatmul.mubr.bf16.gmra.mrb[0].mxu0 %v3253
      %v3528 = vpop.f32.mrb[0].mxu0
      %v3529 = vadd.f32 %v3464, %v3528
      %v3530 = vpop.f32.mrb[0].mxu0
      %v3531 = vpop.f32.mrb[0].mxu0
      %v3532 = vadd.f32 %v3467, %v3531
      %v3533 = vpop.f32.mrb[0].mxu0
      %3534 = vmatprep.mubr.bf16.mxu0 0
      %3535 = vmatmul.mubr.bf16.gmra.mrb[0].mxu0 %v3256
      %v3536 = vpop.f32.mrb[0].mxu0
      %v3537 = vadd.f32 %v3472, %v3536
      %v3538 = vpop.f32.mrb[0].mxu0
      %v3539 = vpop.f32.mrb[0].mxu0
      %v3540 = vadd.f32 %v3475, %v3539
      %v3541 = vpop.f32.mrb[0].mxu0
      %3542 = vdwg.mxu0
      %v3543 = vadd.f32 %v3188, %v3513
      %v3544 = vadd.f32 %v3189, %v3516
      %v3545 = vadd.f32 %v3190, %v3521
      %v3546 = vadd.f32 %v3191, %v3524
      %v3547 = vadd.f32 %v3192, %v3529
      %v3548 = vadd.f32 %v3193, %v3532
      %v3549 = vadd.f32 %v3194, %v3537
      %v3550 = vadd.f32 %v3195, %v3540
      %3551 = vst [vmem:[#allocation2] sm:$0xff] %v3543
      %3552 = vst [vmem:[#allocation2 + $0x8] sm:$0xff] %v3544
      %3553 = vst [vmem:[#allocation2 + $0x10] sm:$0xff] %v3545
      %3554 = vst [vmem:[#allocation2 + $0x18] sm:$0xff] %v3546
      %3555 = vst [vmem:[#allocation2 + $0x20] sm:$0xff] %v3547
      %3556 = vst [vmem:[#allocation2 + $0x28] sm:$0xff] %v3548
      %3557 = vst [vmem:[#allocation2 + $0x30] sm:$0xff] %v3549
      %3558 = vst [vmem:[#allocation2 + $0x38] sm:$0xff] %v3550
      %v3559 = vunpack.c.l.b16 %v3124
      %v3560 = vunpack.c.l.b16 %v3170
      %v3561 = vld [vmem:[#allocation2] sm:$0xff]
      %v3562 = vld [vmem:[#allocation2 + $0x8] sm:$0xff]
      %v3563 = vld [vmem:[#allocation2 + $0x10] sm:$0xff]
      %v3564 = vld [vmem:[#allocation2 + $0x18] sm:$0xff]
      %v3565 = vld [vmem:[#allocation2 + $0x20] sm:$0xff]
      %v3566 = vld [vmem:[#allocation2 + $0x28] sm:$0xff]
      %v3567 = vld [vmem:[#allocation2 + $0x30] sm:$0xff]
      %v3568 = vld [vmem:[#allocation2 + $0x38] sm:$0xff]
      %s3569 = scalar_lea.vmem %s3, 1344
      %v3570 = vld [vmem:[%s3569] sm:$0xf]
      %v3571 = vld [vmem:[%s3569 + $0x4] sm:$0xf]
      %v3572 = vld [vmem:[%s3569 + $0x8] sm:$0xf]
      %v3573 = vld [vmem:[%s3569 + $0xc] sm:$0xf]
      %v3574 = vld [vmem:[%s3569 + $0x10] sm:$0xf]
      %v3575 = vld [vmem:[%s3569 + $0x14] sm:$0xf]
      %v3576 = vld [vmem:[%s3569 + $0x18] sm:$0xf]
      %v3577 = vld [vmem:[%s3569 + $0x1c] sm:$0xf]
      %v3578 = vld [vmem:[%s3569 + $0x20] sm:$0xf]
      %v3579 = vld [vmem:[%s3569 + $0x24] sm:$0xf]
      %v3580 = vld [vmem:[%s3569 + $0x28] sm:$0xf]
      %v3581 = vld [vmem:[%s3569 + $0x2c] sm:$0xf]
      %v3582 = vld [vmem:[%s3569 + $0x30] sm:$0xf]
      %v3583 = vld [vmem:[%s3569 + $0x34] sm:$0xf]
      %v3584 = vld [vmem:[%s3569 + $0x38] sm:$0xf]
      %v3585 = vld [vmem:[%s3569 + $0x3c] sm:$0xf]
      %v3586 = vld [vmem:[%s3569 + $0x40] sm:$0xf]
      %v3587 = vld [vmem:[%s3569 + $0x44] sm:$0xf]
      %v3588 = vld [vmem:[%s3569 + $0x48] sm:$0xf]
      %v3589 = vld [vmem:[%s3569 + $0x4c] sm:$0xf]
      %v3590 = vld [vmem:[%s3569 + $0x50] sm:$0xf]
      %v3591 = vld [vmem:[%s3569 + $0x54] sm:$0xf]
      %v3592 = vld [vmem:[%s3569 + $0x58] sm:$0xf]
      %v3593 = vld [vmem:[%s3569 + $0x5c] sm:$0xf]
      %v3594 = vld [vmem:[%s3569 + $0x60] sm:$0xf]
      %v3595 = vld [vmem:[%s3569 + $0x64] sm:$0xf]
      %v3596 = vld [vmem:[%s3569 + $0x68] sm:$0xf]
      %v3597 = vld [vmem:[%s3569 + $0x6c] sm:$0xf]
      %v3598 = vld [vmem:[%s3569 + $0x70] sm:$0xf]
      %v3599 = vld [vmem:[%s3569 + $0x74] sm:$0xf]
      %v3600 = vld [vmem:[%s3569 + $0x78] sm:$0xf]
      %v3601 = vld [vmem:[%s3569 + $0x7c] sm:$0xf]
      %v3602 = vld [vmem:[%s3569 + $0x80] sm:$0xf]
      %v3603 = vld [vmem:[%s3569 + $0x84] sm:$0xf]
      %v3604 = vld [vmem:[%s3569 + $0x88] sm:$0xf]
      %v3605 = vld [vmem:[%s3569 + $0x8c] sm:$0xf]
      %v3606 = vld [vmem:[%s3569 + $0x90] sm:$0xf]
      %v3607 = vld [vmem:[%s3569 + $0x94] sm:$0xf]
      %v3608 = vld [vmem:[%s3569 + $0x98] sm:$0xf]
      %v3609 = vld [vmem:[%s3569 + $0x9c] sm:$0xf]
      %v3610 = vld [vmem:[%s3569 + $0xa0] sm:$0xf]
      %v3611 = vld [vmem:[%s3569 + $0xa4] sm:$0xf]
      %v3612 = vld [vmem:[%s3569 + $0xa8] sm:$0xf]
      %v3613 = vld [vmem:[%s3569 + $0xac] sm:$0xf]
      %v3614 = vld [vmem:[%s3569 + $0xb0] sm:$0xf]
      %v3615 = vld [vmem:[%s3569 + $0xb4] sm:$0xf]
      %v3616 = vld [vmem:[%s3569 + $0xb8] sm:$0xf]
      %v3617 = vld [vmem:[%s3569 + $0xbc] sm:$0xf]
      %v3618 = vpack.c.b16 %v3036, %v3034
      %v3619 = vpack.c.b16 %v3176, %v3174
      %v3620 = vpack.c.b16 %v3177, %v3175
      %v3621 = vpack.c.b16 %v3040, %v3038
      %v3622 = vpack.c.b16 %v3180, %v3178
      %v3623 = vpack.c.b16 %v3181, %v3179
      %v3624 = vpack.c.b16 %v3044, %v3042
      %v3625 = vpack.c.b16 %v3184, %v3182
      %v3626 = vpack.c.b16 %v3185, %v3183
      %v3627 = vpack.c.b16 %v3048, %v3046
      %v3628 = vpack.c.b16 %v3559, %v3186
      %v3629 = vpack.c.b16 %v3560, %v3187
      %v3690 = vunpack.c.l.b16 %v3570
      %v3691 = vunpack.c.l.b16 %v3571
      %v3692 = vunpack.c.l.b16 %v3572
      %v3693 = vunpack.c.l.b16 %v3573
      %v3694 = vunpack.c.l.b16 %v3574
      %v3695 = vunpack.c.l.b16 %v3575
      %v3696 = vunpack.c.l.b16 %v3576
      %v3697 = vunpack.c.l.b16 %v3577
      %v3698 = vunpack.c.l.b16 %v3578
      %v3699 = vunpack.c.l.b16 %v3579
      %v3700 = vunpack.c.l.b16 %v3580
      %v3701 = vunpack.c.l.b16 %v3581
      %v3702 = vunpack.c.l.b16 %v3582
      %v3703 = vunpack.c.l.b16 %v3583
      %v3704 = vunpack.c.l.b16 %v3584
      %v3705 = vunpack.c.l.b16 %v3585
      %v3706 = vunpack.c.l.b16 %v3586
      %v3707 = vunpack.c.l.b16 %v3587
      %v3708 = vunpack.c.l.b16 %v3588
      %v3709 = vunpack.c.l.b16 %v3589
      %v3710 = vunpack.c.l.b16 %v3590
      %v3711 = vunpack.c.l.b16 %v3591
      %v3712 = vunpack.c.l.b16 %v3592
      %v3713 = vunpack.c.l.b16 %v3593
      %v3714 = vunpack.c.l.b16 %v3594
      %v3715 = vunpack.c.l.b16 %v3595
      %v3716 = vunpack.c.l.b16 %v3596
      %v3717 = vunpack.c.l.b16 %v3597
      %v3718 = vunpack.c.l.b16 %v3598
      %v3719 = vunpack.c.l.b16 %v3599
      %v3720 = vunpack.c.l.b16 %v3600
      %v3721 = vunpack.c.l.b16 %v3601
      %v3722 = vunpack.c.l.b16 %v3602
      %v3723 = vunpack.c.l.b16 %v3603
      %v3724 = vunpack.c.l.b16 %v3604
      %v3725 = vunpack.c.l.b16 %v3605
      %v3726 = vunpack.c.l.b16 %v3606
      %v3727 = vunpack.c.l.b16 %v3607
      %v3728 = vunpack.c.l.b16 %v3608
      %v3729 = vunpack.c.l.b16 %v3609
      %v3730 = vunpack.c.l.b16 %v3610
      %v3731 = vunpack.c.l.b16 %v3611
      %v3732 = vunpack.c.l.b16 %v3612
      %v3733 = vunpack.c.l.b16 %v3613
      %v3734 = vunpack.c.l.b16 %v3614
      %v3735 = vunpack.c.l.b16 %v3615
      %v3736 = vunpack.c.l.b16 %v3616
      %v3737 = vunpack.c.l.b16 %v3617
      %v3738 = vpack.c.b16 %v3691, %v3690
      %v3739 = vpack.c.b16 %v3693, %v3692
      %v3740 = vpack.c.b16 %v3695, %v3694
      %v3741 = vpack.c.b16 %v3697, %v3696
      %v3742 = vpack.c.b16 %v3699, %v3698
      %v3743 = vpack.c.b16 %v3701, %v3700
      %v3744 = vpack.c.b16 %v3703, %v3702
      %v3745 = vpack.c.b16 %v3705, %v3704
      %v3746 = vpack.c.b16 %v3707, %v3706
      %v3747 = vpack.c.b16 %v3709, %v3708
      %v3748 = vpack.c.b16 %v3711, %v3710
      %v3749 = vpack.c.b16 %v3713, %v3712
      %v3750 = vpack.c.b16 %v3715, %v3714
      %v3751 = vpack.c.b16 %v3717, %v3716
      %v3752 = vpack.c.b16 %v3719, %v3718
      %v3753 = vpack.c.b16 %v3721, %v3720
      %v3754 = vpack.c.b16 %v3723, %v3722
      %v3755 = vpack.c.b16 %v3725, %v3724
      %v3756 = vpack.c.b16 %v3727, %v3726
      %v3757 = vpack.c.b16 %v3729, %v3728
      %v3758 = vpack.c.b16 %v3731, %v3730
      %v3759 = vpack.c.b16 %v3733, %v3732
      %v3760 = vpack.c.b16 %v3735, %v3734
      %v3761 = vpack.c.b16 %v3737, %v3736
      %3786 = vmatprep.subr.bf16.mxu0 0
      %3787 = vmatpush1.bf16.msra.mxu0 %v3738
      %3788 = vmatprep.subr.bf16.mxu0 0
      %3789 = vmatpush1.bf16.msra.mxu0 %v3739
      %3790 = vmatprep.subr.bf16.mxu0 0
      %3791 = vmatpush1.bf16.msra.mxu0 %v3740
      %3792 = vmatprep.subr.bf16.mxu0 0
      %3793 = vmatpush1.bf16.msra.mxu0 %v3741
      %3794 = vmatprep.subr.bf16.mxu0 0
      %3795 = vmatpush1.bf16.msra.mxu0 %v3742
      %3796 = vmatprep.subr.bf16.mxu0 0
      %3797 = vmatpush1.bf16.msra.mxu0 %v3743
      %3798 = vmatprep.subr.bf16.mxu0 0
      %3799 = vmatpush1.bf16.msra.mxu0 %v3744
      %3800 = vmatprep.subr.bf16.mxu0 0
      %3801 = vmatpush1.bf16.msra.mxu0 %v3745
      %3802 = vmatprep.subr.bf16.mxu0 0
      %3803 = vmatpush1.bf16.msra.mxu0 %v3746
      %3804 = vmatprep.subr.bf16.mxu0 0
      %3805 = vmatpush1.bf16.msra.mxu0 %v3747
      %3806 = vmatprep.subr.bf16.mxu0 0
      %3807 = vmatpush1.bf16.msra.mxu0 %v3748
      %3808 = vmatprep.subr.bf16.mxu0 0
      %3809 = vmatpush1.bf16.msra.mxu0 %v3749
      %3810 = vmatprep.subr.bf16.mxu0 0
      %3811 = vmatpush1.bf16.msra.mxu0 %v3750
      %3812 = vmatprep.subr.bf16.mxu0 0
      %3813 = vmatpush1.bf16.msra.mxu0 %v3751
      %3814 = vmatprep.subr.bf16.mxu0 0
      %3815 = vmatpush1.bf16.msra.mxu0 %v3752
      %3816 = vmatprep.subr.bf16.mxu0 0
      %3817 = vmatpush1.bf16.msra.mxu0 %v3753
      %3818 = vmatprep.mubr.bf16.mxu0 %v3619
      %3819 = vmatmul.mubr.bf16.gmra.mrb[0].mxu0 %v3618
      %v3820 = vpop.f32.mrb[0].mxu0
      %v3821 = vadd.f32 0.0, %v3820
      %v3822 = vpop.f32.mrb[0].mxu0
      %v3823 = vpop.f32.mrb[0].mxu0
      %v3824 = vadd.f32 0.0, %v3823
      %v3825 = vpop.f32.mrb[0].mxu0
      %3826 = vmatprep.mubr.bf16.mxu0 %v3622
      %3827 = vmatmul.mubr.bf16.gmra.mrb[0].mxu0 %v3621
      %v3828 = vpop.f32.mrb[0].mxu0
      %v3829 = vadd.f32 0.0, %v3828
      %v3830 = vpop.f32.mrb[0].mxu0
      %v3831 = vpop.f32.mrb[0].mxu0
      %v3832 = vadd.f32 0.0, %v3831
      %v3833 = vpop.f32.mrb[0].mxu0
      %3834 = vmatprep.mubr.bf16.mxu0 %v3625
      %3835 = vmatmul.mubr.bf16.gmra.mrb[0].mxu0 %v3624
      %v3836 = vpop.f32.mrb[0].mxu0
      %v3837 = vadd.f32 0.0, %v3836
      %v3838 = vpop.f32.mrb[0].mxu0
      %v3839 = vpop.f32.mrb[0].mxu0
      %v3840 = vadd.f32 0.0, %v3839
      %v3841 = vpop.f32.mrb[0].mxu0
      %3842 = vmatprep.mubr.bf16.mxu0 %v3628
      %3843 = vmatmul.mubr.bf16.gmra.mrb[0].mxu0 %v3627
      %v3844 = vpop.f32.mrb[0].mxu0
      %v3845 = vadd.f32 0.0, %v3844
      %v3846 = vpop.f32.mrb[0].mxu0
      %v3847 = vpop.f32.mrb[0].mxu0
      %v3848 = vadd.f32 0.0, %v3847
      %v3849 = vpop.f32.mrb[0].mxu0
      %3850 = vdwg.mxu0
      %3851 = vmatprep.subr.bf16.mxu0 0
      %3852 = vmatpush1.bf16.msra.mxu0 %v3754
      %3853 = vmatprep.subr.bf16.mxu0 0
      %3854 = vmatpush1.bf16.msra.mxu0 %v3755
      %3855 = vmatprep.subr.bf16.mxu0 0
      %3856 = vmatpush1.bf16.msra.mxu0 %v3756
      %3857 = vmatprep.subr.bf16.mxu0 0
      %3858 = vmatpush1.bf16.msra.mxu0 %v3757
      %3859 = vmatprep.subr.bf16.mxu0 0
      %3860 = vmatpush1.bf16.msra.mxu0 %v3758
      %3861 = vmatprep.subr.bf16.mxu0 0
      %3862 = vmatpush1.bf16.msra.mxu0 %v3759
      %3863 = vmatprep.subr.bf16.mxu0 0
      %3864 = vmatpush1.bf16.msra.mxu0 %v3760
      %3865 = vmatprep.subr.bf16.mxu0 0
      %3866 = vmatpush1.bf16.msra.mxu0 %v3761
      %3867 = vmatprep.subr.bf16.mxu0 0
      %3868 = vmatpush1.bf16.msra.mxu0 0
      %3869 = vmatprep.subr.bf16.mxu0 0
      %3870 = vmatpush1.bf16.msra.mxu0 0
      %3871 = vmatprep.subr.bf16.mxu0 0
      %3872 = vmatpush1.bf16.msra.mxu0 0
      %3873 = vmatprep.subr.bf16.mxu0 0
      %3874 = vmatpush1.bf16.msra.mxu0 0
      %3875 = vmatprep.subr.bf16.mxu0 0
      %3876 = vmatpush1.bf16.msra.mxu0 0
      %3877 = vmatprep.subr.bf16.mxu0 0
      %3878 = vmatpush1.bf16.msra.mxu0 0
      %3879 = vmatprep.subr.bf16.mxu0 0
      %3880 = vmatpush1.bf16.msra.mxu0 0
      %3881 = vmatprep.subr.bf16.mxu0 0
      %3882 = vmatpush1.bf16.msra.mxu0 0
      %3883 = vmatprep.mubr.bf16.mxu0 0
      %3884 = vmatmul.mubr.bf16.gmra.mrb[0].mxu0 %v3620
      %v3885 = vpop.f32.mrb[0].mxu0
      %v3886 = vadd.f32 %v3821, %v3885
      %v3887 = vpop.f32.mrb[0].mxu0
      %v3888 = vpop.f32.mrb[0].mxu0
      %v3889 = vadd.f32 %v3824, %v3888
      %v3890 = vpop.f32.mrb[0].mxu0
      %3891 = vmatprep.mubr.bf16.mxu0 0
      %3892 = vmatmul.mubr.bf16.gmra.mrb[0].mxu0 %v3623
      %v3893 = vpop.f32.mrb[0].mxu0
      %v3894 = vadd.f32 %v3829, %v3893
      %v3895 = vpop.f32.mrb[0].mxu0
      %v3896 = vpop.f32.mrb[0].mxu0
      %v3897 = vadd.f32 %v3832, %v3896
      %v3898 = vpop.f32.mrb[0].mxu0
      %3899 = vmatprep.mubr.bf16.mxu0 0
      %3900 = vmatmul.mubr.bf16.gmra.mrb[0].mxu0 %v3626
      %v3901 = vpop.f32.mrb[0].mxu0
      %v3902 = vadd.f32 %v3837, %v3901
      %v3903 = vpop.f32.mrb[0].mxu0
      %v3904 = vpop.f32.mrb[0].mxu0
      %v3905 = vadd.f32 %v3840, %v3904
      %v3906 = vpop.f32.mrb[0].mxu0
      %3907 = vmatprep.mubr.bf16.mxu0 0
      %3908 = vmatmul.mubr.bf16.gmra.mrb[0].mxu0 %v3629
      %v3909 = vpop.f32.mrb[0].mxu0
      %v3910 = vadd.f32 %v3845, %v3909
      %v3911 = vpop.f32.mrb[0].mxu0
      %v3912 = vpop.f32.mrb[0].mxu0
      %v3913 = vadd.f32 %v3848, %v3912
      %v3914 = vpop.f32.mrb[0].mxu0
      %3915 = vdwg.mxu0
      %v3916 = vadd.f32 %v3561, %v3886
      %v3917 = vadd.f32 %v3562, %v3889
      %v3918 = vadd.f32 %v3563, %v3894
      %v3919 = vadd.f32 %v3564, %v3897
      %v3920 = vadd.f32 %v3565, %v3902
      %v3921 = vadd.f32 %v3566, %v3905
      %v3922 = vadd.f32 %v3567, %v3910
      %v3923 = vadd.f32 %v3568, %v3913
      %3924 = vst [vmem:[#allocation2] sm:$0xff] %v3916
      %3925 = vst [vmem:[#allocation2 + $0x8] sm:$0xff] %v3917
      %3926 = vst [vmem:[#allocation2 + $0x10] sm:$0xff] %v3918
      %3927 = vst [vmem:[#allocation2 + $0x18] sm:$0xff] %v3919
      %3928 = vst [vmem:[#allocation2 + $0x20] sm:$0xff] %v3920
      %3929 = vst [vmem:[#allocation2 + $0x28] sm:$0xff] %v3921
      %3930 = vst [vmem:[#allocation2 + $0x30] sm:$0xff] %v3922
      %3931 = vst [vmem:[#allocation2 + $0x38] sm:$0xff] %v3923
      %v3932 = vunpack.c.l.b16 %v3131
      %v3933 = vunpack.c.l.b16 %v3171
      %v3934 = vld [vmem:[#allocation2] sm:$0xff]
      %v3935 = vld [vmem:[#allocation2 + $0x8] sm:$0xff]
      %v3936 = vld [vmem:[#allocation2 + $0x10] sm:$0xff]
      %v3937 = vld [vmem:[#allocation2 + $0x18] sm:$0xff]
      %v3938 = vld [vmem:[#allocation2 + $0x20] sm:$0xff]
      %v3939 = vld [vmem:[#allocation2 + $0x28] sm:$0xff]
      %v3940 = vld [vmem:[#allocation2 + $0x30] sm:$0xff]
      %v3941 = vld [vmem:[#allocation2 + $0x38] sm:$0xff]
      %s3942 = scalar_lea.vmem %s3, 1536
      %v3943 = vld [vmem:[%s3942] sm:$0xf]
      %v3944 = vld [vmem:[%s3942 + $0x4] sm:$0xf]
      %v3945 = vld [vmem:[%s3942 + $0x8] sm:$0xf]
      %v3946 = vld [vmem:[%s3942 + $0xc] sm:$0xf]
      %v3947 = vld [vmem:[%s3942 + $0x10] sm:$0xf]
      %v3948 = vld [vmem:[%s3942 + $0x14] sm:$0xf]
      %v3949 = vld [vmem:[%s3942 + $0x18] sm:$0xf]
      %v3950 = vld [vmem:[%s3942 + $0x1c] sm:$0xf]
      %v3951 = vld [vmem:[%s3942 + $0x20] sm:$0xf]
      %v3952 = vld [vmem:[%s3942 + $0x24] sm:$0xf]
      %v3953 = vld [vmem:[%s3942 + $0x28] sm:$0xf]
      %v3954 = vld [vmem:[%s3942 + $0x2c] sm:$0xf]
      %v3955 = vld [vmem:[%s3942 + $0x30] sm:$0xf]
      %v3956 = vld [vmem:[%s3942 + $0x34] sm:$0xf]
      %v3957 = vld [vmem:[%s3942 + $0x38] sm:$0xf]
      %v3958 = vld [vmem:[%s3942 + $0x3c] sm:$0xf]
      %v3959 = vld [vmem:[%s3942 + $0x40] sm:$0xf]
      %v3960 = vld [vmem:[%s3942 + $0x44] sm:$0xf]
      %v3961 = vld [vmem:[%s3942 + $0x48] sm:$0xf]
      %v3962 = vld [vmem:[%s3942 + $0x4c] sm:$0xf]
      %v3963 = vld [vmem:[%s3942 + $0x50] sm:$0xf]
      %v3964 = vld [vmem:[%s3942 + $0x54] sm:$0xf]
      %v3965 = vld [vmem:[%s3942 + $0x58] sm:$0xf]
      %v3966 = vld [vmem:[%s3942 + $0x5c] sm:$0xf]
      %v3967 = vld [vmem:[%s3942 + $0x60] sm:$0xf]
      %v3968 = vld [vmem:[%s3942 + $0x64] sm:$0xf]
      %v3969 = vld [vmem:[%s3942 + $0x68] sm:$0xf]
      %v3970 = vld [vmem:[%s3942 + $0x6c] sm:$0xf]
      %v3971 = vld [vmem:[%s3942 + $0x70] sm:$0xf]
      %v3972 = vld [vmem:[%s3942 + $0x74] sm:$0xf]
      %v3973 = vld [vmem:[%s3942 + $0x78] sm:$0xf]
      %v3974 = vld [vmem:[%s3942 + $0x7c] sm:$0xf]
      %v3975 = vld [vmem:[%s3942 + $0x80] sm:$0xf]
      %v3976 = vld [vmem:[%s3942 + $0x84] sm:$0xf]
      %v3977 = vld [vmem:[%s3942 + $0x88] sm:$0xf]
      %v3978 = vld [vmem:[%s3942 + $0x8c] sm:$0xf]
      %v3979 = vld [vmem:[%s3942 + $0x90] sm:$0xf]
      %v3980 = vld [vmem:[%s3942 + $0x94] sm:$0xf]
      %v3981 = vld [vmem:[%s3942 + $0x98] sm:$0xf]
      %v3982 = vld [vmem:[%s3942 + $0x9c] sm:$0xf]
      %v3983 = vld [vmem:[%s3942 + $0xa0] sm:$0xf]
      %v3984 = vld [vmem:[%s3942 + $0xa4] sm:$0xf]
      %v3985 = vld [vmem:[%s3942 + $0xa8] sm:$0xf]
      %v3986 = vld [vmem:[%s3942 + $0xac] sm:$0xf]
      %v3987 = vld [vmem:[%s3942 + $0xb0] sm:$0xf]
      %v3988 = vld [vmem:[%s3942 + $0xb4] sm:$0xf]
      %v3989 = vld [vmem:[%s3942 + $0xb8] sm:$0xf]
      %v3990 = vld [vmem:[%s3942 + $0xbc] sm:$0xf]
      %v3991 = vpack.c.b16 %v3050, %v3048
      %v3992 = vpack.c.b16 %v3932, %v3559
      %v3993 = vpack.c.b16 %v3933, %v3560
      %v4045 = vunpack.c.l.b16 %v3943
      %v4046 = vunpack.c.l.b16 %v3944
      %v4047 = vunpack.c.l.b16 %v3945
      %v4048 = vunpack.c.l.b16 %v3946
      %v4049 = vunpack.c.l.b16 %v3947
      %v4050 = vunpack.c.l.b16 %v3948
      %v4051 = vunpack.c.l.b16 %v3949
      %v4052 = vunpack.c.l.b16 %v3950
      %v4053 = vunpack.c.l.b16 %v3951
      %v4054 = vunpack.c.l.b16 %v3952
      %v4055 = vunpack.c.l.b16 %v3953
      %v4056 = vunpack.c.l.b16 %v3954
      %v4057 = vunpack.c.l.b16 %v3955
      %v4058 = vunpack.c.l.b16 %v3956
      %v4059 = vunpack.c.l.b16 %v3957
      %v4060 = vunpack.c.l.b16 %v3958
      %v4061 = vunpack.c.l.b16 %v3959
      %v4062 = vunpack.c.l.b16 %v3960
      %v4063 = vunpack.c.l.b16 %v3961
      %v4064 = vunpack.c.l.b16 %v3962
      %v4065 = vunpack.c.l.b16 %v3963
      %v4066 = vunpack.c.l.b16 %v3964
      %v4067 = vunpack.c.l.b16 %v3965
      %v4068 = vunpack.c.l.b16 %v3966
      %v4069 = vunpack.c.l.b16 %v3967
      %v4070 = vunpack.c.l.b16 %v3968
      %v4071 = vunpack.c.l.b16 %v3969
      %v4072 = vunpack.c.l.b16 %v3970
      %v4073 = vunpack.c.l.b16 %v3971
      %v4074 = vunpack.c.l.b16 %v3972
      %v4075 = vunpack.c.l.b16 %v3973
      %v4076 = vunpack.c.l.b16 %v3974
      %v4077 = vunpack.c.l.b16 %v3975
      %v4078 = vunpack.c.l.b16 %v3976
      %v4079 = vunpack.c.l.b16 %v3977
      %v4080 = vunpack.c.l.b16 %v3978
      %v4081 = vunpack.c.l.b16 %v3979
      %v4082 = vunpack.c.l.b16 %v3980
      %v4083 = vunpack.c.l.b16 %v3981
      %v4084 = vunpack.c.l.b16 %v3982
      %v4085 = vunpack.c.l.b16 %v3983
      %v4086 = vunpack.c.l.b16 %v3984
      %v4087 = vunpack.c.l.b16 %v3985
      %v4088 = vunpack.c.l.b16 %v3986
      %v4089 = vunpack.c.l.b16 %v3987
      %v4090 = vunpack.c.l.b16 %v3988
      %v4091 = vunpack.c.l.b16 %v3989
      %v4092 = vunpack.c.l.b16 %v3990
      %v4093 = vpack.c.b16 %v4046, %v4045
      %v4094 = vpack.c.b16 %v4048, %v4047
      %v4095 = vpack.c.b16 %v4050, %v4049
      %v4096 = vpack.c.b16 %v4052, %v4051
      %v4097 = vpack.c.b16 %v4054, %v4053
      %v4098 = vpack.c.b16 %v4056, %v4055
      %v4099 = vpack.c.b16 %v4058, %v4057
      %v4100 = vpack.c.b16 %v4060, %v4059
      %v4101 = vpack.c.b16 %v4062, %v4061
      %v4102 = vpack.c.b16 %v4064, %v4063
      %v4103 = vpack.c.b16 %v4066, %v4065
      %v4104 = vpack.c.b16 %v4068, %v4067
      %v4105 = vpack.c.b16 %v4070, %v4069
      %v4106 = vpack.c.b16 %v4072, %v4071
      %v4107 = vpack.c.b16 %v4074, %v4073
      %v4108 = vpack.c.b16 %v4076, %v4075
      %v4109 = vpack.c.b16 %v4078, %v4077
      %v4110 = vpack.c.b16 %v4080, %v4079
      %v4111 = vpack.c.b16 %v4082, %v4081
      %v4112 = vpack.c.b16 %v4084, %v4083
      %v4113 = vpack.c.b16 %v4086, %v4085
      %v4114 = vpack.c.b16 %v4088, %v4087
      %v4115 = vpack.c.b16 %v4090, %v4089
      %v4116 = vpack.c.b16 %v4092, %v4091
      %4141 = vmatprep.subr.bf16.mxu0 0
      %4142 = vmatpush1.bf16.msra.mxu0 %v4093
      %4143 = vmatprep.subr.bf16.mxu0 0
      %4144 = vmatpush1.bf16.msra.mxu0 %v4094
      %4145 = vmatprep.subr.bf16.mxu0 0
      %4146 = vmatpush1.bf16.msra.mxu0 %v4095
      %4147 = vmatprep.subr.bf16.mxu0 0
      %4148 = vmatpush1.bf16.msra.mxu0 %v4096
      %4149 = vmatprep.subr.bf16.mxu0 0
      %4150 = vmatpush1.bf16.msra.mxu0 %v4097
      %4151 = vmatprep.subr.bf16.mxu0 0
      %4152 = vmatpush1.bf16.msra.mxu0 %v4098
      %4153 = vmatprep.subr.bf16.mxu0 0
      %4154 = vmatpush1.bf16.msra.mxu0 %v4099
      %4155 = vmatprep.subr.bf16.mxu0 0
      %4156 = vmatpush1.bf16.msra.mxu0 %v4100
      %4157 = vmatprep.subr.bf16.mxu0 0
      %4158 = vmatpush1.bf16.msra.mxu0 %v4101
      %4159 = vmatprep.subr.bf16.mxu0 0
      %4160 = vmatpush1.bf16.msra.mxu0 %v4102
      %4161 = vmatprep.subr.bf16.mxu0 0
      %4162 = vmatpush1.bf16.msra.mxu0 %v4103
      %4163 = vmatprep.subr.bf16.mxu0 0
      %4164 = vmatpush1.bf16.msra.mxu0 %v4104
      %4165 = vmatprep.subr.bf16.mxu0 0
      %4166 = vmatpush1.bf16.msra.mxu0 %v4105
      %4167 = vmatprep.subr.bf16.mxu0 0
      %4168 = vmatpush1.bf16.msra.mxu0 %v4106
      %4169 = vmatprep.subr.bf16.mxu0 0
      %4170 = vmatpush1.bf16.msra.mxu0 %v4107
      %4171 = vmatprep.subr.bf16.mxu0 0
      %4172 = vmatpush1.bf16.msra.mxu0 %v4108
      %4173 = vmatprep.mubr.bf16.mxu0 %v3249
      %4174 = vmatmul.mubr.bf16.gmra.mrb[0].mxu0 %v3248
      %v4175 = vpop.f32.mrb[0].mxu0
      %v4176 = vadd.f32 0.0, %v4175
      %v4177 = vpop.f32.mrb[0].mxu0
      %v4178 = vpop.f32.mrb[0].mxu0
      %v4179 = vadd.f32 0.0, %v4178
      %v4180 = vpop.f32.mrb[0].mxu0
      %4181 = vmatprep.mubr.bf16.mxu0 %v3252
      %4182 = vmatmul.mubr.bf16.gmra.mrb[0].mxu0 %v3251
      %v4183 = vpop.f32.mrb[0].mxu0
      %v4184 = vadd.f32 0.0, %v4183
      %v4185 = vpop.f32.mrb[0].mxu0
      %v4186 = vpop.f32.mrb[0].mxu0
      %v4187 = vadd.f32 0.0, %v4186
      %v4188 = vpop.f32.mrb[0].mxu0
      %4189 = vmatprep.mubr.bf16.mxu0 %v3255
      %4190 = vmatmul.mubr.bf16.gmra.mrb[0].mxu0 %v3254
      %v4191 = vpop.f32.mrb[0].mxu0
      %v4192 = vadd.f32 0.0, %v4191
      %v4193 = vpop.f32.mrb[0].mxu0
      %v4194 = vpop.f32.mrb[0].mxu0
      %v4195 = vadd.f32 0.0, %v4194
      %v4196 = vpop.f32.mrb[0].mxu0
      %4197 = vmatprep.mubr.bf16.mxu0 %v3992
      %4198 = vmatmul.mubr.bf16.gmra.mrb[0].mxu0 %v3991
      %v4199 = vpop.f32.mrb[0].mxu0
      %v4200 = vadd.f32 0.0, %v4199
      %v4201 = vpop.f32.mrb[0].mxu0
      %v4202 = vpop.f32.mrb[0].mxu0
      %v4203 = vadd.f32 0.0, %v4202
      %v4204 = vpop.f32.mrb[0].mxu0
      %4205 = vdwg.mxu0
      %4206 = vmatprep.subr.bf16.mxu0 0
      %4207 = vmatpush1.bf16.msra.mxu0 %v4109
      %4208 = vmatprep.subr.bf16.mxu0 0
      %4209 = vmatpush1.bf16.msra.mxu0 %v4110
      %4210 = vmatprep.subr.bf16.mxu0 0
      %4211 = vmatpush1.bf16.msra.mxu0 %v4111
      %4212 = vmatprep.subr.bf16.mxu0 0
      %4213 = vmatpush1.bf16.msra.mxu0 %v4112
      %4214 = vmatprep.subr.bf16.mxu0 0
      %4215 = vmatpush1.bf16.msra.mxu0 %v4113
      %4216 = vmatprep.subr.bf16.mxu0 0
      %4217 = vmatpush1.bf16.msra.mxu0 %v4114
      %4218 = vmatprep.subr.bf16.mxu0 0
      %4219 = vmatpush1.bf16.msra.mxu0 %v4115
      %4220 = vmatprep.subr.bf16.mxu0 0
      %4221 = vmatpush1.bf16.msra.mxu0 %v4116
      %4222 = vmatprep.subr.bf16.mxu0 0
      %4223 = vmatpush1.bf16.msra.mxu0 0
      %4224 = vmatprep.subr.bf16.mxu0 0
      %4225 = vmatpush1.bf16.msra.mxu0 0
      %4226 = vmatprep.subr.bf16.mxu0 0
      %4227 = vmatpush1.bf16.msra.mxu0 0
      %4228 = vmatprep.subr.bf16.mxu0 0
      %4229 = vmatpush1.bf16.msra.mxu0 0
      %4230 = vmatprep.subr.bf16.mxu0 0
      %4231 = vmatpush1.bf16.msra.mxu0 0
      %4232 = vmatprep.subr.bf16.mxu0 0
      %4233 = vmatpush1.bf16.msra.mxu0 0
      %4234 = vmatprep.subr.bf16.mxu0 0
      %4235 = vmatpush1.bf16.msra.mxu0 0
      %4236 = vmatprep.subr.bf16.mxu0 0
      %4237 = vmatpush1.bf16.msra.mxu0 0
      %4238 = vmatprep.mubr.bf16.mxu0 0
      %4239 = vmatmul.mubr.bf16.gmra.mrb[0].mxu0 %v3250
      %v4240 = vpop.f32.mrb[0].mxu0
      %v4241 = vadd.f32 %v4176, %v4240
      %v4242 = vpop.f32.mrb[0].mxu0
      %v4243 = vpop.f32.mrb[0].mxu0
      %v4244 = vadd.f32 %v4179, %v4243
      %v4245 = vpop.f32.mrb[0].mxu0
      %4246 = vmatprep.mubr.bf16.mxu0 0
      %4247 = vmatmul.mubr.bf16.gmra.mrb[0].mxu0 %v3253
      %v4248 = vpop.f32.mrb[0].mxu0
      %v4249 = vadd.f32 %v4184, %v4248
      %v4250 = vpop.f32.mrb[0].mxu0
      %v4251 = vpop.f32.mrb[0].mxu0
      %v4252 = vadd.f32 %v4187, %v4251
      %v4253 = vpop.f32.mrb[0].mxu0
      %4254 = vmatprep.mubr.bf16.mxu0 0
      %4255 = vmatmul.mubr.bf16.gmra.mrb[0].mxu0 %v3256
      %v4256 = vpop.f32.mrb[0].mxu0
      %v4257 = vadd.f32 %v4192, %v4256
      %v4258 = vpop.f32.mrb[0].mxu0
      %v4259 = vpop.f32.mrb[0].mxu0
      %v4260 = vadd.f32 %v4195, %v4259
      %v4261 = vpop.f32.mrb[0].mxu0
      %4262 = vmatprep.mubr.bf16.mxu0 0
      %4263 = vmatmul.mubr.bf16.gmra.mrb[0].mxu0 %v3993
      %v4264 = vpop.f32.mrb[0].mxu0
      %v4265 = vadd.f32 %v4200, %v4264
      %v4266 = vpop.f32.mrb[0].mxu0
      %v4267 = vpop.f32.mrb[0].mxu0
      %v4268 = vadd.f32 %v4203, %v4267
      %v4269 = vpop.f32.mrb[0].mxu0
      %4270 = vdwg.mxu0
      %v4271 = vadd.f32 %v3934, %v4241
      %v4272 = vadd.f32 %v3935, %v4244
      %v4273 = vadd.f32 %v3936, %v4249
      %v4274 = vadd.f32 %v3937, %v4252
      %v4275 = vadd.f32 %v3938, %v4257
      %v4276 = vadd.f32 %v3939, %v4260
      %v4277 = vadd.f32 %v3940, %v4265
      %v4278 = vadd.f32 %v3941, %v4268
      %4279 = vst [vmem:[#allocation2] sm:$0xff] %v4271
      %4280 = vst [vmem:[#allocation2 + $0x8] sm:$0xff] %v4272
      %4281 = vst [vmem:[#allocation2 + $0x10] sm:$0xff] %v4273
      %4282 = vst [vmem:[#allocation2 + $0x18] sm:$0xff] %v4274
      %4283 = vst [vmem:[#allocation2 + $0x20] sm:$0xff] %v4275
      %4284 = vst [vmem:[#allocation2 + $0x28] sm:$0xff] %v4276
      %4285 = vst [vmem:[#allocation2 + $0x30] sm:$0xff] %v4277
      %4286 = vst [vmem:[#allocation2 + $0x38] sm:$0xff] %v4278
      %v4287 = vld [vmem:[#allocation2] sm:$0xff]
      %v4288 = vld [vmem:[#allocation2 + $0x8] sm:$0xff]
      %v4289 = vld [vmem:[#allocation2 + $0x10] sm:$0xff]
      %v4290 = vld [vmem:[#allocation2 + $0x18] sm:$0xff]
      %v4291 = vld [vmem:[#allocation2 + $0x20] sm:$0xff]
      %v4292 = vld [vmem:[#allocation2 + $0x28] sm:$0xff]
      %v4293 = vld [vmem:[#allocation2 + $0x30] sm:$0xff]
      %v4294 = vld [vmem:[#allocation2 + $0x38] sm:$0xff]
      %4295 = vst [vmem:[%s355] sm:$0xff] %v4287
      %4296 = vst [vmem:[%s355 + $0x8] sm:$0xff] %v4288
      %4297 = vst [vmem:[%s355 + $0x10] sm:$0xff] %v4289
      %4298 = vst [vmem:[%s355 + $0x18] sm:$0xff] %v4290
      %4299 = vst [vmem:[%s355 + $0x20] sm:$0xff] %v4291
      %4300 = vst [vmem:[%s355 + $0x28] sm:$0xff] %v4292
      %4301 = vst [vmem:[%s355 + $0x30] sm:$0xff] %v4293
      %4302 = vst [vmem:[%s355 + $0x38] sm:$0xff] %v4294
      %v4303 = vadd.f32 %v4287, %v4288
      %v4304 = vadd.f32 %v4303, %v4289
      %v4305 = vadd.f32 %v4304, %v4290
      %v4306 = vadd.f32 %v4305, %v4291
      %v4307 = vadd.f32 %v4306, %v4292
      %v4308 = vadd.f32 %v4307, %v4293
      %v4309 = vadd.f32 %v4308, %v4294
      %v4310 = vrot.slane %v4309, 4
      %v4311 = vadd.f32 %v4309, %v4310
      %v4312 = vrot.slane %v4311, 2
      %v4313 = vadd.f32 %v4311, %v4312
      %v4314 = vrot.slane %v4313, 1
      %v4315 = vadd.f32 %v4313, %v4314
      %v4316 = vmul.f32 %v4287, %v4287
      %v4317 = vmul.f32 %v4288, %v4288
      %v4318 = vmul.f32 %v4289, %v4289
      %v4319 = vmul.f32 %v4290, %v4290
      %v4320 = vmul.f32 %v4291, %v4291
      %v4321 = vmul.f32 %v4292, %v4292
      %v4322 = vmul.f32 %v4293, %v4293
      %v4323 = vmul.f32 %v4294, %v4294
      %v4324 = vadd.f32 %v4316, %v4317
      %v4325 = vadd.f32 %v4324, %v4318
      %v4326 = vadd.f32 %v4325, %v4319
      %v4327 = vadd.f32 %v4326, %v4320
      %v4328 = vadd.f32 %v4327, %v4321
      %v4329 = vadd.f32 %v4328, %v4322
      %v4330 = vadd.f32 %v4329, %v4323
      %v4331 = vrot.slane %v4330, 4
      %v4332 = vadd.f32 %v4330, %v4331
      %v4333 = vrot.slane %v4332, 2
      %v4334 = vadd.f32 %v4332, %v4333
      %v4335 = vrot.slane %v4334, 1
      %v4336 = vadd.f32 %v4334, %v4335
      %vm4337 = vcmask 1040384
      %v4338 = vsel %vm4337, %v4315, %v4336
      %4339 = vst [vmem:[%s363] sm:$0x3] %v4338
      %p4340 = scmp.lt.s32.totalorder %s21, 1
      %s4341 = scalar_select %p4340, %s21, 1
      %p4342 = scmp.lt.s32.totalorder %s22, 3
      %s4343 = scalar_select %p4342, %s22, 3
      %s4344 = smul.addr %s4343, 8
      %s4345 = smul.addr %s4341, 32
      %s4346 = sadd.s32 %s4344, %s4345
      %s4347 = smul.addr %s4346, 8
      %s4348 = scalar_lea.vmem %s4, %s4347
      %p4349 = scmp.lt.s32.totalorder %s21, 1
      %s4350 = scalar_select %p4349, %s21, 1
      %p4351 = scmp.lt.s32.totalorder %s22, 3
      %s4352 = scalar_select %p4351, %s22, 3
      %s4353 = smul.addr %s4350, 4
      %s4354 = sadd.s32 %s4352, %s4353
      %s4355 = smul.addr %s4354, 2
      %s4356 = scalar_lea.vmem %s5, %s4355
      // Predicated region
      $region37: #{basic_block_forward.4} parent=35 // pred_check
        %p4357 = pneg %p158
      $region38: #{basic_block_forward.4} parent=35 // pred_check_branch
        %4359 = sbr.rel (%p4357) target = $region40
      $region39: #{basic_block_forward.4} parent=35 // pred_region
        _
      $region40: #{basic_block_forward.4} parent=35 // pred_fallthru
        _
      // Predicated region
      $region41: #{basic_block_forward.4} parent=35 // pred_check
        %p4360 = pneg %p186
      $region42: #{basic_block_forward.4} parent=35 // pred_check_branch
        %4362 = sbr.rel (%p4360) target = $region44
      $region43: #{basic_block_forward.4} parent=35 // pred_region
        _
      $region44: #{basic_block_forward.4} parent=35 // pred_fallthru
        _
    $region36: #{basic_block_forward.4} parent=5 // pred_fallthru
      _
    %p4363 = scmp.le.s32.totalorder 2, %s12
    // Predicated region
    $region45: #{basic_block_forward.4} parent=5 // pred_check
      %p4364 = pneg %p4363
    $region46: #{basic_block_forward.4} parent=5 // pred_check_branch
      %4366 = sbr.rel (%p4364) target = $region48
    $region47: #{basic_block_forward.4} parent=5 // pred_region
      %s4367 = ssub.s32 %s12, 2
      // Predicated region
      $region49: #{basic_block_forward.4} parent=47 // pred_check
        %p4368 = pneg %p164
      $region50: #{basic_block_forward.4} parent=47 // pred_check_branch
        %4370 = sbr.rel (%p4368) target = $region52
      $region51: #{basic_block_forward.4} parent=47 // pred_region
        %p4371 = scmp.lt.s32.totalorder %s23, 1
        %s4372 = scalar_select %p4371, %s23, 1
        %p4373 = scmp.lt.s32.totalorder %s24, 3
        %s4374 = scalar_select %p4373, %s24, 3
        %s4375 = smul.addr %s4374, 8
        %s4376 = smul.addr %s4372, 32
        %s4377 = sadd.s32 %s4375, %s4376
        %s4378 = smul.addr %s4377, 8
        %s4379 = scalar_lea.vmem %s4, %s4378
      $region52: #{basic_block_forward.4} parent=47 // pred_fallthru
        _
      // Predicated region
      $region53: #{basic_block_forward.4} parent=47 // pred_check
        %p4380 = pneg %p192
      $region54: #{basic_block_forward.4} parent=47 // pred_check_branch
        %4382 = sbr.rel (%p4380) target = $region56
      $region55: #{basic_block_forward.4} parent=47 // pred_region
        %p4383 = scmp.lt.s32.totalorder %s23, 1
        %s4384 = scalar_select %p4383, %s23, 1
        %p4385 = scmp.lt.s32.totalorder %s24, 3
        %s4386 = scalar_select %p4385, %s24, 3
        %s4387 = smul.addr %s4384, 4
        %s4388 = sadd.s32 %s4386, %s4387
        %s4389 = smul.addr %s4388, 2
        %s4390 = scalar_lea.vmem %s5, %s4389
      $region56: #{basic_block_forward.4} parent=47 // pred_fallthru
        _
    $region48: #{basic_block_forward.4} parent=5 // pred_fallthru
      _
  $region6: #{basic_block_forward.4} parent=0 // loop_footer
    %s16 = sadd.s32 1, %s12
  $region7: #{basic_block_forward.4} parent=0 // loop_footer_branch
    %11 = sbr.rel target = $region3
  $region8: #{basic_block_forward.4} parent=0 // loop_exit
    _

</llo_original>
